<compile_context>
chip_gen: v6e
topology: v6e:2x2x1
jax: 0.10.0
libtpu: 0.0.40
codegen_flags: <defaults>
</compile_context>

<pallas_src>
import math
import functools

import jax
import jax.numpy as jnp
import numpy as np
from jax import lax
from jax.experimental import pallas as pl
from jax.experimental.pallas import tpu as pltpu

LN_EPS = 1e-5
NEG_INF = -1000000000.0  # torch masked_fill value for float32


# --------------------------------- kernel ---------------------------------

def decoder_block_kernel(
    x_ref, mem_ref,
    ln_ref, bias_d_ref, b1_ref,
    wqkv1_ref, wo1_ref, wq2_ref, wkv2_ref, wo2_ref, w1_ref, w2_ref,
    out_ref, *, n_heads, compute_dtype):
    cd = compute_dtype
    exact = np.dtype(compute_dtype) == np.dtype(jnp.float32)
    H = n_heads

    x = x_ref[0]              # (T, D) f32
    mem = mem_ref[0]          # (S, D) f32
    ln = ln_ref[...]          # (6, D) f32: [ln1_w, ln1_b, ln2_w, ln2_b, ln3_w, ln3_b]
    bias_d = bias_d_ref[...]  # (3, D) f32: [bo1, bo2, b2]
    T, D = x.shape
    dh = D // H

    # TODO(synk): dropout layers are identity (eval mode); stochastic dropout
    # is not implemented in-kernel.

    def layernorm(v, w, b):
        mu = jnp.mean(v, axis=-1, keepdims=True)
        var = jnp.mean((v - mu) ** 2, axis=-1, keepdims=True)
        return (v - mu) * lax.rsqrt(var + LN_EPS) * w + b

    def split_heads(m2d):
        # (N, H*dh) -> (H, N, dh): static lane slices + leading-axis stack.
        return jnp.stack([m2d[:, h * dh:(h + 1) * dh] for h in range(H)], axis=0)

    def merge_heads(m3d):
        # (H, N, dh) -> (N, H*dh): lane-axis concat of per-head slices.
        return jnp.concatenate([m3d[h] for h in range(H)], axis=-1)

    def attention(q2d, k2d, v2d, wo_ref, bo, mask):
        # q2d: (Tq, D), k2d/v2d: (Tk, D), all already in compute dtype.
        # 1/sqrt(D) is folded into Wq at pack time, so no per-score scale here.
        q = split_heads(q2d)
        k = split_heads(k2d)
        v = split_heads(v2d)
        s = jnp.einsum("hqd,hkd->hqk", q, k,
                       preferred_element_type=jnp.float32)      # (H, Tq, Tk) f32
        if mask is not None:
            s = jnp.where(mask[None], s, NEG_INF)
        s = s - jnp.max(s, axis=-1, keepdims=True)
        p = jnp.exp(s)
        p = p * pl.reciprocal(jnp.sum(p, axis=-1, keepdims=True),
                              approx=not exact)
        o = merge_heads(jnp.einsum("hqk,hkd->hqd", p.astype(cd), v,
                                   preferred_element_type=jnp.float32))  # (Tq, D)
        # Single lane-dense output projection (K = D), bias added in f32.
        return jnp.dot(o.astype(cd), wo_ref[...],
                       preferred_element_type=jnp.float32) + bo

    # ----- masked self-attention sublayer -----
    xn = layernorm(x, ln[0], ln[1])
    qkv = jnp.dot(xn.astype(cd), wqkv1_ref[...],
                  preferred_element_type=jnp.float32).astype(cd)   # (T, 3D)
    row = lax.broadcasted_iota(jnp.int32, (T, T), 0)
    col = lax.broadcasted_iota(jnp.int32, (T, T), 1)
    causal = col <= row                                            # shared by all heads
    z = xn + attention(qkv[:, :D], qkv[:, D:2 * D], qkv[:, 2 * D:],
                       wo1_ref, bias_d[0], causal)

    # ----- cross-attention sublayer (mem_mask=None path) -----
    zn = layernorm(z, ln[2], ln[3])
    q2 = jnp.dot(zn.astype(cd), wq2_ref[...],
                 preferred_element_type=jnp.float32).astype(cd)    # (T, D)
    kv2 = jnp.dot(mem.astype(cd), wkv2_ref[...],
                  preferred_element_type=jnp.float32).astype(cd)   # (S, 2D)
    c = zn + attention(q2, kv2[:, :D], kv2[:, D:], wo2_ref, bias_d[1], None)

    # ----- feed-forward sublayer -----
    # TODO(synk): chunk over d_ff for production sizes to bound live VMEM.
    cn = layernorm(c, ln[4], ln[5])
    h = jnp.maximum(
        jnp.dot(cn.astype(cd), w1_ref[...], preferred_element_type=jnp.float32)
        + b1_ref[0], 0.0)
    r = jnp.dot(h.astype(cd), w2_ref[...],
                preferred_element_type=jnp.float32) + bias_d[2]
    out_ref[0] = (cn + r).astype(out_ref.dtype)


# -------------------------------- wrapper ---------------------------------

_WEIGHT_ORDER = ["ln", "bias_d", "b1",
                 "wqkv1", "wo1", "wq2", "wkv2", "wo2", "w1", "w2"]


def _pack_params(p, d_model, compute_dtype):
    """Pack canonical per-layer params into lane-dense fused slabs."""
    D = d_model
    inv_scale = jnp.float32(1.0 / math.sqrt(D))  # dk = qk_dim = d_model (torch)
    cast = lambda a: a.astype(compute_dtype)
    return {
        # f32 slabs (LN / bias math stays f32)
        "ln": jnp.concatenate([p["ln1_w"], p["ln1_b"], p["ln2_w"], p["ln2_b"],
                               p["ln3_w"], p["ln3_b"]], axis=0),          # (6, D)
        "bias_d": jnp.concatenate([p["bo1"], p["bo2"], p["b2"]], axis=0),  # (3, D)
        "b1": p["b1"],                                                     # (1, d_ff)
        # matmul operand slabs (compute dtype, typically bf16)
        "wqkv1": cast(jnp.concatenate([p["wq1"] * inv_scale, p["wk1"], p["wv1"]],
                                      axis=1)),                            # (D, 3D)
        "wo1": cast(p["wo1"]),                                             # (D, D)
        "wq2": cast(p["wq2"] * inv_scale),                                 # (D, D)
        "wkv2": cast(jnp.concatenate([p["wk2"], p["wv2"]], axis=1)),       # (D, 2D)
        "wo2": cast(p["wo2"]),                                             # (D, D)
        "w1": cast(p["w1"]),                                               # (D, d_ff)
        "w2": cast(p["w2"]),                                               # (d_ff, D)
    }


def decoder_block(x, mem, params, n_heads, compute_dtype=jnp.bfloat16):
    B, T, D = x.shape
    S = mem.shape[1]
    d_ff = params["w1"].shape[1]
    packed = _pack_params(params, D, compute_dtype)

    def const_spec(arr):   # grid-invariant 2-D weight slab
        return pl.BlockSpec(arr.shape, lambda b: (0, 0))

    in_specs = [
        pl.BlockSpec((1, T, D), lambda b: (b, 0, 0)),   # x: one batch row / step
        pl.BlockSpec((1, S, D), lambda b: (b, 0, 0)),   # mem
    ] + [const_spec(packed[k]) for k in _WEIGHT_ORDER]

    args = [x, mem] + [packed[k] for k in _WEIGHT_ORDER]

    # Advisory cost estimate so XLA schedules around the kernel sensibly.
    flops = B * (
        2 * T * D * 3 * D + 2 * 2 * T * T * D + 2 * T * D * D      # self-attn
        + 2 * T * D * D + 2 * S * D * 2 * D + 2 * 2 * T * S * D + 2 * T * D * D  # cross
        + 2 * 2 * T * D * d_ff)                                    # FFN
    transcendentals = B * (n_heads * T * T + n_heads * T * S + 3 * T)
    bytes_accessed = int(sum(int(a.size) * a.dtype.itemsize for a in args)
                         + B * T * D * 4)

    kernel = functools.partial(decoder_block_kernel,
                               n_heads=n_heads, compute_dtype=compute_dtype)
    return pl.pallas_call(
        kernel,
        out_shape=jax.ShapeDtypeStruct((B, T, D), jnp.float32),
        grid=(B,),
        in_specs=in_specs,
        out_specs=pl.BlockSpec((1, T, D), lambda b: (b, 0, 0)),
        compiler_params=pltpu.CompilerParams(
            dimension_semantics=("parallel",),          # batch axis feeds both cores
            vmem_limit_bytes=48 * 1024 * 1024),         # explicit, safe on v5e/v6e/v7x
        cost_estimate=pl.CostEstimate(flops=int(flops),
                                      transcendentals=int(transcendentals),
                                      bytes_accessed=bytes_accessed),
    )(*args)


# ------------------------ params + pure-JAX reference ----------------------

def make_params(key, d_model, d_ff):
    ks = jax.random.split(key, 24)
    n = lambda k, shape, std: (std * jax.random.normal(k, shape)).astype(jnp.float32)
    p = {}
    p["ln1_w"] = 1.0 + n(ks[0], (1, d_model), 0.1)
    p["ln1_b"] = n(ks[1], (1, d_model), 0.05)
    p["wq1"] = n(ks[2], (d_model, d_model), 0.08)
    p["wk1"] = n(ks[3], (d_model, d_model), 0.08)
    p["wv1"] = n(ks[4], (d_model, d_model), 0.08)
    p["wo1"] = n(ks[5], (d_model, d_model), 0.08)
    p["bo1"] = n(ks[6], (1, d_model), 0.02)
    p["ln2_w"] = 1.0 + n(ks[7], (1, d_model), 0.1)
    p["ln2_b"] = n(ks[8], (1, d_model), 0.05)
    p["wq2"] = n(ks[9], (d_model, d_model), 0.08)
    p["wk2"] = n(ks[10], (d_model, d_model), 0.08)
    p["wv2"] = n(ks[11], (d_model, d_model), 0.08)
    p["wo2"] = n(ks[12], (d_model, d_model), 0.08)
    p["bo2"] = n(ks[13], (1, d_model), 0.02)
    p["ln3_w"] = 1.0 + n(ks[14], (1, d_model), 0.1)
    p["ln3_b"] = n(ks[15], (1, d_model), 0.05)
    p["w1"] = n(ks[16], (d_model, d_ff), 0.08)
    p["b1"] = n(ks[17], (1, d_ff), 0.02)
    p["w2"] = n(ks[18], (d_ff, d_model), 0.08)
    p["b2"] = n(ks[19], (1, d_model), 0.02)
    return p


def reference_decoder_block(x, mem, p, n_heads):
    def ln(v, w, b):
        mu = v.mean(-1, keepdims=True)
        var = ((v - mu) ** 2).mean(-1, keepdims=True)
        return (v - mu) / jnp.sqrt(var + LN_EPS) * w[0] + b[0]

    def mha(q_in, kv_in, wq, wk, wv, wo, bo, causal):
        B, Tq, D = q_in.shape
        Tk = kv_in.shape[1]
        dh = D // n_heads
        Q = (q_in @ wq).reshape(B, Tq, n_heads, dh).transpose(0, 2, 1, 3)
        K = (kv_in @ wk).reshape(B, Tk, n_heads, dh).transpose(0, 2, 1, 3)
        V = (kv_in @ wv).reshape(B, Tk, n_heads, dh).transpose(0, 2, 1, 3)
        s = jnp.einsum("bhqd,bhkd->bhqk", Q, K) / math.sqrt(D)
        if causal:
            m = jnp.tril(jnp.ones((Tq, Tk), bool))
            s = jnp.where(m[None, None], s, NEG_INF)
        a = jax.nn.softmax(s, axis=-1)
        o = jnp.einsum("bhqk,bhkd->bhqd", a, V).transpose(0, 2, 1, 3).reshape(B, Tq, D)
        return o @ wo + bo[0]

    xn = ln(x, p["ln1_w"], p["ln1_b"])
    z = xn + mha(xn, xn, p["wq1"], p["wk1"], p["wv1"], p["wo1"], p["bo1"], True)
    zn = ln(z, p["ln2_w"], p["ln2_b"])
    c = zn + mha(zn, mem, p["wq2"], p["wk2"], p["wv2"], p["wo2"], p["bo2"], False)
    cn = ln(c, p["ln3_w"], p["ln3_b"])
    h = jax.nn.relu(cn @ p["w1"] + p["b1"][0])
    return cn + (h @ p["w2"] + p["b2"][0])


# ---------------------------------- main -----------------------------------

if __name__ == "__main__":
    B, T, S = 2, 8, 12
    d_model, n_heads, dim_mlp = 32, 4, 64

    root = jax.random.PRNGKey(0)
    kx, km, kp = jax.random.split(root, 3)
    x = jax.random.normal(kx, (B, T, d_model), dtype=jnp.float32)
    mem = jax.random.normal(km, (B, S, d_model), dtype=jnp.float32)
    params = make_params(kp, d_model, dim_mlp)

    ref = reference_decoder_block(x, mem, params, n_heads)

    # Strict f32 parity path (matches the PyTorch module's numerics).
    out_f32 = jax.block_until_ready(
        decoder_block(x, mem, params, n_heads, compute_dtype=jnp.float32))
    np.testing.assert_allclose(np.asarray(out_f32), np.asarray(ref),
                               rtol=2e-4, atol=2e-4)

    # Default mixed-precision path: bf16 MXU operands, f32 accumulation /
    # LN / softmax; loose sanity check.
    out_bf16 = jax.block_until_ready(decoder_block(x, mem, params, n_heads))
    np.testing.assert_allclose(np.asarray(out_bf16), np.asarray(ref),
                               rtol=0.2, atol=0.2)

    print("KERNEL_OK")
</pallas_src>

<mosaic_0001>
module attributes {stable_mosaic.version = 11 : i64} {
  func.func @decoder_block_kernel(%arg0: i32, %arg1: memref<1x8x32xf32, #tpu.memory_space<vmem>>, %arg2: memref<1x12x32xf32, #tpu.memory_space<vmem>>, %arg3: memref<6x32xf32, #tpu.memory_space<vmem>>, %arg4: memref<3x32xf32, #tpu.memory_space<vmem>>, %arg5: memref<1x64xf32, #tpu.memory_space<vmem>>, %arg6: memref<32x96xf32, #tpu.memory_space<vmem>>, %arg7: memref<32x32xf32, #tpu.memory_space<vmem>>, %arg8: memref<32x32xf32, #tpu.memory_space<vmem>>, %arg9: memref<32x64xf32, #tpu.memory_space<vmem>>, %arg10: memref<32x32xf32, #tpu.memory_space<vmem>>, %arg11: memref<32x64xf32, #tpu.memory_space<vmem>>, %arg12: memref<64x32xf32, #tpu.memory_space<vmem>>, %arg13: memref<1x8x32xf32, #tpu.memory_space<vmem>>) attributes {dimension_semantics = [#tpu.dimension_semantics<parallel>], iteration_bounds = array<i64: 2>, scalar_prefetch = 0 : i64, scratch_operands = 0 : i64, tpu.core_type = #tpu.core_type<tc>, window_params = [{transform_indices = @transform_0, window_bounds = array<i64: 1, 8, 32>}, {transform_indices = @transform_1, window_bounds = array<i64: 1, 12, 32>}, {pipeline_mode = #tpu.pipeline_mode<synchronous>, transform_indices = @transform_2, window_bounds = array<i64: 6, 32>}, {pipeline_mode = #tpu.pipeline_mode<synchronous>, transform_indices = @transform_3, window_bounds = array<i64: 3, 32>}, {pipeline_mode = #tpu.pipeline_mode<synchronous>, transform_indices = @transform_4, window_bounds = array<i64: 1, 64>}, {pipeline_mode = #tpu.pipeline_mode<synchronous>, transform_indices = @transform_5, window_bounds = array<i64: 32, 96>}, {pipeline_mode = #tpu.pipeline_mode<synchronous>, transform_indices = @transform_6, window_bounds = array<i64: 32, 32>}, {pipeline_mode = #tpu.pipeline_mode<synchronous>, transform_indices = @transform_7, window_bounds = array<i64: 32, 32>}, {pipeline_mode = #tpu.pipeline_mode<synchronous>, transform_indices = @transform_8, window_bounds = array<i64: 32, 64>}, {pipeline_mode = #tpu.pipeline_mode<synchronous>, transform_indices = @transform_9, window_bounds = array<i64: 32, 32>}, {pipeline_mode = #tpu.pipeline_mode<synchronous>, transform_indices = @transform_10, window_bounds = array<i64: 32, 64>}, {pipeline_mode = #tpu.pipeline_mode<synchronous>, transform_indices = @transform_11, window_bounds = array<i64: 64, 32>}, {transform_indices = @transform_12, window_bounds = array<i64: 1, 8, 32>}]} {
    %c0 = arith.constant 0 : index
    %c0_0 = arith.constant 0 : index
    %c0_1 = arith.constant 0 : index
    %0 = vector.load %arg1[%c0, %c0_0, %c0_1] : memref<1x8x32xf32, #tpu.memory_space<vmem>>, vector<1x8x32xf32>
    %1 = vector.shape_cast %0 : vector<1x8x32xf32> to vector<8x32xf32>
    %c0_2 = arith.constant 0 : index
    %c0_3 = arith.constant 0 : index
    %c0_4 = arith.constant 0 : index
    %2 = vector.load %arg2[%c0_2, %c0_3, %c0_4] : memref<1x12x32xf32, #tpu.memory_space<vmem>>, vector<1x12x32xf32>
    %3 = vector.shape_cast %2 : vector<1x12x32xf32> to vector<12x32xf32>
    %c0_5 = arith.constant 0 : index
    %c0_6 = arith.constant 0 : index
    %4 = vector.load %arg3[%c0_5, %c0_6] : memref<6x32xf32, #tpu.memory_space<vmem>>, vector<6x32xf32>
    %c0_7 = arith.constant 0 : index
    %c0_8 = arith.constant 0 : index
    %5 = vector.load %arg4[%c0_7, %c0_8] : memref<3x32xf32, #tpu.memory_space<vmem>>, vector<3x32xf32>
    %6 = vector.extract_strided_slice %4 {offsets = [0, 0], sizes = [1, 32], strides = [1, 1]} : vector<6x32xf32> to vector<1x32xf32>
    %7 = vector.shape_cast %6 : vector<1x32xf32> to vector<32xf32>
    %8 = vector.extract_strided_slice %4 {offsets = [1, 0], sizes = [1, 32], strides = [1, 1]} : vector<6x32xf32> to vector<1x32xf32>
    %9 = vector.shape_cast %8 : vector<1x32xf32> to vector<32xf32>
    %cst = arith.constant dense<0.000000e+00> : vector<8xf32>
    %10 = vector.multi_reduction <add>, %1, %cst [1] : vector<8x32xf32> to vector<8xf32>
    %11 = vector.shape_cast %10 : vector<8xf32> to vector<8x1xf32>
    %cst_9 = arith.constant 3.200000e+01 : f32
    %12 = vector.broadcast %cst_9 : f32 to vector<8x1xf32>
    %13 = arith.divf %11, %12 : vector<8x1xf32>
    %14 = vector.broadcast %13 : vector<8x1xf32> to vector<8x32xf32>
    %15 = arith.subf %1, %14 : vector<8x32xf32>
    %16 = arith.mulf %15, %15 : vector<8x32xf32>
    %cst_10 = arith.constant dense<0.000000e+00> : vector<8xf32>
    %17 = vector.multi_reduction <add>, %16, %cst_10 [1] : vector<8x32xf32> to vector<8xf32>
    %18 = vector.shape_cast %17 : vector<8xf32> to vector<8x1xf32>
    %cst_11 = arith.constant 3.200000e+01 : f32
    %19 = vector.broadcast %cst_11 : f32 to vector<8x1xf32>
    %20 = arith.divf %18, %19 : vector<8x1xf32>
    %21 = vector.broadcast %13 : vector<8x1xf32> to vector<8x32xf32>
    %22 = arith.subf %1, %21 : vector<8x32xf32>
    %cst_12 = arith.constant 9.99999974E-6 : f32
    %23 = vector.broadcast %cst_12 : f32 to vector<8x1xf32>
    %24 = arith.addf %20, %23 : vector<8x1xf32>
    %25 = math.rsqrt %24 : vector<8x1xf32>
    %26 = vector.broadcast %25 : vector<8x1xf32> to vector<8x32xf32>
    %27 = arith.mulf %22, %26 : vector<8x32xf32>
    %28 = vector.shape_cast %7 : vector<32xf32> to vector<1x32xf32>
    %29 = vector.broadcast %28 : vector<1x32xf32> to vector<8x32xf32>
    %30 = arith.mulf %27, %29 : vector<8x32xf32>
    %31 = vector.shape_cast %9 : vector<32xf32> to vector<1x32xf32>
    %32 = vector.broadcast %31 : vector<1x32xf32> to vector<8x32xf32>
    %33 = arith.addf %30, %32 : vector<8x32xf32>
    %c0_13 = arith.constant 0 : index
    %c0_14 = arith.constant 0 : index
    %34 = vector.load %arg6[%c0_13, %c0_14] : memref<32x96xf32, #tpu.memory_space<vmem>>, vector<32x96xf32>
    %cst_15 = arith.constant dense<0.000000e+00> : vector<8x96xf32>
    %35 = tpu.matmul %33, %34, %cst_15 {dimension_numbers = #tpu.dot_dimension_numbers<[1], [0], [0], [1], [0, 0, 1, 1], [], []>} : vector<8x32xf32>, vector<32x96xf32>, vector<8x96xf32> -> vector<8x96xf32>
    %36 = tpu.iota {dimensions = array<i32: 0>} : vector<8x8xi32>
    %37 = tpu.iota {dimensions = array<i32: 1>} : vector<8x8xi32>
    %38 = arith.cmpi sle, %37, %36 : vector<8x8xi32>
    %39 = vector.extract_strided_slice %35 {offsets = [0, 0], sizes = [8, 32], strides = [1, 1]} : vector<8x96xf32> to vector<8x32xf32>
    %40 = vector.extract_strided_slice %35 {offsets = [0, 32], sizes = [8, 32], strides = [1, 1]} : vector<8x96xf32> to vector<8x32xf32>
    %41 = vector.extract_strided_slice %35 {offsets = [0, 64], sizes = [8, 32], strides = [1, 1]} : vector<8x96xf32> to vector<8x32xf32>
    %42 = vector.extract_strided_slice %5 {offsets = [0, 0], sizes = [1, 32], strides = [1, 1]} : vector<3x32xf32> to vector<1x32xf32>
    %43 = vector.shape_cast %42 : vector<1x32xf32> to vector<32xf32>
    %44 = vector.extract_strided_slice %39 {offsets = [0, 0], sizes = [8, 8], strides = [1, 1]} : vector<8x32xf32> to vector<8x8xf32>
    %45 = vector.extract_strided_slice %39 {offsets = [0, 8], sizes = [8, 8], strides = [1, 1]} : vector<8x32xf32> to vector<8x8xf32>
    %46 = vector.extract_strided_slice %39 {offsets = [0, 16], sizes = [8, 8], strides = [1, 1]} : vector<8x32xf32> to vector<8x8xf32>
    %47 = vector.extract_strided_slice %39 {offsets = [0, 24], sizes = [8, 8], strides = [1, 1]} : vector<8x32xf32> to vector<8x8xf32>
    %48 = vector.shape_cast %44 : vector<8x8xf32> to vector<1x8x8xf32>
    %49 = vector.shape_cast %45 : vector<8x8xf32> to vector<1x8x8xf32>
    %50 = vector.shape_cast %46 : vector<8x8xf32> to vector<1x8x8xf32>
    %51 = vector.shape_cast %47 : vector<8x8xf32> to vector<1x8x8xf32>
    %52 = tpu.concatenate %48, %49, %50, %51 in 0 : vector<1x8x8xf32>, vector<1x8x8xf32>, vector<1x8x8xf32>, vector<1x8x8xf32> -> vector<4x8x8xf32>
    %53 = vector.extract_strided_slice %40 {offsets = [0, 0], sizes = [8, 8], strides = [1, 1]} : vector<8x32xf32> to vector<8x8xf32>
    %54 = vector.extract_strided_slice %40 {offsets = [0, 8], sizes = [8, 8], strides = [1, 1]} : vector<8x32xf32> to vector<8x8xf32>
    %55 = vector.extract_strided_slice %40 {offsets = [0, 16], sizes = [8, 8], strides = [1, 1]} : vector<8x32xf32> to vector<8x8xf32>
    %56 = vector.extract_strided_slice %40 {offsets = [0, 24], sizes = [8, 8], strides = [1, 1]} : vector<8x32xf32> to vector<8x8xf32>
    %57 = vector.shape_cast %53 : vector<8x8xf32> to vector<1x8x8xf32>
    %58 = vector.shape_cast %54 : vector<8x8xf32> to vector<1x8x8xf32>
    %59 = vector.shape_cast %55 : vector<8x8xf32> to vector<1x8x8xf32>
    %60 = vector.shape_cast %56 : vector<8x8xf32> to vector<1x8x8xf32>
    %61 = tpu.concatenate %57, %58, %59, %60 in 0 : vector<1x8x8xf32>, vector<1x8x8xf32>, vector<1x8x8xf32>, vector<1x8x8xf32> -> vector<4x8x8xf32>
    %62 = vector.extract_strided_slice %41 {offsets = [0, 0], sizes = [8, 8], strides = [1, 1]} : vector<8x32xf32> to vector<8x8xf32>
    %63 = vector.extract_strided_slice %41 {offsets = [0, 8], sizes = [8, 8], strides = [1, 1]} : vector<8x32xf32> to vector<8x8xf32>
    %64 = vector.extract_strided_slice %41 {offsets = [0, 16], sizes = [8, 8], strides = [1, 1]} : vector<8x32xf32> to vector<8x8xf32>
    %65 = vector.extract_strided_slice %41 {offsets = [0, 24], sizes = [8, 8], strides = [1, 1]} : vector<8x32xf32> to vector<8x8xf32>
    %66 = vector.shape_cast %62 : vector<8x8xf32> to vector<1x8x8xf32>
    %67 = vector.shape_cast %63 : vector<8x8xf32> to vector<1x8x8xf32>
    %68 = vector.shape_cast %64 : vector<8x8xf32> to vector<1x8x8xf32>
    %69 = vector.shape_cast %65 : vector<8x8xf32> to vector<1x8x8xf32>
    %70 = tpu.concatenate %66, %67, %68, %69 in 0 : vector<1x8x8xf32>, vector<1x8x8xf32>, vector<1x8x8xf32>, vector<1x8x8xf32> -> vector<4x8x8xf32>
    "tpu.trace_start"() <{level = 10 : i32, message = "hqd,hkd->hqk"}> : () -> ()
    %cst_16 = arith.constant dense<0.000000e+00> : vector<4x8x8xf32>
    %71 = tpu.matmul %52, %61, %cst_16 {dimension_numbers = #tpu.dot_dimension_numbers<[2], [2], [1], [1], [0, 0, 0, 1, 1, 1], [0], [0]>} : vector<4x8x8xf32>, vector<4x8x8xf32>, vector<4x8x8xf32> -> vector<4x8x8xf32>
    "tpu.trace_stop"() : () -> ()
    %72 = vector.shape_cast %38 : vector<8x8xi1> to vector<1x8x8xi1>
    %cst_17 = arith.constant -1.000000e+09 : f32
    %73 = vector.shape_cast %72 : vector<1x8x8xi1> to vector<1x8x8xi1>
    %74 = vector.broadcast %73 : vector<1x8x8xi1> to vector<4x8x8xi1>
    %75 = vector.broadcast %cst_17 : f32 to vector<4x8x8xf32>
    %76 = arith.select %74, %71, %75 : vector<4x8x8xi1>, vector<4x8x8xf32>
    %cst_18 = arith.constant dense<0xFF800000> : vector<4x8xf32>
    %77 = vector.multi_reduction <maximumf>, %76, %cst_18 [2] : vector<4x8x8xf32> to vector<4x8xf32>
    %78 = vector.shape_cast %77 : vector<4x8xf32> to vector<4x8x1xf32>
    %79 = vector.broadcast %78 : vector<4x8x1xf32> to vector<4x8x8xf32>
    %80 = arith.subf %76, %79 : vector<4x8x8xf32>
    %81 = math.exp %80 : vector<4x8x8xf32>
    %cst_19 = arith.constant dense<0.000000e+00> : vector<4x8xf32>
    %82 = vector.multi_reduction <add>, %81, %cst_19 [2] : vector<4x8x8xf32> to vector<4x8xf32>
    %83 = vector.shape_cast %82 : vector<4x8xf32> to vector<4x8x1xf32>
    %84 = tpu.reciprocal %83 : vector<4x8x1xf32> -> vector<4x8x1xf32>
    %85 = vector.broadcast %84 : vector<4x8x1xf32> to vector<4x8x8xf32>
    %86 = arith.mulf %81, %85 : vector<4x8x8xf32>
    "tpu.trace_start"() <{level = 10 : i32, message = "hqk,hkd->hqd"}> : () -> ()
    %cst_20 = arith.constant dense<0.000000e+00> : vector<4x8x8xf32>
    %87 = tpu.matmul %86, %70, %cst_20 {dimension_numbers = #tpu.dot_dimension_numbers<[2], [1], [1], [2], [0, 0, 0, 1, 1, 2], [0], [0]>} : vector<4x8x8xf32>, vector<4x8x8xf32>, vector<4x8x8xf32> -> vector<4x8x8xf32>
    "tpu.trace_stop"() : () -> ()
    %88 = vector.extract_strided_slice %87 {offsets = [0, 0, 0], sizes = [1, 8, 8], strides = [1, 1, 1]} : vector<4x8x8xf32> to vector<1x8x8xf32>
    %89 = vector.shape_cast %88 : vector<1x8x8xf32> to vector<8x8xf32>
    %90 = vector.extract_strided_slice %87 {offsets = [1, 0, 0], sizes = [1, 8, 8], strides = [1, 1, 1]} : vector<4x8x8xf32> to vector<1x8x8xf32>
    %91 = vector.shape_cast %90 : vector<1x8x8xf32> to vector<8x8xf32>
    %92 = vector.extract_strided_slice %87 {offsets = [2, 0, 0], sizes = [1, 8, 8], strides = [1, 1, 1]} : vector<4x8x8xf32> to vector<1x8x8xf32>
    %93 = vector.shape_cast %92 : vector<1x8x8xf32> to vector<8x8xf32>
    %94 = vector.extract_strided_slice %87 {offsets = [3, 0, 0], sizes = [1, 8, 8], strides = [1, 1, 1]} : vector<4x8x8xf32> to vector<1x8x8xf32>
    %95 = vector.shape_cast %94 : vector<1x8x8xf32> to vector<8x8xf32>
    %96 = tpu.concatenate %89, %91, %93, %95 in 1 : vector<8x8xf32>, vector<8x8xf32>, vector<8x8xf32>, vector<8x8xf32> -> vector<8x32xf32>
    %c0_21 = arith.constant 0 : index
    %c0_22 = arith.constant 0 : index
    %97 = vector.load %arg7[%c0_21, %c0_22] : memref<32x32xf32, #tpu.memory_space<vmem>>, vector<32x32xf32>
    %cst_23 = arith.constant dense<0.000000e+00> : vector<8x32xf32>
    %98 = tpu.matmul %96, %97, %cst_23 {dimension_numbers = #tpu.dot_dimension_numbers<[1], [0], [0], [1], [0, 0, 1, 1], [], []>} : vector<8x32xf32>, vector<32x32xf32>, vector<8x32xf32> -> vector<8x32xf32>
    %99 = vector.shape_cast %43 : vector<32xf32> to vector<1x32xf32>
    %100 = vector.broadcast %99 : vector<1x32xf32> to vector<8x32xf32>
    %101 = arith.addf %98, %100 : vector<8x32xf32>
    %102 = arith.addf %33, %101 : vector<8x32xf32>
    %103 = vector.extract_strided_slice %4 {offsets = [2, 0], sizes = [1, 32], strides = [1, 1]} : vector<6x32xf32> to vector<1x32xf32>
    %104 = vector.shape_cast %103 : vector<1x32xf32> to vector<32xf32>
    %105 = vector.extract_strided_slice %4 {offsets = [3, 0], sizes = [1, 32], strides = [1, 1]} : vector<6x32xf32> to vector<1x32xf32>
    %106 = vector.shape_cast %105 : vector<1x32xf32> to vector<32xf32>
    %cst_24 = arith.constant dense<0.000000e+00> : vector<8xf32>
    %107 = vector.multi_reduction <add>, %102, %cst_24 [1] : vector<8x32xf32> to vector<8xf32>
    %108 = vector.shape_cast %107 : vector<8xf32> to vector<8x1xf32>
    %cst_25 = arith.constant 3.200000e+01 : f32
    %109 = vector.broadcast %cst_25 : f32 to vector<8x1xf32>
    %110 = arith.divf %108, %109 : vector<8x1xf32>
    %111 = vector.broadcast %110 : vector<8x1xf32> to vector<8x32xf32>
    %112 = arith.subf %102, %111 : vector<8x32xf32>
    %113 = arith.mulf %112, %112 : vector<8x32xf32>
    %cst_26 = arith.constant dense<0.000000e+00> : vector<8xf32>
    %114 = vector.multi_reduction <add>, %113, %cst_26 [1] : vector<8x32xf32> to vector<8xf32>
    %115 = vector.shape_cast %114 : vector<8xf32> to vector<8x1xf32>
    %cst_27 = arith.constant 3.200000e+01 : f32
    %116 = vector.broadcast %cst_27 : f32 to vector<8x1xf32>
    %117 = arith.divf %115, %116 : vector<8x1xf32>
    %118 = vector.broadcast %110 : vector<8x1xf32> to vector<8x32xf32>
    %119 = arith.subf %102, %118 : vector<8x32xf32>
    %cst_28 = arith.constant 9.99999974E-6 : f32
    %120 = vector.broadcast %cst_28 : f32 to vector<8x1xf32>
    %121 = arith.addf %117, %120 : vector<8x1xf32>
    %122 = math.rsqrt %121 : vector<8x1xf32>
    %123 = vector.broadcast %122 : vector<8x1xf32> to vector<8x32xf32>
    %124 = arith.mulf %119, %123 : vector<8x32xf32>
    %125 = vector.shape_cast %104 : vector<32xf32> to vector<1x32xf32>
    %126 = vector.broadcast %125 : vector<1x32xf32> to vector<8x32xf32>
    %127 = arith.mulf %124, %126 : vector<8x32xf32>
    %128 = vector.shape_cast %106 : vector<32xf32> to vector<1x32xf32>
    %129 = vector.broadcast %128 : vector<1x32xf32> to vector<8x32xf32>
    %130 = arith.addf %127, %129 : vector<8x32xf32>
    %c0_29 = arith.constant 0 : index
    %c0_30 = arith.constant 0 : index
    %131 = vector.load %arg8[%c0_29, %c0_30] : memref<32x32xf32, #tpu.memory_space<vmem>>, vector<32x32xf32>
    %cst_31 = arith.constant dense<0.000000e+00> : vector<8x32xf32>
    %132 = tpu.matmul %130, %131, %cst_31 {dimension_numbers = #tpu.dot_dimension_numbers<[1], [0], [0], [1], [0, 0, 1, 1], [], []>} : vector<8x32xf32>, vector<32x32xf32>, vector<8x32xf32> -> vector<8x32xf32>
    %c0_32 = arith.constant 0 : index
    %c0_33 = arith.constant 0 : index
    %133 = vector.load %arg9[%c0_32, %c0_33] : memref<32x64xf32, #tpu.memory_space<vmem>>, vector<32x64xf32>
    %cst_34 = arith.constant dense<0.000000e+00> : vector<12x64xf32>
    %134 = tpu.matmul %3, %133, %cst_34 {dimension_numbers = #tpu.dot_dimension_numbers<[1], [0], [0], [1], [0, 0, 1, 1], [], []>} : vector<12x32xf32>, vector<32x64xf32>, vector<12x64xf32> -> vector<12x64xf32>
    %135 = vector.extract_strided_slice %134 {offsets = [0, 0], sizes = [12, 32], strides = [1, 1]} : vector<12x64xf32> to vector<12x32xf32>
    %136 = vector.extract_strided_slice %134 {offsets = [0, 32], sizes = [12, 32], strides = [1, 1]} : vector<12x64xf32> to vector<12x32xf32>
    %137 = vector.extract_strided_slice %5 {offsets = [1, 0], sizes = [1, 32], strides = [1, 1]} : vector<3x32xf32> to vector<1x32xf32>
    %138 = vector.shape_cast %137 : vector<1x32xf32> to vector<32xf32>
    %139 = vector.extract_strided_slice %132 {offsets = [0, 0], sizes = [8, 8], strides = [1, 1]} : vector<8x32xf32> to vector<8x8xf32>
    %140 = vector.extract_strided_slice %132 {offsets = [0, 8], sizes = [8, 8], strides = [1, 1]} : vector<8x32xf32> to vector<8x8xf32>
    %141 = vector.extract_strided_slice %132 {offsets = [0, 16], sizes = [8, 8], strides = [1, 1]} : vector<8x32xf32> to vector<8x8xf32>
    %142 = vector.extract_strided_slice %132 {offsets = [0, 24], sizes = [8, 8], strides = [1, 1]} : vector<8x32xf32> to vector<8x8xf32>
    %143 = vector.shape_cast %139 : vector<8x8xf32> to vector<1x8x8xf32>
    %144 = vector.shape_cast %140 : vector<8x8xf32> to vector<1x8x8xf32>
    %145 = vector.shape_cast %141 : vector<8x8xf32> to vector<1x8x8xf32>
    %146 = vector.shape_cast %142 : vector<8x8xf32> to vector<1x8x8xf32>
    %147 = tpu.concatenate %143, %144, %145, %146 in 0 : vector<1x8x8xf32>, vector<1x8x8xf32>, vector<1x8x8xf32>, vector<1x8x8xf32> -> vector<4x8x8xf32>
    %148 = vector.extract_strided_slice %135 {offsets = [0, 0], sizes = [12, 8], strides = [1, 1]} : vector<12x32xf32> to vector<12x8xf32>
    %149 = vector.extract_strided_slice %135 {offsets = [0, 8], sizes = [12, 8], strides = [1, 1]} : vector<12x32xf32> to vector<12x8xf32>
    %150 = vector.extract_strided_slice %135 {offsets = [0, 16], sizes = [12, 8], strides = [1, 1]} : vector<12x32xf32> to vector<12x8xf32>
    %151 = vector.extract_strided_slice %135 {offsets = [0, 24], sizes = [12, 8], strides = [1, 1]} : vector<12x32xf32> to vector<12x8xf32>
    %152 = vector.shape_cast %148 : vector<12x8xf32> to vector<1x12x8xf32>
    %153 = vector.shape_cast %149 : vector<12x8xf32> to vector<1x12x8xf32>
    %154 = vector.shape_cast %150 : vector<12x8xf32> to vector<1x12x8xf32>
    %155 = vector.shape_cast %151 : vector<12x8xf32> to vector<1x12x8xf32>
    %156 = tpu.concatenate %152, %153, %154, %155 in 0 : vector<1x12x8xf32>, vector<1x12x8xf32>, vector<1x12x8xf32>, vector<1x12x8xf32> -> vector<4x12x8xf32>
    %157 = vector.extract_strided_slice %136 {offsets = [0, 0], sizes = [12, 8], strides = [1, 1]} : vector<12x32xf32> to vector<12x8xf32>
    %158 = vector.extract_strided_slice %136 {offsets = [0, 8], sizes = [12, 8], strides = [1, 1]} : vector<12x32xf32> to vector<12x8xf32>
    %159 = vector.extract_strided_slice %136 {offsets = [0, 16], sizes = [12, 8], strides = [1, 1]} : vector<12x32xf32> to vector<12x8xf32>
    %160 = vector.extract_strided_slice %136 {offsets = [0, 24], sizes = [12, 8], strides = [1, 1]} : vector<12x32xf32> to vector<12x8xf32>
    %161 = vector.shape_cast %157 : vector<12x8xf32> to vector<1x12x8xf32>
    %162 = vector.shape_cast %158 : vector<12x8xf32> to vector<1x12x8xf32>
    %163 = vector.shape_cast %159 : vector<12x8xf32> to vector<1x12x8xf32>
    %164 = vector.shape_cast %160 : vector<12x8xf32> to vector<1x12x8xf32>
    %165 = tpu.concatenate %161, %162, %163, %164 in 0 : vector<1x12x8xf32>, vector<1x12x8xf32>, vector<1x12x8xf32>, vector<1x12x8xf32> -> vector<4x12x8xf32>
    "tpu.trace_start"() <{level = 10 : i32, message = "hqd,hkd->hqk"}> : () -> ()
    %cst_35 = arith.constant dense<0.000000e+00> : vector<4x8x12xf32>
    %166 = tpu.matmul %147, %156, %cst_35 {dimension_numbers = #tpu.dot_dimension_numbers<[2], [2], [1], [1], [0, 0, 0, 1, 1, 1], [0], [0]>} : vector<4x8x8xf32>, vector<4x12x8xf32>, vector<4x8x12xf32> -> vector<4x8x12xf32>
    "tpu.trace_stop"() : () -> ()
    %cst_36 = arith.constant dense<0xFF800000> : vector<4x8xf32>
    %167 = vector.multi_reduction <maximumf>, %166, %cst_36 [2] : vector<4x8x12xf32> to vector<4x8xf32>
    %168 = vector.shape_cast %167 : vector<4x8xf32> to vector<4x8x1xf32>
    %169 = vector.broadcast %168 : vector<4x8x1xf32> to vector<4x8x12xf32>
    %170 = arith.subf %166, %169 : vector<4x8x12xf32>
    %171 = math.exp %170 : vector<4x8x12xf32>
    %cst_37 = arith.constant dense<0.000000e+00> : vector<4x8xf32>
    %172 = vector.multi_reduction <add>, %171, %cst_37 [2] : vector<4x8x12xf32> to vector<4x8xf32>
    %173 = vector.shape_cast %172 : vector<4x8xf32> to vector<4x8x1xf32>
    %174 = tpu.reciprocal %173 : vector<4x8x1xf32> -> vector<4x8x1xf32>
    %175 = vector.broadcast %174 : vector<4x8x1xf32> to vector<4x8x12xf32>
    %176 = arith.mulf %171, %175 : vector<4x8x12xf32>
    "tpu.trace_start"() <{level = 10 : i32, message = "hqk,hkd->hqd"}> : () -> ()
    %cst_38 = arith.constant dense<0.000000e+00> : vector<4x8x8xf32>
    %177 = tpu.matmul %176, %165, %cst_38 {dimension_numbers = #tpu.dot_dimension_numbers<[2], [1], [1], [2], [0, 0, 0, 1, 1, 2], [0], [0]>} : vector<4x8x12xf32>, vector<4x12x8xf32>, vector<4x8x8xf32> -> vector<4x8x8xf32>
    "tpu.trace_stop"() : () -> ()
    %178 = vector.extract_strided_slice %177 {offsets = [0, 0, 0], sizes = [1, 8, 8], strides = [1, 1, 1]} : vector<4x8x8xf32> to vector<1x8x8xf32>
    %179 = vector.shape_cast %178 : vector<1x8x8xf32> to vector<8x8xf32>
    %180 = vector.extract_strided_slice %177 {offsets = [1, 0, 0], sizes = [1, 8, 8], strides = [1, 1, 1]} : vector<4x8x8xf32> to vector<1x8x8xf32>
    %181 = vector.shape_cast %180 : vector<1x8x8xf32> to vector<8x8xf32>
    %182 = vector.extract_strided_slice %177 {offsets = [2, 0, 0], sizes = [1, 8, 8], strides = [1, 1, 1]} : vector<4x8x8xf32> to vector<1x8x8xf32>
    %183 = vector.shape_cast %182 : vector<1x8x8xf32> to vector<8x8xf32>
    %184 = vector.extract_strided_slice %177 {offsets = [3, 0, 0], sizes = [1, 8, 8], strides = [1, 1, 1]} : vector<4x8x8xf32> to vector<1x8x8xf32>
    %185 = vector.shape_cast %184 : vector<1x8x8xf32> to vector<8x8xf32>
    %186 = tpu.concatenate %179, %181, %183, %185 in 1 : vector<8x8xf32>, vector<8x8xf32>, vector<8x8xf32>, vector<8x8xf32> -> vector<8x32xf32>
    %c0_39 = arith.constant 0 : index
    %c0_40 = arith.constant 0 : index
    %187 = vector.load %arg10[%c0_39, %c0_40] : memref<32x32xf32, #tpu.memory_space<vmem>>, vector<32x32xf32>
    %cst_41 = arith.constant dense<0.000000e+00> : vector<8x32xf32>
    %188 = tpu.matmul %186, %187, %cst_41 {dimension_numbers = #tpu.dot_dimension_numbers<[1], [0], [0], [1], [0, 0, 1, 1], [], []>} : vector<8x32xf32>, vector<32x32xf32>, vector<8x32xf32> -> vector<8x32xf32>
    %189 = vector.shape_cast %138 : vector<32xf32> to vector<1x32xf32>
    %190 = vector.broadcast %189 : vector<1x32xf32> to vector<8x32xf32>
    %191 = arith.addf %188, %190 : vector<8x32xf32>
    %192 = arith.addf %130, %191 : vector<8x32xf32>
    %193 = vector.extract_strided_slice %4 {offsets = [4, 0], sizes = [1, 32], strides = [1, 1]} : vector<6x32xf32> to vector<1x32xf32>
    %194 = vector.shape_cast %193 : vector<1x32xf32> to vector<32xf32>
    %195 = vector.extract_strided_slice %4 {offsets = [5, 0], sizes = [1, 32], strides = [1, 1]} : vector<6x32xf32> to vector<1x32xf32>
    %196 = vector.shape_cast %195 : vector<1x32xf32> to vector<32xf32>
    %cst_42 = arith.constant dense<0.000000e+00> : vector<8xf32>
    %197 = vector.multi_reduction <add>, %192, %cst_42 [1] : vector<8x32xf32> to vector<8xf32>
    %198 = vector.shape_cast %197 : vector<8xf32> to vector<8x1xf32>
    %cst_43 = arith.constant 3.200000e+01 : f32
    %199 = vector.broadcast %cst_43 : f32 to vector<8x1xf32>
    %200 = arith.divf %198, %199 : vector<8x1xf32>
    %201 = vector.broadcast %200 : vector<8x1xf32> to vector<8x32xf32>
    %202 = arith.subf %192, %201 : vector<8x32xf32>
    %203 = arith.mulf %202, %202 : vector<8x32xf32>
    %cst_44 = arith.constant dense<0.000000e+00> : vector<8xf32>
    %204 = vector.multi_reduction <add>, %203, %cst_44 [1] : vector<8x32xf32> to vector<8xf32>
    %205 = vector.shape_cast %204 : vector<8xf32> to vector<8x1xf32>
    %cst_45 = arith.constant 3.200000e+01 : f32
    %206 = vector.broadcast %cst_45 : f32 to vector<8x1xf32>
    %207 = arith.divf %205, %206 : vector<8x1xf32>
    %208 = vector.broadcast %200 : vector<8x1xf32> to vector<8x32xf32>
    %209 = arith.subf %192, %208 : vector<8x32xf32>
    %cst_46 = arith.constant 9.99999974E-6 : f32
    %210 = vector.broadcast %cst_46 : f32 to vector<8x1xf32>
    %211 = arith.addf %207, %210 : vector<8x1xf32>
    %212 = math.rsqrt %211 : vector<8x1xf32>
    %213 = vector.broadcast %212 : vector<8x1xf32> to vector<8x32xf32>
    %214 = arith.mulf %209, %213 : vector<8x32xf32>
    %215 = vector.shape_cast %194 : vector<32xf32> to vector<1x32xf32>
    %216 = vector.broadcast %215 : vector<1x32xf32> to vector<8x32xf32>
    %217 = arith.mulf %214, %216 : vector<8x32xf32>
    %218 = vector.shape_cast %196 : vector<32xf32> to vector<1x32xf32>
    %219 = vector.broadcast %218 : vector<1x32xf32> to vector<8x32xf32>
    %220 = arith.addf %217, %219 : vector<8x32xf32>
    %c0_47 = arith.constant 0 : index
    %c0_48 = arith.constant 0 : index
    %221 = vector.load %arg11[%c0_47, %c0_48] : memref<32x64xf32, #tpu.memory_space<vmem>>, vector<32x64xf32>
    %cst_49 = arith.constant dense<0.000000e+00> : vector<8x64xf32>
    %222 = tpu.matmul %220, %221, %cst_49 {dimension_numbers = #tpu.dot_dimension_numbers<[1], [0], [0], [1], [0, 0, 1, 1], [], []>} : vector<8x32xf32>, vector<32x64xf32>, vector<8x64xf32> -> vector<8x64xf32>
    %c0_50 = arith.constant 0 : index
    %c0_51 = arith.constant 0 : index
    %223 = vector.load %arg5[%c0_50, %c0_51] : memref<1x64xf32, #tpu.memory_space<vmem>>, vector<1x64xf32>
    %224 = vector.shape_cast %223 : vector<1x64xf32> to vector<64xf32>
    %225 = vector.shape_cast %224 : vector<64xf32> to vector<1x64xf32>
    %226 = vector.broadcast %225 : vector<1x64xf32> to vector<8x64xf32>
    %227 = arith.addf %222, %226 : vector<8x64xf32>
    %cst_52 = arith.constant 0.000000e+00 : f32
    %228 = vector.broadcast %cst_52 : f32 to vector<8x64xf32>
    %229 = arith.maximumf %227, %228 : vector<8x64xf32>
    %c0_53 = arith.constant 0 : index
    %c0_54 = arith.constant 0 : index
    %230 = vector.load %arg12[%c0_53, %c0_54] : memref<64x32xf32, #tpu.memory_space<vmem>>, vector<64x32xf32>
    %cst_55 = arith.constant dense<0.000000e+00> : vector<8x32xf32>
    %231 = tpu.matmul %229, %230, %cst_55 {dimension_numbers = #tpu.dot_dimension_numbers<[1], [0], [0], [1], [0, 0, 1, 1], [], []>} : vector<8x64xf32>, vector<64x32xf32>, vector<8x32xf32> -> vector<8x32xf32>
    %232 = vector.extract_strided_slice %5 {offsets = [2, 0], sizes = [1, 32], strides = [1, 1]} : vector<3x32xf32> to vector<1x32xf32>
    %233 = vector.shape_cast %232 : vector<1x32xf32> to vector<32xf32>
    %234 = vector.shape_cast %233 : vector<32xf32> to vector<1x32xf32>
    %235 = vector.broadcast %234 : vector<1x32xf32> to vector<8x32xf32>
    %236 = arith.addf %231, %235 : vector<8x32xf32>
    %237 = arith.addf %220, %236 : vector<8x32xf32>
    %c0_56 = arith.constant 0 : index
    %c0_57 = arith.constant 0 : index
    %c0_58 = arith.constant 0 : index
    %238 = vector.load %arg13[%c0_56, %c0_57, %c0_58] : memref<1x8x32xf32, #tpu.memory_space<vmem>>, vector<1x8x32xf32>
    %239 = vector.shape_cast %238 : vector<1x8x32xf32> to vector<8x32xf32>
    %240 = vector.shape_cast %237 : vector<8x32xf32> to vector<1x8x32xf32>
    tpu.vector_store %arg13[%c0_56, %c0_57, %c0_58], %240 {strides = array<i32>} : memref<1x8x32xf32, #tpu.memory_space<vmem>>, vector<1x8x32xf32>,
    return
  }
  func.func @transform_0(%arg0: i32) -> (i32, i32, i32) {
    %c0_i32 = arith.constant 0 : i32
    %c0_i32_0 = arith.constant 0 : i32
    %c0_i32_1 = arith.constant 0 : i32
    return %arg0, %c0_i32, %c0_i32_0 : i32, i32, i32
  }
  func.func @transform_1(%arg0: i32) -> (i32, i32, i32) {
    %c0_i32 = arith.constant 0 : i32
    %c0_i32_0 = arith.constant 0 : i32
    %c0_i32_1 = arith.constant 0 : i32
    return %arg0, %c0_i32, %c0_i32_0 : i32, i32, i32
  }
  func.func @transform_2(%arg0: i32) -> (i32, i32) {
    %c0_i32 = arith.constant 0 : i32
    %c0_i32_0 = arith.constant 0 : i32
    %c0_i32_1 = arith.constant 0 : i32
    return %c0_i32, %c0_i32_0 : i32, i32
  }
  func.func @transform_3(%arg0: i32) -> (i32, i32) {
    %c0_i32 = arith.constant 0 : i32
    %c0_i32_0 = arith.constant 0 : i32
    %c0_i32_1 = arith.constant 0 : i32
    return %c0_i32, %c0_i32_0 : i32, i32
  }
  func.func @transform_4(%arg0: i32) -> (i32, i32) {
    %c0_i32 = arith.constant 0 : i32
    %c0_i32_0 = arith.constant 0 : i32
    %c0_i32_1 = arith.constant 0 : i32
    return %c0_i32, %c0_i32_0 : i32, i32
  }
  func.func @transform_5(%arg0: i32) -> (i32, i32) {
    %c0_i32 = arith.constant 0 : i32
    %c0_i32_0 = arith.constant 0 : i32
    %c0_i32_1 = arith.constant 0 : i32
    return %c0_i32, %c0_i32_0 : i32, i32
  }
  func.func @transform_6(%arg0: i32) -> (i32, i32) {
    %c0_i32 = arith.constant 0 : i32
    %c0_i32_0 = arith.constant 0 : i32
    %c0_i32_1 = arith.constant 0 : i32
    return %c0_i32, %c0_i32_0 : i32, i32
  }
  func.func @transform_7(%arg0: i32) -> (i32, i32) {
    %c0_i32 = arith.constant 0 : i32
    %c0_i32_0 = arith.constant 0 : i32
    %c0_i32_1 = arith.constant 0 : i32
    return %c0_i32, %c0_i32_0 : i32, i32
  }
  func.func @transform_8(%arg0: i32) -> (i32, i32) {
    %c0_i32 = arith.constant 0 : i32
    %c0_i32_0 = arith.constant 0 : i32
    %c0_i32_1 = arith.constant 0 : i32
    return %c0_i32, %c0_i32_0 : i32, i32
  }
  func.func @transform_9(%arg0: i32) -> (i32, i32) {
    %c0_i32 = arith.constant 0 : i32
    %c0_i32_0 = arith.constant 0 : i32
    %c0_i32_1 = arith.constant 0 : i32
    return %c0_i32, %c0_i32_0 : i32, i32
  }
  func.func @transform_10(%arg0: i32) -> (i32, i32) {
    %c0_i32 = arith.constant 0 : i32
    %c0_i32_0 = arith.constant 0 : i32
    %c0_i32_1 = arith.constant 0 : i32
    return %c0_i32, %c0_i32_0 : i32, i32
  }
  func.func @transform_11(%arg0: i32) -> (i32, i32) {
    %c0_i32 = arith.constant 0 : i32
    %c0_i32_0 = arith.constant 0 : i32
    %c0_i32_1 = arith.constant 0 : i32
    return %c0_i32, %c0_i32_0 : i32, i32
  }
  func.func @transform_12(%arg0: i32) -> (i32, i32, i32) {
    %c0_i32 = arith.constant 0 : i32
    %c0_i32_0 = arith.constant 0 : i32
    %c0_i32_1 = arith.constant 0 : i32
    return %arg0, %c0_i32, %c0_i32_0 : i32, i32, i32
  }
}

</mosaic_0001>

<llo_original>
// kernel: tpu_custom_call.1
$region0: #{tpu_custom_call.1}
  #allocation0 [shape = 'u32[]', space=smem, size = 0x4, offset = 0x4, fixed_abs, tag = 'smem constant byte address 0x4 - core index']
  #allocation1 [shape = 'u32[144,128]{1,0:T(1,128)}', space=vmem, size = 0x12000, scoped, tag = 'internal scratch']
  %s0 = inlined_call_operand.hbm [shape: f32[2,8,32], index: 0, kind: input, shape index: {}]
  %s1 = inlined_call_operand.vmem [shape: f32[2,12,32], index: 1, kind: input, shape index: {}]
  %s2 = inlined_call_operand.hbm [shape: f32[6,32], index: 2, kind: input, shape index: {}]
  %s3 = inlined_call_operand.hbm [shape: f32[3,32], index: 3, kind: input, shape index: {}]
  %s4 = inlined_call_operand.vmem [shape: f32[1,64], index: 4, kind: input, shape index: {}]
  %s5 = inlined_call_operand.vmem [shape: f32[32,96], index: 5, kind: input, shape index: {}]
  %s6 = inlined_call_operand.vmem [shape: f32[32,32], index: 6, kind: input, shape index: {}]
  %s7 = inlined_call_operand.vmem [shape: f32[32,32], index: 7, kind: input, shape index: {}]
  %s8 = inlined_call_operand.vmem [shape: f32[32,64], index: 8, kind: input, shape index: {}]
  %s9 = inlined_call_operand.hbm [shape: f32[32,32], index: 9, kind: input, shape index: {}]
  %s10 = inlined_call_operand.hbm [shape: f32[32,64], index: 10, kind: input, shape index: {}]
  %s11 = inlined_call_operand.vmem [shape: f32[64,32], index: 11, kind: input, shape index: {}]
  %s12 = inlined_call_operand.hbm [shape: f32[2,8,32], index: 12, kind: output, shape index: {}]
  %s13 = sld [smem:[#allocation0]]
  $region101: #{tpu_custom_call.1} parent=0
    _
  %s15 = ssub.s32 1, %s13
  %s16 = scalar_select 0, %s15, %s13
  $region1: #{tpu_custom_call.1} parent=0
    #allocation2 [shape = 'u8[8192]{0}', space=vmem, size = 0x2000, scoped, tag = 'input window, operand 0']
    #allocation3 [shape = 's32[2]{0}', space=sflag, size = 0x8, scoped, tag = 'scoped memory for tpu_custom_call.1']
    #allocation4 [shape = 's32[2]{0}', space=sflag, size = 0x8, scoped, tag = 'scoped memory for tpu_custom_call.1']
    #allocation5 [shape = 'u8[4096]{0}', space=vmem, size = 0x1000, scoped, tag = 'input window, operand 2, single buffered']
    #allocation6 [shape = 's32[1]{0}', space=sflag, size = 0x4, scoped, tag = 'scoped memory for tpu_custom_call.1']
    #allocation7 [shape = 'u8[2048]{0}', space=vmem, size = 0x800, scoped, tag = 'input window, operand 3, single buffered']
    #allocation8 [shape = 'u8[16384]{0}', space=vmem, size = 0x4000, scoped, tag = 'input window, operand 9, single buffered']
    #allocation9 [shape = 's32[1]{0}', space=sflag, size = 0x4, scoped, tag = 'scoped memory for tpu_custom_call.1']
    #allocation10 [shape = 'u8[16384]{0}', space=vmem, size = 0x4000, scoped, tag = 'input window, operand 10, single buffered']
    #allocation11 [shape = 'u8[8192]{0}', space=vmem, size = 0x2000, scoped, tag = 'output window, operand 0']
    %17 = vsyncpa [#allocation3], 0
    %s18 = scalar_lea.sflag [#allocation3], 1
    %19 = vsyncpa %s18, 0
    %20 = vsyncpa [#allocation6], 0
    %21 = vsyncpa [#allocation9], 0
    %22 = vsyncpa [#allocation4], 0
    %s23 = scalar_lea.sflag [#allocation4], 1
    %24 = vsyncpa %s23, 0
    loop: start=0, step=1, limit=4
    $region2: #{tpu_custom_call.1} parent=1 // loop_pre_header
      _
    $region3: #{tpu_custom_call.1} parent=1 // loop_header
      %s26 = sphi 0, %s30
      %p27 = scmp.ge.s32.totalorder %s26, 4
      %s36 = sphi 0, %s38
      %s39 = sphi 0, %s36
      %s40 = sphi 0, %s39
      %s56 = sphi 0, %s40
      %s62 = sphi 0, %s64
      %s65 = sphi 0, %s62
      %s66 = sphi 0, %s65
      %s82 = sphi 0, %s66
      %s86 = sphi 0, %s86
      %s88 = sphi 0, %s86
      %s89 = sphi 0, %s88
      %s103 = sphi 0, %s89
      %s107 = sphi 0, %s107
      %s109 = sphi 0, %s107
      %s110 = sphi 0, %s109
      %s124 = sphi 0, %s110
      %s128 = sphi 0, %s128
      %s130 = sphi 0, %s128
      %s131 = sphi 0, %s130
      %s145 = sphi 0, %s131
      %s149 = sphi 0, %s149
      %s151 = sphi 0, %s149
      %s152 = sphi 0, %s151
      %s166 = sphi 0, %s152
      %s170 = sphi 0, %s170
      %s172 = sphi 0, %s170
      %s173 = sphi 0, %s172
      %s187 = sphi 0, %s173
      %s191 = sphi 0, %s191
      %s193 = sphi 0, %s191
      %s194 = sphi 0, %s193
      %s208 = sphi 0, %s194
      %s212 = sphi 0, %s212
      %s214 = sphi 0, %s212
      %s215 = sphi 0, %s214
      %s229 = sphi 0, %s215
      %s233 = sphi 0, %s233
      %s235 = sphi 0, %s233
      %s236 = sphi 0, %s235
      %s250 = sphi 0, %s236
      %s254 = sphi 0, %s254
      %s256 = sphi 0, %s254
      %s257 = sphi 0, %s256
      %s271 = sphi 0, %s257
      %s275 = sphi 0, %s275
      %s277 = sphi 0, %s275
      %s278 = sphi 0, %s277
      %s292 = sphi 0, %s278
      %s298 = sphi 0, %s300
      %s301 = sphi 0, %s298
      %s302 = sphi 0, %s301
      %s318 = sphi 0, %s302
    $region4: #{tpu_custom_call.1} parent=1 // loop_header_branch
      %29 = sbr.rel (%p27) target = $region8
    $region5: #{tpu_custom_call.1} parent=1 // loop_body
      %s31 = ssub.s32 %s26, 1
      %s32 = ssub.s32 %s26, 2
      %s33 = sadd.s32 %s26, 1
      %s34 = ssub.s32 %s26, %s33
      %p35 = scmp.eq.s32.totalorder %s34, 0
      %s37 = sadd.s32 %s36, 1
      %s38 = scalar_select %p35, %s36, %s37
      %p41 = pneg %p35
      %p42 = scmp.eq.s32.totalorder %s26, 1
      %p43 = por %p41, %p42
      %p44 = scmp.ne.s32.totalorder %s36, %s39
      %p45 = scmp.eq.s32.totalorder %s26, 0
      %p46 = por %p44, %p45
      %p47 = scmp.ne.s32.totalorder %s36, %s39
      %p48 = scmp.eq.s32.totalorder %s31, 1
      %p49 = por %p47, %p48
      %p50 = scmp.ne.s32.totalorder %s39, %s40
      %p51 = scmp.eq.s32.totalorder %s31, 0
      %p52 = por %p50, %p51
      %p53 = scmp.ne.s32.totalorder %s39, %s40
      %p54 = scmp.eq.s32.totalorder %s32, 1
      %p55 = por %p53, %p54
      %p57 = scmp.ne.s32.totalorder %s40, %s56
      %p58 = scmp.eq.s32.totalorder %s32, 0
      %p59 = por %p57, %p58
      %s60 = ssub.s32 %s26, %s33
      %p61 = scmp.eq.s32.totalorder %s60, 0
      %s63 = sadd.s32 %s62, 1
      %s64 = scalar_select %p61, %s62, %s63
      %p67 = pneg %p61
      %p68 = scmp.eq.s32.totalorder %s26, 1
      %p69 = por %p67, %p68
      %p70 = scmp.ne.s32.totalorder %s62, %s65
      %p71 = scmp.eq.s32.totalorder %s26, 0
      %p72 = por %p70, %p71
      %p73 = scmp.ne.s32.totalorder %s62, %s65
      %p74 = scmp.eq.s32.totalorder %s31, 1
      %p75 = por %p73, %p74
      %p76 = scmp.ne.s32.totalorder %s65, %s66
      %p77 = scmp.eq.s32.totalorder %s31, 0
      %p78 = por %p76, %p77
      %p79 = scmp.ne.s32.totalorder %s65, %s66
      %p80 = scmp.eq.s32.totalorder %s32, 1
      %p81 = por %p79, %p80
      %p83 = scmp.ne.s32.totalorder %s66, %s82
      %p84 = scmp.eq.s32.totalorder %s32, 0
      %p85 = por %p83, %p84
      %s87 = sadd.s32 %s86, 1
      %p90 = scmp.eq.s32.totalorder %s26, 1
      %p91 = scmp.ne.s32.totalorder %s86, %s88
      %p92 = scmp.eq.s32.totalorder %s26, 0
      %p93 = por %p91, %p92
      %p94 = scmp.ne.s32.totalorder %s86, %s88
      %p95 = scmp.eq.s32.totalorder %s31, 1
      %p96 = por %p94, %p95
      %p97 = scmp.ne.s32.totalorder %s88, %s89
      %p98 = scmp.eq.s32.totalorder %s31, 0
      %p99 = por %p97, %p98
      %p100 = scmp.ne.s32.totalorder %s88, %s89
      %p101 = scmp.eq.s32.totalorder %s32, 1
      %p102 = por %p100, %p101
      %p104 = scmp.ne.s32.totalorder %s89, %s103
      %p105 = scmp.eq.s32.totalorder %s32, 0
      %p106 = por %p104, %p105
      %s108 = sadd.s32 %s107, 1
      %p111 = scmp.eq.s32.totalorder %s26, 1
      %p112 = scmp.ne.s32.totalorder %s107, %s109
      %p113 = scmp.eq.s32.totalorder %s26, 0
      %p114 = por %p112, %p113
      %p115 = scmp.ne.s32.totalorder %s107, %s109
      %p116 = scmp.eq.s32.totalorder %s31, 1
      %p117 = por %p115, %p116
      %p118 = scmp.ne.s32.totalorder %s109, %s110
      %p119 = scmp.eq.s32.totalorder %s31, 0
      %p120 = por %p118, %p119
      %p121 = scmp.ne.s32.totalorder %s109, %s110
      %p122 = scmp.eq.s32.totalorder %s32, 1
      %p123 = por %p121, %p122
      %p125 = scmp.ne.s32.totalorder %s110, %s124
      %p126 = scmp.eq.s32.totalorder %s32, 0
      %p127 = por %p125, %p126
      %s129 = sadd.s32 %s128, 1
      %p132 = scmp.eq.s32.totalorder %s26, 1
      %p133 = scmp.ne.s32.totalorder %s128, %s130
      %p134 = scmp.eq.s32.totalorder %s26, 0
      %p135 = por %p133, %p134
      %p136 = scmp.ne.s32.totalorder %s128, %s130
      %p137 = scmp.eq.s32.totalorder %s31, 1
      %p138 = por %p136, %p137
      %p139 = scmp.ne.s32.totalorder %s130, %s131
      %p140 = scmp.eq.s32.totalorder %s31, 0
      %p141 = por %p139, %p140
      %p142 = scmp.ne.s32.totalorder %s130, %s131
      %p143 = scmp.eq.s32.totalorder %s32, 1
      %p144 = por %p142, %p143
      %p146 = scmp.ne.s32.totalorder %s131, %s145
      %p147 = scmp.eq.s32.totalorder %s32, 0
      %p148 = por %p146, %p147
      %s150 = sadd.s32 %s149, 1
      %p153 = scmp.eq.s32.totalorder %s26, 1
      %p154 = scmp.ne.s32.totalorder %s149, %s151
      %p155 = scmp.eq.s32.totalorder %s26, 0
      %p156 = por %p154, %p155
      %p157 = scmp.ne.s32.totalorder %s149, %s151
      %p158 = scmp.eq.s32.totalorder %s31, 1
      %p159 = por %p157, %p158
      %p160 = scmp.ne.s32.totalorder %s151, %s152
      %p161 = scmp.eq.s32.totalorder %s31, 0
      %p162 = por %p160, %p161
      %p163 = scmp.ne.s32.totalorder %s151, %s152
      %p164 = scmp.eq.s32.totalorder %s32, 1
      %p165 = por %p163, %p164
      %p167 = scmp.ne.s32.totalorder %s152, %s166
      %p168 = scmp.eq.s32.totalorder %s32, 0
      %p169 = por %p167, %p168
      %s171 = sadd.s32 %s170, 1
      %p174 = scmp.eq.s32.totalorder %s26, 1
      %p175 = scmp.ne.s32.totalorder %s170, %s172
      %p176 = scmp.eq.s32.totalorder %s26, 0
      %p177 = por %p175, %p176
      %p178 = scmp.ne.s32.totalorder %s170, %s172
      %p179 = scmp.eq.s32.totalorder %s31, 1
      %p180 = por %p178, %p179
      %p181 = scmp.ne.s32.totalorder %s172, %s173
      %p182 = scmp.eq.s32.totalorder %s31, 0
      %p183 = por %p181, %p182
      %p184 = scmp.ne.s32.totalorder %s172, %s173
      %p185 = scmp.eq.s32.totalorder %s32, 1
      %p186 = por %p184, %p185
      %p188 = scmp.ne.s32.totalorder %s173, %s187
      %p189 = scmp.eq.s32.totalorder %s32, 0
      %p190 = por %p188, %p189
      %s192 = sadd.s32 %s191, 1
      %p195 = scmp.eq.s32.totalorder %s26, 1
      %p196 = scmp.ne.s32.totalorder %s191, %s193
      %p197 = scmp.eq.s32.totalorder %s26, 0
      %p198 = por %p196, %p197
      %p199 = scmp.ne.s32.totalorder %s191, %s193
      %p200 = scmp.eq.s32.totalorder %s31, 1
      %p201 = por %p199, %p200
      %p202 = scmp.ne.s32.totalorder %s193, %s194
      %p203 = scmp.eq.s32.totalorder %s31, 0
      %p204 = por %p202, %p203
      %p205 = scmp.ne.s32.totalorder %s193, %s194
      %p206 = scmp.eq.s32.totalorder %s32, 1
      %p207 = por %p205, %p206
      %p209 = scmp.ne.s32.totalorder %s194, %s208
      %p210 = scmp.eq.s32.totalorder %s32, 0
      %p211 = por %p209, %p210
      %s213 = sadd.s32 %s212, 1
      %p216 = scmp.eq.s32.totalorder %s26, 1
      %p217 = scmp.ne.s32.totalorder %s212, %s214
      %p218 = scmp.eq.s32.totalorder %s26, 0
      %p219 = por %p217, %p218
      %p220 = scmp.ne.s32.totalorder %s212, %s214
      %p221 = scmp.eq.s32.totalorder %s31, 1
      %p222 = por %p220, %p221
      %p223 = scmp.ne.s32.totalorder %s214, %s215
      %p224 = scmp.eq.s32.totalorder %s31, 0
      %p225 = por %p223, %p224
      %p226 = scmp.ne.s32.totalorder %s214, %s215
      %p227 = scmp.eq.s32.totalorder %s32, 1
      %p228 = por %p226, %p227
      %p230 = scmp.ne.s32.totalorder %s215, %s229
      %p231 = scmp.eq.s32.totalorder %s32, 0
      %p232 = por %p230, %p231
      %s234 = sadd.s32 %s233, 1
      %p237 = scmp.eq.s32.totalorder %s26, 1
      %p238 = scmp.ne.s32.totalorder %s233, %s235
      %p239 = scmp.eq.s32.totalorder %s26, 0
      %p240 = por %p238, %p239
      %p241 = scmp.ne.s32.totalorder %s233, %s235
      %p242 = scmp.eq.s32.totalorder %s31, 1
      %p243 = por %p241, %p242
      %p244 = scmp.ne.s32.totalorder %s235, %s236
      %p245 = scmp.eq.s32.totalorder %s31, 0
      %p246 = por %p244, %p245
      %p247 = scmp.ne.s32.totalorder %s235, %s236
      %p248 = scmp.eq.s32.totalorder %s32, 1
      %p249 = por %p247, %p248
      %p251 = scmp.ne.s32.totalorder %s236, %s250
      %p252 = scmp.eq.s32.totalorder %s32, 0
      %p253 = por %p251, %p252
      %s255 = sadd.s32 %s254, 1
      %p258 = scmp.eq.s32.totalorder %s26, 1
      %p259 = scmp.ne.s32.totalorder %s254, %s256
      %p260 = scmp.eq.s32.totalorder %s26, 0
      %p261 = por %p259, %p260
      %p262 = scmp.ne.s32.totalorder %s254, %s256
      %p263 = scmp.eq.s32.totalorder %s31, 1
      %p264 = por %p262, %p263
      %p265 = scmp.ne.s32.totalorder %s256, %s257
      %p266 = scmp.eq.s32.totalorder %s31, 0
      %p267 = por %p265, %p266
      %p268 = scmp.ne.s32.totalorder %s256, %s257
      %p269 = scmp.eq.s32.totalorder %s32, 1
      %p270 = por %p268, %p269
      %p272 = scmp.ne.s32.totalorder %s257, %s271
      %p273 = scmp.eq.s32.totalorder %s32, 0
      %p274 = por %p272, %p273
      %s276 = sadd.s32 %s275, 1
      %p279 = scmp.eq.s32.totalorder %s26, 1
      %p280 = scmp.ne.s32.totalorder %s275, %s277
      %p281 = scmp.eq.s32.totalorder %s26, 0
      %p282 = por %p280, %p281
      %p283 = scmp.ne.s32.totalorder %s275, %s277
      %p284 = scmp.eq.s32.totalorder %s31, 1
      %p285 = por %p283, %p284
      %p286 = scmp.ne.s32.totalorder %s277, %s278
      %p287 = scmp.eq.s32.totalorder %s31, 0
      %p288 = por %p286, %p287
      %p289 = scmp.ne.s32.totalorder %s277, %s278
      %p290 = scmp.eq.s32.totalorder %s32, 1
      %p291 = por %p289, %p290
      %p293 = scmp.ne.s32.totalorder %s278, %s292
      %p294 = scmp.eq.s32.totalorder %s32, 0
      %p295 = por %p293, %p294
      %s296 = ssub.s32 %s26, %s33
      %p297 = scmp.eq.s32.totalorder %s296, 0
      %s299 = sadd.s32 %s298, 1
      %s300 = scalar_select %p297, %s298, %s299
      %p303 = pneg %p297
      %p304 = scmp.eq.s32.totalorder %s26, 1
      %p305 = por %p303, %p304
      %p306 = scmp.ne.s32.totalorder %s298, %s301
      %p307 = scmp.eq.s32.totalorder %s26, 0
      %p308 = por %p306, %p307
      %p309 = scmp.ne.s32.totalorder %s298, %s301
      %p310 = scmp.eq.s32.totalorder %s31, 1
      %p311 = por %p309, %p310
      %p312 = scmp.ne.s32.totalorder %s301, %s302
      %p313 = scmp.eq.s32.totalorder %s31, 0
      %p314 = por %p312, %p313
      %p315 = scmp.ne.s32.totalorder %s301, %s302
      %p316 = scmp.eq.s32.totalorder %s32, 1
      %p317 = por %p315, %p316
      %p319 = scmp.ne.s32.totalorder %s302, %s318
      %p320 = scmp.eq.s32.totalorder %s32, 0
      %p321 = por %p319, %p320
      %p322 = scmp.le.s32.totalorder 1, %s26
      %p323 = scmp.lt.s32.totalorder %s26, 3
      %p324 = pnand %p322, %p323
      %p325 = pneg %p324
      // Predicated region
      $region9: #{tpu_custom_call.1} parent=5 // pred_check
        _
      $region10: #{tpu_custom_call.1} parent=5 // pred_check_branch
        %327 = sbr.rel (%p324) target = $region12
      $region11: #{tpu_custom_call.1} parent=5 // pred_region
        %s328 = ssub.s32 %s26, 1
        // Predicated region
        $region13: #{tpu_custom_call.1} parent=11 // pred_check
          %p329 = pneg %p99
        $region14: #{tpu_custom_call.1} parent=11 // pred_check_branch
          %331 = sbr.rel (%p329) target = $region16
        $region15: #{tpu_custom_call.1} parent=11 // pred_region
          %s333 = ssub.s32 128, 128
          %334 = vsyncadd [#allocation6], %s333
          %s336 = sshll.u32 [#allocation5], 4
          %s337 = int_to_ptr.vmem [resolvable:$true] %s336
          %339 = dma.hbm_to_vmem [thread:$0]  %s2, 128, %s337, [#allocation6]
        $region16: #{tpu_custom_call.1} parent=11 // pred_fallthru
          _
        // Predicated region
        $region17: #{tpu_custom_call.1} parent=11 // pred_check
          %p340 = pneg %p120
        $region18: #{tpu_custom_call.1} parent=11 // pred_check_branch
          %342 = sbr.rel (%p340) target = $region20
        $region19: #{tpu_custom_call.1} parent=11 // pred_region
          %s344 = ssub.s32 64, 64
          %345 = vsyncadd [#allocation6], %s344
          %s347 = sshll.u32 [#allocation7], 4
          %s348 = int_to_ptr.vmem [resolvable:$true] %s347
          %350 = dma.hbm_to_vmem [thread:$0]  %s3, 64, %s348, [#allocation6]
        $region20: #{tpu_custom_call.1} parent=11 // pred_fallthru
          _
        // Predicated region
        $region21: #{tpu_custom_call.1} parent=11 // pred_check
          %p351 = pneg %p141
        $region22: #{tpu_custom_call.1} parent=11 // pred_check_branch
          %353 = sbr.rel (%p351) target = $region24
        $region23: #{tpu_custom_call.1} parent=11 // pred_region
          _
        $region24: #{tpu_custom_call.1} parent=11 // pred_fallthru
          _
        // Predicated region
        $region25: #{tpu_custom_call.1} parent=11 // pred_check
          %p354 = pneg %p162
        $region26: #{tpu_custom_call.1} parent=11 // pred_check_branch
          %356 = sbr.rel (%p354) target = $region28
        $region27: #{tpu_custom_call.1} parent=11 // pred_region
          _
        $region28: #{tpu_custom_call.1} parent=11 // pred_fallthru
          _
        // Predicated region
        $region29: #{tpu_custom_call.1} parent=11 // pred_check
          %p357 = pneg %p183
        $region30: #{tpu_custom_call.1} parent=11 // pred_check_branch
          %359 = sbr.rel (%p357) target = $region32
        $region31: #{tpu_custom_call.1} parent=11 // pred_region
          _
        $region32: #{tpu_custom_call.1} parent=11 // pred_fallthru
          _
        // Predicated region
        $region33: #{tpu_custom_call.1} parent=11 // pred_check
          %p360 = pneg %p204
        $region34: #{tpu_custom_call.1} parent=11 // pred_check_branch
          %362 = sbr.rel (%p360) target = $region36
        $region35: #{tpu_custom_call.1} parent=11 // pred_region
          _
        $region36: #{tpu_custom_call.1} parent=11 // pred_fallthru
          _
        // Predicated region
        $region37: #{tpu_custom_call.1} parent=11 // pred_check
          %p363 = pneg %p225
        $region38: #{tpu_custom_call.1} parent=11 // pred_check_branch
          %365 = sbr.rel (%p363) target = $region40
        $region39: #{tpu_custom_call.1} parent=11 // pred_region
          _
        $region40: #{tpu_custom_call.1} parent=11 // pred_fallthru
          _
        // Predicated region
        $region41: #{tpu_custom_call.1} parent=11 // pred_check
          %p366 = pneg %p246
        $region42: #{tpu_custom_call.1} parent=11 // pred_check_branch
          %368 = sbr.rel (%p366) target = $region44
        $region43: #{tpu_custom_call.1} parent=11 // pred_region
          %s370 = ssub.s32 512, 512
          %371 = vsyncadd [#allocation9], %s370
          %s372 = sshll.u32 [#allocation8], 4
          %s373 = int_to_ptr.vmem [resolvable:$true] %s372
          %378 = dma.hbm_to_vmem [thread:$0]  %s9, 512, %s373, [#allocation9], 128, 128, 8
        $region44: #{tpu_custom_call.1} parent=11 // pred_fallthru
          _
        // Predicated region
        $region45: #{tpu_custom_call.1} parent=11 // pred_check
          %p379 = pneg %p267
        $region46: #{tpu_custom_call.1} parent=11 // pred_check_branch
          %381 = sbr.rel (%p379) target = $region48
        $region47: #{tpu_custom_call.1} parent=11 // pred_region
          %s383 = ssub.s32 512, 512
          %384 = vsyncadd [#allocation9], %s383
          %s385 = sshll.u32 [#allocation10], 4
          %s386 = int_to_ptr.vmem [resolvable:$true] %s385
          %391 = dma.hbm_to_vmem [thread:$0]  %s10, 512, %s386, [#allocation9], 128, 128, 8
        $region48: #{tpu_custom_call.1} parent=11 // pred_fallthru
          _
        // Predicated region
        $region49: #{tpu_custom_call.1} parent=11 // pred_check
          %p392 = pneg %p288
        $region50: #{tpu_custom_call.1} parent=11 // pred_check_branch
          %394 = sbr.rel (%p392) target = $region52
        $region51: #{tpu_custom_call.1} parent=11 // pred_region
          _
        $region52: #{tpu_custom_call.1} parent=11 // pred_fallthru
          _
      $region12: #{tpu_custom_call.1} parent=5 // pred_fallthru
        _
      %p395 = scmp.lt.s32.totalorder %s26, 2
      // Predicated region
      $region53: #{tpu_custom_call.1} parent=5 // pred_check
        %p396 = pneg %p395
      $region54: #{tpu_custom_call.1} parent=5 // pred_check_branch
        %398 = sbr.rel (%p396) target = $region56
      $region55: #{tpu_custom_call.1} parent=5 // pred_region
        // Predicated region
        $region57: #{tpu_custom_call.1} parent=55 // pred_check
          %p399 = pneg %p46
        $region58: #{tpu_custom_call.1} parent=55 // pred_check_branch
          %401 = sbr.rel (%p399) target = $region60
        $region59: #{tpu_custom_call.1} parent=55 // pred_region
          %s402 = sand.u32 %s36, 1
          %s403 = scalar_lea.sflag [#allocation3], %s402
          %s404 = sand.u32 %s36, 1
          %s405 = smul.addr %s404, 8
          %s406 = scalar_lea.vmem [#allocation2], %s405
          %s408 = ssub.s32 128, 128
          %409 = vsyncadd %s403, %s408
          %s410 = smul.addr %s26, 128
          %s411 = scalar_lea.hbm %s0, %s410
          %s413 = sshll.u32 %s406, 4
          %s414 = int_to_ptr.vmem [resolvable:$true] %s413
          %416 = dma.hbm_to_vmem [thread:$0]  %s411, 128, %s414, %s403
        $region60: #{tpu_custom_call.1} parent=55 // pred_fallthru
          _
        // Predicated region
        $region61: #{tpu_custom_call.1} parent=55 // pred_check
          %p417 = pneg %p72
        $region62: #{tpu_custom_call.1} parent=55 // pred_check_branch
          %419 = sbr.rel (%p417) target = $region64
        $region63: #{tpu_custom_call.1} parent=55 // pred_region
          %p420 = scmp.lt.s32.totalorder %s26, 1
          %s421 = scalar_select %p420, %s26, 1
          %s422 = smul.addr %s421, 2
          %s423 = smul.addr %s422, 8
          %s424 = scalar_lea.vmem %s1, %s423
        $region64: #{tpu_custom_call.1} parent=55 // pred_fallthru
          _
      $region56: #{tpu_custom_call.1} parent=5 // pred_fallthru
        _
      %p425 = scmp.le.s32.totalorder 1, %s26
      %p426 = scmp.lt.s32.totalorder %s26, 3
      %p427 = pnand %p425, %p426
      %p428 = pneg %p427
      // Predicated region
      $region65: #{tpu_custom_call.1} parent=5 // pred_check
        _
      $region66: #{tpu_custom_call.1} parent=5 // pred_check_branch
        %430 = sbr.rel (%p427) target = $region68
      $region67: #{tpu_custom_call.1} parent=5 // pred_region
        %s431 = ssub.s32 %s26, 1
        %s432 = sand.u32 %s39, 1
        %s433 = scalar_lea.sflag [#allocation3], %s432
        %s434 = sand.u32 %s39, 1
        %s435 = smul.addr %s434, 8
        %s436 = scalar_lea.vmem [#allocation2], %s435
        // Predicated region
        $region69: #{tpu_custom_call.1} parent=67 // pred_check
          %p437 = pneg %p52
        $region70: #{tpu_custom_call.1} parent=67 // pred_check_branch
          %439 = sbr.rel (%p437) target = $region72
        $region71: #{tpu_custom_call.1} parent=67 // pred_region
          %440 = dma.done %s433, 128
        $region72: #{tpu_custom_call.1} parent=67 // pred_fallthru
          _
        // Predicated region
        $region73: #{tpu_custom_call.1} parent=67 // pred_check
          %p441 = pneg %p99
        $region74: #{tpu_custom_call.1} parent=67 // pred_check_branch
          %443 = sbr.rel (%p441) target = $region76
        $region75: #{tpu_custom_call.1} parent=67 // pred_region
          %444 = dma.done [#allocation6], 128
        $region76: #{tpu_custom_call.1} parent=67 // pred_fallthru
          _
        // Predicated region
        $region77: #{tpu_custom_call.1} parent=67 // pred_check
          %p445 = pneg %p120
        $region78: #{tpu_custom_call.1} parent=67 // pred_check_branch
          %447 = sbr.rel (%p445) target = $region80
        $region79: #{tpu_custom_call.1} parent=67 // pred_region
          %448 = dma.done [#allocation6], 64
        $region80: #{tpu_custom_call.1} parent=67 // pred_fallthru
          _
        // Predicated region
        $region81: #{tpu_custom_call.1} parent=67 // pred_check
          %p449 = pneg %p246
        $region82: #{tpu_custom_call.1} parent=67 // pred_check_branch
          %451 = sbr.rel (%p449) target = $region84
        $region83: #{tpu_custom_call.1} parent=67 // pred_region
          %452 = dma.done [#allocation9], 512
        $region84: #{tpu_custom_call.1} parent=67 // pred_fallthru
          _
        // Predicated region
        $region85: #{tpu_custom_call.1} parent=67 // pred_check
          %p453 = pneg %p267
        $region86: #{tpu_custom_call.1} parent=67 // pred_check_branch
          %455 = sbr.rel (%p453) target = $region88
        $region87: #{tpu_custom_call.1} parent=67 // pred_region
          %456 = dma.done [#allocation9], 512
        $region88: #{tpu_custom_call.1} parent=67 // pred_fallthru
          _
        %s457 = sand.u32 %s39, 1
        %s458 = scalar_lea.sflag [#allocation3], %s457
        %s459 = sand.u32 %s39, 1
        %s460 = smul.addr %s459, 8
        %s461 = scalar_lea.vmem [#allocation2], %s460
        %p462 = pneg %p52
        %p463 = pneg %p49
        %p464 = scmp.lt.s32.totalorder %s31, 1
        %s465 = scalar_select %p464, %s31, 1
        %s466 = smul.addr %s465, 2
        %s467 = smul.addr %s466, 8
        %s468 = scalar_lea.vmem %s1, %s467
        %p469 = pneg %p78
        %p470 = pneg %p75
        %p471 = pneg %p99
        %p472 = pneg %p96
        %p473 = pneg %p120
        %p474 = pneg %p117
        %p475 = pneg %p141
        %p476 = pneg %p138
        %p477 = pneg %p162
        %p478 = pneg %p159
        %p479 = pneg %p183
        %p480 = pneg %p180
        %p481 = pneg %p204
        %p482 = pneg %p201
        %p483 = pneg %p225
        %p484 = pneg %p222
        %p485 = pneg %p246
        %p486 = pneg %p243
        %p487 = pneg %p267
        %p488 = pneg %p264
        %p489 = pneg %p288
        %p490 = pneg %p285
        %p491 = pneg %p314
        %p492 = pneg %p311
        %s493 = sand.u32 %s301, 1
        %s494 = scalar_lea.sflag [#allocation4], %s493
        %s495 = sand.u32 %s301, 1
        %s496 = smul.addr %s495, 8
        %s497 = scalar_lea.vmem [#allocation11], %s496
        %p498 = scmp.lt.s32.totalorder %s31, 1
        %s499 = scalar_select %p498, %s31, 1
        %s500 = smul.addr %s499, 2
        %s501 = smul.addr %s500, 8
        %s502 = scalar_lea.vmem %s1, %s501
        %v503 = vld [vmem:[%s436] sm:$0xff]
        %v504 = vld [vmem:[%s502] sm:$0xff]
        %v505 = vld [vmem:[%s502 + $0x8] sm:$0xf]
        %v506 = vld [vmem:[#allocation5] sm:$0x3f]
        %v507 = vld [vmem:[#allocation7] sm:$0x7]
        %vm508 = vcmask 261120
        %v509 = vsel %vm508, %v503, 0.0
        %510 = vadd.xlane.f32.xlu0 %v509
        %v511 = vpop.xlane.xlu0 %510
        %v512 = vrcp.pop 32.0
        %v513 = vmul.f32 %v511, %v512
        %v514 = vsub.f32 %v503, %v513
        %v515 = vmul.f32 %v514, %v514
        %v516 = vsel %vm508, %v515, 0.0
        %517 = vadd.xlane.f32.xlu0 %v516
        %v518 = vpop.xlane.xlu0 %517
        %v519 = vmul.f32 %v518, %v512
        %v520 = vadd.f32 %v519, 1e-05
        %v521 = vrsqrt.pop %v520
        %v522 = vmul.f32 %v514, %v521
        %v523 = vlaneseq
        %v524 = vshrl.u32 %v523, 7
        %v525 = vsub.s32 0, %v524
        %v526 = vrot.slane %v506, %v525
        %v527 = vmul.f32 %v522, %v526
        %v528 = vlaneseq
        %v529 = vshrl.u32 %v528, 7
        %v530 = vsub.s32 1, %v529
        %v531 = vrot.slane %v506, %v530
        %v532 = vadd.f32 %v527, %v531
        %v533 = vld [vmem:[%s5] sm:$0xff]
        %v534 = vld [vmem:[%s5 + $0x8] sm:$0xff]
        %v535 = vld [vmem:[%s5 + $0x10] sm:$0xff]
        %v536 = vld [vmem:[%s5 + $0x18] sm:$0xff]
        %v538 = vsel %vm508, %v532, 0
        %540 = vmatprep.subr.mxu0 0.0
        %541 = vmatpush1.msra.mxu0 0.0
        %542 = vmatprep.subr.mxu0 0.0
        %543 = vmatpush1.msra.mxu0 0.0
        %544 = vmatprep.subr.mxu0 0.0
        %545 = vmatpush1.msra.mxu0 0.0
        %546 = vmatprep.subr.mxu0 0.0
        %547 = vmatpush1.msra.mxu0 0.0
        %548 = vmatprep.subr.mxu0 0.0
        %549 = vmatpush1.msra.mxu0 0.0
        %550 = vmatprep.subr.mxu0 0.0
        %551 = vmatpush1.msra.mxu0 0.0
        %552 = vmatprep.subr.mxu0 0.0
        %553 = vmatpush1.msra.mxu0 0.0
        %554 = vmatprep.subr.mxu0 0.0
        %555 = vmatpush1.msra.mxu0 0.0
        %556 = vmatprep.subr.mxu0 0.0
        %557 = vmatpush1.msra.mxu0 0.0
        %558 = vmatprep.subr.mxu0 0.0
        %559 = vmatpush1.msra.mxu0 0.0
        %560 = vmatprep.subr.mxu0 0.0
        %561 = vmatpush1.msra.mxu0 0.0
        %562 = vmatprep.subr.mxu0 0.0
        %563 = vmatpush1.msra.mxu0 0.0
        %564 = vmatprep.subr.mxu0 0.0
        %565 = vmatpush1.msra.mxu0 %v536
        %566 = vmatprep.subr.mxu0 0.0
        %567 = vmatpush1.msra.mxu0 %v535
        %568 = vmatprep.subr.mxu0 0.0
        %569 = vmatpush1.msra.mxu0 %v534
        %570 = vmatprep.subr.mxu0 0.0
        %571 = vmatpush1.msra.mxu0 %v533
        %572 = vmatprep.subr.mxu0 0.0
        %573 = vmatpush2.msra.mxu0 0.0
        %574 = vmatprep.subr.mxu0 0.0
        %575 = vmatpush2.msra.mxu0 0.0
        %576 = vmatprep.subr.mxu0 0.0
        %577 = vmatpush2.msra.mxu0 0.0
        %578 = vmatprep.subr.mxu0 0.0
        %579 = vmatpush2.msra.mxu0 0.0
        %580 = vmatprep.subr.mxu0 0.0
        %581 = vmatpush2.msra.mxu0 0.0
        %582 = vmatprep.subr.mxu0 0.0
        %583 = vmatpush2.msra.mxu0 0.0
        %584 = vmatprep.subr.mxu0 0.0
        %585 = vmatpush2.msra.mxu0 0.0
        %586 = vmatprep.subr.mxu0 0.0
        %587 = vmatpush2.msra.mxu0 0.0
        %588 = vmatprep.subr.mxu0 0.0
        %589 = vmatpush2.msra.mxu0 0.0
        %590 = vmatprep.subr.mxu0 0.0
        %591 = vmatpush2.msra.mxu0 0.0
        %592 = vmatprep.subr.mxu0 0.0
        %593 = vmatpush2.msra.mxu0 0.0
        %594 = vmatprep.subr.mxu0 0.0
        %595 = vmatpush2.msra.mxu0 0.0
        %596 = vmatprep.subr.mxu0 0.0
        %597 = vmatpush2.msra.mxu0 0.0
        %598 = vmatprep.subr.mxu0 0.0
        %599 = vmatpush2.msra.mxu0 0.0
        %600 = vmatprep.subr.mxu0 0.0
        %601 = vmatpush2.msra.mxu0 0.0
        %602 = vmatprep.subr.mxu0 0.0
        %603 = vmatpush2.msra.mxu0 0.0
        %604 = vmatprep.mubr.f32.mxu0 0.0
        %605 = vmatmul.mubr.f32.gmra.mxu0 %v538
        %v606 = vpop.f32.mrf.mxu0
        %v607 = vadd.f32 0.0, %v606
        %v608 = vpop.f32.mrf.mxu0
        %609 = vdwg.mxu0
        %v610 = vlaneseq
        %v611 = vshrl.u32 %v610, 7
        %v612 = vlaneseq
        %v613 = vand.u32 %v612, 127
        %vm614 = vcmp.le.s32.totalorder %v613, %v611
        %616 = vrot.lane.b32.xlu0 %v607, 120
        %v617 = vpop.permute.xlu0 %616
        %618 = vrot.lane.b32.xlu0 %v607, 112
        %v619 = vpop.permute.xlu0 %618
        %620 = vrot.lane.b32.xlu0 %v607, 104
        %v621 = vpop.permute.xlu0 %620
        %622 = vrot.lane.b32.xlu0 %v607, 96
        %v623 = vpop.permute.xlu0 %622
        %vm624 = vcmask 64512
        %v625 = vsel %vm624, %v607, 0
        %v627 = vsel %vm624, %v623, 0
        %629 = vmatprep.subr.mxu0 0.0
        %630 = vmatpush1.xpose.msra.mxu0 0.0
        %631 = vmatprep.subr.mxu0 0.0
        %632 = vmatpush1.xpose.msra.mxu0 0.0
        %633 = vmatprep.subr.mxu0 0.0
        %634 = vmatpush1.xpose.msra.mxu0 0.0
        %635 = vmatprep.subr.mxu0 0.0
        %636 = vmatpush1.xpose.msra.mxu0 0.0
        %637 = vmatprep.subr.mxu0 0.0
        %638 = vmatpush1.xpose.msra.mxu0 0.0
        %639 = vmatprep.subr.mxu0 0.0
        %640 = vmatpush1.xpose.msra.mxu0 0.0
        %641 = vmatprep.subr.mxu0 0.0
        %642 = vmatpush1.xpose.msra.mxu0 0.0
        %643 = vmatprep.subr.mxu0 0.0
        %644 = vmatpush1.xpose.msra.mxu0 0.0
        %645 = vmatprep.subr.mxu0 0.0
        %646 = vmatpush1.xpose.msra.mxu0 0.0
        %647 = vmatprep.subr.mxu0 0.0
        %648 = vmatpush1.xpose.msra.mxu0 0.0
        %649 = vmatprep.subr.mxu0 0.0
        %650 = vmatpush1.xpose.msra.mxu0 0.0
        %651 = vmatprep.subr.mxu0 0.0
        %652 = vmatpush1.xpose.msra.mxu0 0.0
        %653 = vmatprep.subr.mxu0 0.0
        %654 = vmatpush1.xpose.msra.mxu0 0.0
        %655 = vmatprep.subr.mxu0 0.0
        %656 = vmatpush1.xpose.msra.mxu0 0.0
        %657 = vmatprep.subr.mxu0 0.0
        %658 = vmatpush1.xpose.msra.mxu0 0.0
        %659 = vmatprep.subr.mxu0 0.0
        %660 = vmatpush1.xpose.msra.mxu0 %v627
        %661 = vmatprep.subr.mxu0 0.0
        %662 = vmatpush2.xpose.msra.mxu0 0.0
        %663 = vmatprep.subr.mxu0 0.0
        %664 = vmatpush2.xpose.msra.mxu0 0.0
        %665 = vmatprep.subr.mxu0 0.0
        %666 = vmatpush2.xpose.msra.mxu0 0.0
        %667 = vmatprep.subr.mxu0 0.0
        %668 = vmatpush2.xpose.msra.mxu0 0.0
        %669 = vmatprep.subr.mxu0 0.0
        %670 = vmatpush2.xpose.msra.mxu0 0.0
        %671 = vmatprep.subr.mxu0 0.0
        %672 = vmatpush2.xpose.msra.mxu0 0.0
        %673 = vmatprep.subr.mxu0 0.0
        %674 = vmatpush2.xpose.msra.mxu0 0.0
        %675 = vmatprep.subr.mxu0 0.0
        %676 = vmatpush2.xpose.msra.mxu0 0.0
        %677 = vmatprep.subr.mxu0 0.0
        %678 = vmatpush2.xpose.msra.mxu0 0.0
        %679 = vmatprep.subr.mxu0 0.0
        %680 = vmatpush2.xpose.msra.mxu0 0.0
        %681 = vmatprep.subr.mxu0 0.0
        %682 = vmatpush2.xpose.msra.mxu0 0.0
        %683 = vmatprep.subr.mxu0 0.0
        %684 = vmatpush2.xpose.msra.mxu0 0.0
        %685 = vmatprep.subr.mxu0 0.0
        %686 = vmatpush2.xpose.msra.mxu0 0.0
        %687 = vmatprep.subr.mxu0 0.0
        %688 = vmatpush2.xpose.msra.mxu0 0.0
        %689 = vmatprep.subr.mxu0 0.0
        %690 = vmatpush2.xpose.msra.mxu0 0.0
        %691 = vmatprep.subr.mxu0 0.0
        %692 = vmatpush2.xpose.msra.mxu0 0.0
        %693 = vmatprep.mubr.f32.mxu0 0.0
        %694 = vmatmul.mubr.f32.gmra.mxu0 %v625
        %v695 = vpop.f32.mrf.mxu0
        %v696 = vadd.f32 0.0, %v695
        %v697 = vpop.f32.mrf.mxu0
        %698 = vdwg.mxu0
        %699 = vrot.lane.b32.xlu0 %v617, 96
        %v700 = vpop.permute.xlu0 %699
        %v701 = vsel %vm624, %v617, 0
        %v703 = vsel %vm624, %v700, 0
        %705 = vmatprep.subr.mxu0 0.0
        %706 = vmatpush1.xpose.msra.mxu0 0.0
        %707 = vmatprep.subr.mxu0 0.0
        %708 = vmatpush1.xpose.msra.mxu0 0.0
        %709 = vmatprep.subr.mxu0 0.0
        %710 = vmatpush1.xpose.msra.mxu0 0.0
        %711 = vmatprep.subr.mxu0 0.0
        %712 = vmatpush1.xpose.msra.mxu0 0.0
        %713 = vmatprep.subr.mxu0 0.0
        %714 = vmatpush1.xpose.msra.mxu0 0.0
        %715 = vmatprep.subr.mxu0 0.0
        %716 = vmatpush1.xpose.msra.mxu0 0.0
        %717 = vmatprep.subr.mxu0 0.0
        %718 = vmatpush1.xpose.msra.mxu0 0.0
        %719 = vmatprep.subr.mxu0 0.0
        %720 = vmatpush1.xpose.msra.mxu0 0.0
        %721 = vmatprep.subr.mxu0 0.0
        %722 = vmatpush1.xpose.msra.mxu0 0.0
        %723 = vmatprep.subr.mxu0 0.0
        %724 = vmatpush1.xpose.msra.mxu0 0.0
        %725 = vmatprep.subr.mxu0 0.0
        %726 = vmatpush1.xpose.msra.mxu0 0.0
        %727 = vmatprep.subr.mxu0 0.0
        %728 = vmatpush1.xpose.msra.mxu0 0.0
        %729 = vmatprep.subr.mxu0 0.0
        %730 = vmatpush1.xpose.msra.mxu0 0.0
        %731 = vmatprep.subr.mxu0 0.0
        %732 = vmatpush1.xpose.msra.mxu0 0.0
        %733 = vmatprep.subr.mxu0 0.0
        %734 = vmatpush1.xpose.msra.mxu0 0.0
        %735 = vmatprep.subr.mxu0 0.0
        %736 = vmatpush1.xpose.msra.mxu0 %v703
        %737 = vmatprep.subr.mxu0 0.0
        %738 = vmatpush2.xpose.msra.mxu0 0.0
        %739 = vmatprep.subr.mxu0 0.0
        %740 = vmatpush2.xpose.msra.mxu0 0.0
        %741 = vmatprep.subr.mxu0 0.0
        %742 = vmatpush2.xpose.msra.mxu0 0.0
        %743 = vmatprep.subr.mxu0 0.0
        %744 = vmatpush2.xpose.msra.mxu0 0.0
        %745 = vmatprep.subr.mxu0 0.0
        %746 = vmatpush2.xpose.msra.mxu0 0.0
        %747 = vmatprep.subr.mxu0 0.0
        %748 = vmatpush2.xpose.msra.mxu0 0.0
        %749 = vmatprep.subr.mxu0 0.0
        %750 = vmatpush2.xpose.msra.mxu0 0.0
        %751 = vmatprep.subr.mxu0 0.0
        %752 = vmatpush2.xpose.msra.mxu0 0.0
        %753 = vmatprep.subr.mxu0 0.0
        %754 = vmatpush2.xpose.msra.mxu0 0.0
        %755 = vmatprep.subr.mxu0 0.0
        %756 = vmatpush2.xpose.msra.mxu0 0.0
        %757 = vmatprep.subr.mxu0 0.0
        %758 = vmatpush2.xpose.msra.mxu0 0.0
        %759 = vmatprep.subr.mxu0 0.0
        %760 = vmatpush2.xpose.msra.mxu0 0.0
        %761 = vmatprep.subr.mxu0 0.0
        %762 = vmatpush2.xpose.msra.mxu0 0.0
        %763 = vmatprep.subr.mxu0 0.0
        %764 = vmatpush2.xpose.msra.mxu0 0.0
        %765 = vmatprep.subr.mxu0 0.0
        %766 = vmatpush2.xpose.msra.mxu0 0.0
        %767 = vmatprep.subr.mxu0 0.0
        %768 = vmatpush2.xpose.msra.mxu0 0.0
        %769 = vmatprep.mubr.f32.mxu0 0.0
        %770 = vmatmul.mubr.f32.gmra.mxu0 %v701
        %v771 = vpop.f32.mrf.mxu0
        %v772 = vadd.f32 0.0, %v771
        %v773 = vpop.f32.mrf.mxu0
        %774 = vdwg.mxu0
        %775 = vrot.lane.b32.xlu0 %v619, 96
        %v776 = vpop.permute.xlu0 %775
        %v777 = vsel %vm624, %v619, 0
        %v779 = vsel %vm624, %v776, 0
        %781 = vmatprep.subr.mxu0 0.0
        %782 = vmatpush1.xpose.msra.mxu0 0.0
        %783 = vmatprep.subr.mxu0 0.0
        %784 = vmatpush1.xpose.msra.mxu0 0.0
        %785 = vmatprep.subr.mxu0 0.0
        %786 = vmatpush1.xpose.msra.mxu0 0.0
        %787 = vmatprep.subr.mxu0 0.0
        %788 = vmatpush1.xpose.msra.mxu0 0.0
        %789 = vmatprep.subr.mxu0 0.0
        %790 = vmatpush1.xpose.msra.mxu0 0.0
        %791 = vmatprep.subr.mxu0 0.0
        %792 = vmatpush1.xpose.msra.mxu0 0.0
        %793 = vmatprep.subr.mxu0 0.0
        %794 = vmatpush1.xpose.msra.mxu0 0.0
        %795 = vmatprep.subr.mxu0 0.0
        %796 = vmatpush1.xpose.msra.mxu0 0.0
        %797 = vmatprep.subr.mxu0 0.0
        %798 = vmatpush1.xpose.msra.mxu0 0.0
        %799 = vmatprep.subr.mxu0 0.0
        %800 = vmatpush1.xpose.msra.mxu0 0.0
        %801 = vmatprep.subr.mxu0 0.0
        %802 = vmatpush1.xpose.msra.mxu0 0.0
        %803 = vmatprep.subr.mxu0 0.0
        %804 = vmatpush1.xpose.msra.mxu0 0.0
        %805 = vmatprep.subr.mxu0 0.0
        %806 = vmatpush1.xpose.msra.mxu0 0.0
        %807 = vmatprep.subr.mxu0 0.0
        %808 = vmatpush1.xpose.msra.mxu0 0.0
        %809 = vmatprep.subr.mxu0 0.0
        %810 = vmatpush1.xpose.msra.mxu0 0.0
        %811 = vmatprep.subr.mxu0 0.0
        %812 = vmatpush1.xpose.msra.mxu0 %v779
        %813 = vmatprep.subr.mxu0 0.0
        %814 = vmatpush2.xpose.msra.mxu0 0.0
        %815 = vmatprep.subr.mxu0 0.0
        %816 = vmatpush2.xpose.msra.mxu0 0.0
        %817 = vmatprep.subr.mxu0 0.0
        %818 = vmatpush2.xpose.msra.mxu0 0.0
        %819 = vmatprep.subr.mxu0 0.0
        %820 = vmatpush2.xpose.msra.mxu0 0.0
        %821 = vmatprep.subr.mxu0 0.0
        %822 = vmatpush2.xpose.msra.mxu0 0.0
        %823 = vmatprep.subr.mxu0 0.0
        %824 = vmatpush2.xpose.msra.mxu0 0.0
        %825 = vmatprep.subr.mxu0 0.0
        %826 = vmatpush2.xpose.msra.mxu0 0.0
        %827 = vmatprep.subr.mxu0 0.0
        %828 = vmatpush2.xpose.msra.mxu0 0.0
        %829 = vmatprep.subr.mxu0 0.0
        %830 = vmatpush2.xpose.msra.mxu0 0.0
        %831 = vmatprep.subr.mxu0 0.0
        %832 = vmatpush2.xpose.msra.mxu0 0.0
        %833 = vmatprep.subr.mxu0 0.0
        %834 = vmatpush2.xpose.msra.mxu0 0.0
        %835 = vmatprep.subr.mxu0 0.0
        %836 = vmatpush2.xpose.msra.mxu0 0.0
        %837 = vmatprep.subr.mxu0 0.0
        %838 = vmatpush2.xpose.msra.mxu0 0.0
        %839 = vmatprep.subr.mxu0 0.0
        %840 = vmatpush2.xpose.msra.mxu0 0.0
        %841 = vmatprep.subr.mxu0 0.0
        %842 = vmatpush2.xpose.msra.mxu0 0.0
        %843 = vmatprep.subr.mxu0 0.0
        %844 = vmatpush2.xpose.msra.mxu0 0.0
        %845 = vmatprep.mubr.f32.mxu0 0.0
        %846 = vmatmul.mubr.f32.gmra.mxu0 %v777
        %v847 = vpop.f32.mrf.mxu0
        %v848 = vadd.f32 0.0, %v847
        %v849 = vpop.f32.mrf.mxu0
        %850 = vdwg.mxu0
        %851 = vrot.lane.b32.xlu0 %v621, 96
        %v852 = vpop.permute.xlu0 %851
        %v853 = vsel %vm624, %v621, 0
        %v855 = vsel %vm624, %v852, 0
        %857 = vmatprep.subr.mxu0 0.0
        %858 = vmatpush1.xpose.msra.mxu0 0.0
        %859 = vmatprep.subr.mxu0 0.0
        %860 = vmatpush1.xpose.msra.mxu0 0.0
        %861 = vmatprep.subr.mxu0 0.0
        %862 = vmatpush1.xpose.msra.mxu0 0.0
        %863 = vmatprep.subr.mxu0 0.0
        %864 = vmatpush1.xpose.msra.mxu0 0.0
        %865 = vmatprep.subr.mxu0 0.0
        %866 = vmatpush1.xpose.msra.mxu0 0.0
        %867 = vmatprep.subr.mxu0 0.0
        %868 = vmatpush1.xpose.msra.mxu0 0.0
        %869 = vmatprep.subr.mxu0 0.0
        %870 = vmatpush1.xpose.msra.mxu0 0.0
        %871 = vmatprep.subr.mxu0 0.0
        %872 = vmatpush1.xpose.msra.mxu0 0.0
        %873 = vmatprep.subr.mxu0 0.0
        %874 = vmatpush1.xpose.msra.mxu0 0.0
        %875 = vmatprep.subr.mxu0 0.0
        %876 = vmatpush1.xpose.msra.mxu0 0.0
        %877 = vmatprep.subr.mxu0 0.0
        %878 = vmatpush1.xpose.msra.mxu0 0.0
        %879 = vmatprep.subr.mxu0 0.0
        %880 = vmatpush1.xpose.msra.mxu0 0.0
        %881 = vmatprep.subr.mxu0 0.0
        %882 = vmatpush1.xpose.msra.mxu0 0.0
        %883 = vmatprep.subr.mxu0 0.0
        %884 = vmatpush1.xpose.msra.mxu0 0.0
        %885 = vmatprep.subr.mxu0 0.0
        %886 = vmatpush1.xpose.msra.mxu0 0.0
        %887 = vmatprep.subr.mxu0 0.0
        %888 = vmatpush1.xpose.msra.mxu0 %v855
        %889 = vmatprep.subr.mxu0 0.0
        %890 = vmatpush2.xpose.msra.mxu0 0.0
        %891 = vmatprep.subr.mxu0 0.0
        %892 = vmatpush2.xpose.msra.mxu0 0.0
        %893 = vmatprep.subr.mxu0 0.0
        %894 = vmatpush2.xpose.msra.mxu0 0.0
        %895 = vmatprep.subr.mxu0 0.0
        %896 = vmatpush2.xpose.msra.mxu0 0.0
        %897 = vmatprep.subr.mxu0 0.0
        %898 = vmatpush2.xpose.msra.mxu0 0.0
        %899 = vmatprep.subr.mxu0 0.0
        %900 = vmatpush2.xpose.msra.mxu0 0.0
        %901 = vmatprep.subr.mxu0 0.0
        %902 = vmatpush2.xpose.msra.mxu0 0.0
        %903 = vmatprep.subr.mxu0 0.0
        %904 = vmatpush2.xpose.msra.mxu0 0.0
        %905 = vmatprep.subr.mxu0 0.0
        %906 = vmatpush2.xpose.msra.mxu0 0.0
        %907 = vmatprep.subr.mxu0 0.0
        %908 = vmatpush2.xpose.msra.mxu0 0.0
        %909 = vmatprep.subr.mxu0 0.0
        %910 = vmatpush2.xpose.msra.mxu0 0.0
        %911 = vmatprep.subr.mxu0 0.0
        %912 = vmatpush2.xpose.msra.mxu0 0.0
        %913 = vmatprep.subr.mxu0 0.0
        %914 = vmatpush2.xpose.msra.mxu0 0.0
        %915 = vmatprep.subr.mxu0 0.0
        %916 = vmatpush2.xpose.msra.mxu0 0.0
        %917 = vmatprep.subr.mxu0 0.0
        %918 = vmatpush2.xpose.msra.mxu0 0.0
        %919 = vmatprep.subr.mxu0 0.0
        %920 = vmatpush2.xpose.msra.mxu0 0.0
        %921 = vmatprep.mubr.f32.mxu0 0.0
        %922 = vmatmul.mubr.f32.gmra.mxu0 %v853
        %v923 = vpop.f32.mrf.mxu0
        %v924 = vadd.f32 0.0, %v923
        %v925 = vpop.f32.mrf.mxu0
        %926 = vdwg.mxu0
        %v927 = vsel %vm614, 1, 0
        %vm928 = vcmp.eq.s32.totalorder %v927, 1
        %v929 = vsel %vm928, %v696, -1e+09
        %v930 = vsel %vm928, %v772, -1e+09
        %v931 = vsel %vm928, %v848, -1e+09
        %v932 = vsel %vm928, %v924, -1e+09
        %v933 = vsel %vm624, %v929, -inf
        %934 = vmax.xlane.f32.xlu0 %v933
        %v935 = vpop.xlane.xlu0 %934
        %v936 = vsel %vm624, %v930, -inf
        %937 = vmax.xlane.f32.xlu0 %v936
        %v938 = vpop.xlane.xlu0 %937
        %v939 = vsel %vm624, %v931, -inf
        %940 = vmax.xlane.f32.xlu0 %v939
        %v941 = vpop.xlane.xlu0 %940
        %v942 = vsel %vm624, %v932, -inf
        %943 = vmax.xlane.f32.xlu0 %v942
        %v944 = vpop.xlane.xlu0 %943
        %v945 = vsub.f32 %v929, %v935
        %v946 = vsub.f32 %v930, %v938
        %v947 = vsub.f32 %v931, %v941
        %v948 = vsub.f32 %v932, %v944
        %v949 = vmul.f32 %v945, 1.442695
        %v950 = vpow.pop %v949
        %v951 = vmul.f32 %v946, 1.442695
        %v952 = vpow.pop %v951
        %v953 = vmul.f32 %v947, 1.442695
        %v954 = vpow.pop %v953
        %v955 = vmul.f32 %v948, 1.442695
        %v956 = vpow.pop %v955
        %v957 = vsel %vm624, %v950, 0.0
        %958 = vadd.xlane.f32.xlu0 %v957
        %v959 = vpop.xlane.xlu0 %958
        %v960 = vsel %vm624, %v952, 0.0
        %961 = vadd.xlane.f32.xlu0 %v960
        %v962 = vpop.xlane.xlu0 %961
        %v963 = vsel %vm624, %v954, 0.0
        %964 = vadd.xlane.f32.xlu0 %v963
        %v965 = vpop.xlane.xlu0 %964
        %v966 = vsel %vm624, %v956, 0.0
        %967 = vadd.xlane.f32.xlu0 %v966
        %v968 = vpop.xlane.xlu0 %967
        %v969 = vrcp.pop %v959
        %v970 = vrcp.pop %v962
        %v971 = vrcp.pop %v965
        %v972 = vrcp.pop %v968
        %v973 = vmul.f32 %v950, %v969
        %v974 = vmul.f32 %v952, %v970
        %v975 = vmul.f32 %v954, %v971
        %v976 = vmul.f32 %v956, %v972
        %977 = vrot.lane.b32.xlu0 %v607, 64
        %v978 = vpop.permute.xlu0 %977
        %v981 = vsel %vm624, %v973, 0
        %983 = vmatprep.subr.mxu0 0.0
        %984 = vmatpush1.msra.mxu0 0.0
        %985 = vmatprep.subr.mxu0 0.0
        %986 = vmatpush1.msra.mxu0 0.0
        %987 = vmatprep.subr.mxu0 0.0
        %988 = vmatpush1.msra.mxu0 0.0
        %989 = vmatprep.subr.mxu0 0.0
        %990 = vmatpush1.msra.mxu0 0.0
        %991 = vmatprep.subr.mxu0 0.0
        %992 = vmatpush1.msra.mxu0 0.0
        %993 = vmatprep.subr.mxu0 0.0
        %994 = vmatpush1.msra.mxu0 0.0
        %995 = vmatprep.subr.mxu0 0.0
        %996 = vmatpush1.msra.mxu0 0.0
        %997 = vmatprep.subr.mxu0 0.0
        %998 = vmatpush1.msra.mxu0 0.0
        %999 = vmatprep.subr.mxu0 0.0
        %1000 = vmatpush1.msra.mxu0 0.0
        %1001 = vmatprep.subr.mxu0 0.0
        %1002 = vmatpush1.msra.mxu0 0.0
        %1003 = vmatprep.subr.mxu0 0.0
        %1004 = vmatpush1.msra.mxu0 0.0
        %1005 = vmatprep.subr.mxu0 0.0
        %1006 = vmatpush1.msra.mxu0 0.0
        %1007 = vmatprep.subr.mxu0 0.0
        %1008 = vmatpush1.msra.mxu0 0.0
        %1009 = vmatprep.subr.mxu0 0.0
        %1010 = vmatpush1.msra.mxu0 0.0
        %1011 = vmatprep.subr.mxu0 0.0
        %1012 = vmatpush1.msra.mxu0 0.0
        %1013 = vmatprep.subr.mxu0 0.0
        %1014 = vmatpush1.msra.mxu0 %v978
        %1015 = vmatprep.subr.mxu0 0.0
        %1016 = vmatpush2.msra.mxu0 0.0
        %1017 = vmatprep.subr.mxu0 0.0
        %1018 = vmatpush2.msra.mxu0 0.0
        %1019 = vmatprep.subr.mxu0 0.0
        %1020 = vmatpush2.msra.mxu0 0.0
        %1021 = vmatprep.subr.mxu0 0.0
        %1022 = vmatpush2.msra.mxu0 0.0
        %1023 = vmatprep.subr.mxu0 0.0
        %1024 = vmatpush2.msra.mxu0 0.0
        %1025 = vmatprep.subr.mxu0 0.0
        %1026 = vmatpush2.msra.mxu0 0.0
        %1027 = vmatprep.subr.mxu0 0.0
        %1028 = vmatpush2.msra.mxu0 0.0
        %1029 = vmatprep.subr.mxu0 0.0
        %1030 = vmatpush2.msra.mxu0 0.0
        %1031 = vmatprep.subr.mxu0 0.0
        %1032 = vmatpush2.msra.mxu0 0.0
        %1033 = vmatprep.subr.mxu0 0.0
        %1034 = vmatpush2.msra.mxu0 0.0
        %1035 = vmatprep.subr.mxu0 0.0
        %1036 = vmatpush2.msra.mxu0 0.0
        %1037 = vmatprep.subr.mxu0 0.0
        %1038 = vmatpush2.msra.mxu0 0.0
        %1039 = vmatprep.subr.mxu0 0.0
        %1040 = vmatpush2.msra.mxu0 0.0
        %1041 = vmatprep.subr.mxu0 0.0
        %1042 = vmatpush2.msra.mxu0 0.0
        %1043 = vmatprep.subr.mxu0 0.0
        %1044 = vmatpush2.msra.mxu0 0.0
        %1045 = vmatprep.subr.mxu0 0.0
        %1046 = vmatpush2.msra.mxu0 0.0
        %1047 = vmatprep.mubr.f32.mxu0 0.0
        %1048 = vmatmul.mubr.f32.gmra.mxu0 %v981
        %v1049 = vpop.f32.mrf.mxu0
        %v1050 = vadd.f32 0.0, %v1049
        %v1051 = vpop.f32.mrf.mxu0
        %1052 = vdwg.mxu0
        %1053 = vrot.lane.b32.xlu0 %v617, 64
        %v1054 = vpop.permute.xlu0 %1053
        %v1057 = vsel %vm624, %v974, 0
        %1059 = vmatprep.subr.mxu0 0.0
        %1060 = vmatpush1.msra.mxu0 0.0
        %1061 = vmatprep.subr.mxu0 0.0
        %1062 = vmatpush1.msra.mxu0 0.0
        %1063 = vmatprep.subr.mxu0 0.0
        %1064 = vmatpush1.msra.mxu0 0.0
        %1065 = vmatprep.subr.mxu0 0.0
        %1066 = vmatpush1.msra.mxu0 0.0
        %1067 = vmatprep.subr.mxu0 0.0
        %1068 = vmatpush1.msra.mxu0 0.0
        %1069 = vmatprep.subr.mxu0 0.0
        %1070 = vmatpush1.msra.mxu0 0.0
        %1071 = vmatprep.subr.mxu0 0.0
        %1072 = vmatpush1.msra.mxu0 0.0
        %1073 = vmatprep.subr.mxu0 0.0
        %1074 = vmatpush1.msra.mxu0 0.0
        %1075 = vmatprep.subr.mxu0 0.0
        %1076 = vmatpush1.msra.mxu0 0.0
        %1077 = vmatprep.subr.mxu0 0.0
        %1078 = vmatpush1.msra.mxu0 0.0
        %1079 = vmatprep.subr.mxu0 0.0
        %1080 = vmatpush1.msra.mxu0 0.0
        %1081 = vmatprep.subr.mxu0 0.0
        %1082 = vmatpush1.msra.mxu0 0.0
        %1083 = vmatprep.subr.mxu0 0.0
        %1084 = vmatpush1.msra.mxu0 0.0
        %1085 = vmatprep.subr.mxu0 0.0
        %1086 = vmatpush1.msra.mxu0 0.0
        %1087 = vmatprep.subr.mxu0 0.0
        %1088 = vmatpush1.msra.mxu0 0.0
        %1089 = vmatprep.subr.mxu0 0.0
        %1090 = vmatpush1.msra.mxu0 %v1054
        %1091 = vmatprep.subr.mxu0 0.0
        %1092 = vmatpush2.msra.mxu0 0.0
        %1093 = vmatprep.subr.mxu0 0.0
        %1094 = vmatpush2.msra.mxu0 0.0
        %1095 = vmatprep.subr.mxu0 0.0
        %1096 = vmatpush2.msra.mxu0 0.0
        %1097 = vmatprep.subr.mxu0 0.0
        %1098 = vmatpush2.msra.mxu0 0.0
        %1099 = vmatprep.subr.mxu0 0.0
        %1100 = vmatpush2.msra.mxu0 0.0
        %1101 = vmatprep.subr.mxu0 0.0
        %1102 = vmatpush2.msra.mxu0 0.0
        %1103 = vmatprep.subr.mxu0 0.0
        %1104 = vmatpush2.msra.mxu0 0.0
        %1105 = vmatprep.subr.mxu0 0.0
        %1106 = vmatpush2.msra.mxu0 0.0
        %1107 = vmatprep.subr.mxu0 0.0
        %1108 = vmatpush2.msra.mxu0 0.0
        %1109 = vmatprep.subr.mxu0 0.0
        %1110 = vmatpush2.msra.mxu0 0.0
        %1111 = vmatprep.subr.mxu0 0.0
        %1112 = vmatpush2.msra.mxu0 0.0
        %1113 = vmatprep.subr.mxu0 0.0
        %1114 = vmatpush2.msra.mxu0 0.0
        %1115 = vmatprep.subr.mxu0 0.0
        %1116 = vmatpush2.msra.mxu0 0.0
        %1117 = vmatprep.subr.mxu0 0.0
        %1118 = vmatpush2.msra.mxu0 0.0
        %1119 = vmatprep.subr.mxu0 0.0
        %1120 = vmatpush2.msra.mxu0 0.0
        %1121 = vmatprep.subr.mxu0 0.0
        %1122 = vmatpush2.msra.mxu0 0.0
        %1123 = vmatprep.mubr.f32.mxu0 0.0
        %1124 = vmatmul.mubr.f32.gmra.mxu0 %v1057
        %v1125 = vpop.f32.mrf.mxu0
        %v1126 = vadd.f32 0.0, %v1125
        %v1127 = vpop.f32.mrf.mxu0
        %1128 = vdwg.mxu0
        %1129 = vrot.lane.b32.xlu0 %v619, 64
        %v1130 = vpop.permute.xlu0 %1129
        %v1133 = vsel %vm624, %v975, 0
        %1135 = vmatprep.subr.mxu0 0.0
        %1136 = vmatpush1.msra.mxu0 0.0
        %1137 = vmatprep.subr.mxu0 0.0
        %1138 = vmatpush1.msra.mxu0 0.0
        %1139 = vmatprep.subr.mxu0 0.0
        %1140 = vmatpush1.msra.mxu0 0.0
        %1141 = vmatprep.subr.mxu0 0.0
        %1142 = vmatpush1.msra.mxu0 0.0
        %1143 = vmatprep.subr.mxu0 0.0
        %1144 = vmatpush1.msra.mxu0 0.0
        %1145 = vmatprep.subr.mxu0 0.0
        %1146 = vmatpush1.msra.mxu0 0.0
        %1147 = vmatprep.subr.mxu0 0.0
        %1148 = vmatpush1.msra.mxu0 0.0
        %1149 = vmatprep.subr.mxu0 0.0
        %1150 = vmatpush1.msra.mxu0 0.0
        %1151 = vmatprep.subr.mxu0 0.0
        %1152 = vmatpush1.msra.mxu0 0.0
        %1153 = vmatprep.subr.mxu0 0.0
        %1154 = vmatpush1.msra.mxu0 0.0
        %1155 = vmatprep.subr.mxu0 0.0
        %1156 = vmatpush1.msra.mxu0 0.0
        %1157 = vmatprep.subr.mxu0 0.0
        %1158 = vmatpush1.msra.mxu0 0.0
        %1159 = vmatprep.subr.mxu0 0.0
        %1160 = vmatpush1.msra.mxu0 0.0
        %1161 = vmatprep.subr.mxu0 0.0
        %1162 = vmatpush1.msra.mxu0 0.0
        %1163 = vmatprep.subr.mxu0 0.0
        %1164 = vmatpush1.msra.mxu0 0.0
        %1165 = vmatprep.subr.mxu0 0.0
        %1166 = vmatpush1.msra.mxu0 %v1130
        %1167 = vmatprep.subr.mxu0 0.0
        %1168 = vmatpush2.msra.mxu0 0.0
        %1169 = vmatprep.subr.mxu0 0.0
        %1170 = vmatpush2.msra.mxu0 0.0
        %1171 = vmatprep.subr.mxu0 0.0
        %1172 = vmatpush2.msra.mxu0 0.0
        %1173 = vmatprep.subr.mxu0 0.0
        %1174 = vmatpush2.msra.mxu0 0.0
        %1175 = vmatprep.subr.mxu0 0.0
        %1176 = vmatpush2.msra.mxu0 0.0
        %1177 = vmatprep.subr.mxu0 0.0
        %1178 = vmatpush2.msra.mxu0 0.0
        %1179 = vmatprep.subr.mxu0 0.0
        %1180 = vmatpush2.msra.mxu0 0.0
        %1181 = vmatprep.subr.mxu0 0.0
        %1182 = vmatpush2.msra.mxu0 0.0
        %1183 = vmatprep.subr.mxu0 0.0
        %1184 = vmatpush2.msra.mxu0 0.0
        %1185 = vmatprep.subr.mxu0 0.0
        %1186 = vmatpush2.msra.mxu0 0.0
        %1187 = vmatprep.subr.mxu0 0.0
        %1188 = vmatpush2.msra.mxu0 0.0
        %1189 = vmatprep.subr.mxu0 0.0
        %1190 = vmatpush2.msra.mxu0 0.0
        %1191 = vmatprep.subr.mxu0 0.0
        %1192 = vmatpush2.msra.mxu0 0.0
        %1193 = vmatprep.subr.mxu0 0.0
        %1194 = vmatpush2.msra.mxu0 0.0
        %1195 = vmatprep.subr.mxu0 0.0
        %1196 = vmatpush2.msra.mxu0 0.0
        %1197 = vmatprep.subr.mxu0 0.0
        %1198 = vmatpush2.msra.mxu0 0.0
        %1199 = vmatprep.mubr.f32.mxu0 0.0
        %1200 = vmatmul.mubr.f32.gmra.mxu0 %v1133
        %v1201 = vpop.f32.mrf.mxu0
        %v1202 = vadd.f32 0.0, %v1201
        %v1203 = vpop.f32.mrf.mxu0
        %1204 = vdwg.mxu0
        %1205 = vrot.lane.b32.xlu0 %v621, 64
        %v1206 = vpop.permute.xlu0 %1205
        %v1209 = vsel %vm624, %v976, 0
        %1211 = vmatprep.subr.mxu0 0.0
        %1212 = vmatpush1.msra.mxu0 0.0
        %1213 = vmatprep.subr.mxu0 0.0
        %1214 = vmatpush1.msra.mxu0 0.0
        %1215 = vmatprep.subr.mxu0 0.0
        %1216 = vmatpush1.msra.mxu0 0.0
        %1217 = vmatprep.subr.mxu0 0.0
        %1218 = vmatpush1.msra.mxu0 0.0
        %1219 = vmatprep.subr.mxu0 0.0
        %1220 = vmatpush1.msra.mxu0 0.0
        %1221 = vmatprep.subr.mxu0 0.0
        %1222 = vmatpush1.msra.mxu0 0.0
        %1223 = vmatprep.subr.mxu0 0.0
        %1224 = vmatpush1.msra.mxu0 0.0
        %1225 = vmatprep.subr.mxu0 0.0
        %1226 = vmatpush1.msra.mxu0 0.0
        %1227 = vmatprep.subr.mxu0 0.0
        %1228 = vmatpush1.msra.mxu0 0.0
        %1229 = vmatprep.subr.mxu0 0.0
        %1230 = vmatpush1.msra.mxu0 0.0
        %1231 = vmatprep.subr.mxu0 0.0
        %1232 = vmatpush1.msra.mxu0 0.0
        %1233 = vmatprep.subr.mxu0 0.0
        %1234 = vmatpush1.msra.mxu0 0.0
        %1235 = vmatprep.subr.mxu0 0.0
        %1236 = vmatpush1.msra.mxu0 0.0
        %1237 = vmatprep.subr.mxu0 0.0
        %1238 = vmatpush1.msra.mxu0 0.0
        %1239 = vmatprep.subr.mxu0 0.0
        %1240 = vmatpush1.msra.mxu0 0.0
        %1241 = vmatprep.subr.mxu0 0.0
        %1242 = vmatpush1.msra.mxu0 %v1206
        %1243 = vmatprep.subr.mxu0 0.0
        %1244 = vmatpush2.msra.mxu0 0.0
        %1245 = vmatprep.subr.mxu0 0.0
        %1246 = vmatpush2.msra.mxu0 0.0
        %1247 = vmatprep.subr.mxu0 0.0
        %1248 = vmatpush2.msra.mxu0 0.0
        %1249 = vmatprep.subr.mxu0 0.0
        %1250 = vmatpush2.msra.mxu0 0.0
        %1251 = vmatprep.subr.mxu0 0.0
        %1252 = vmatpush2.msra.mxu0 0.0
        %1253 = vmatprep.subr.mxu0 0.0
        %1254 = vmatpush2.msra.mxu0 0.0
        %1255 = vmatprep.subr.mxu0 0.0
        %1256 = vmatpush2.msra.mxu0 0.0
        %1257 = vmatprep.subr.mxu0 0.0
        %1258 = vmatpush2.msra.mxu0 0.0
        %1259 = vmatprep.subr.mxu0 0.0
        %1260 = vmatpush2.msra.mxu0 0.0
        %1261 = vmatprep.subr.mxu0 0.0
        %1262 = vmatpush2.msra.mxu0 0.0
        %1263 = vmatprep.subr.mxu0 0.0
        %1264 = vmatpush2.msra.mxu0 0.0
        %1265 = vmatprep.subr.mxu0 0.0
        %1266 = vmatpush2.msra.mxu0 0.0
        %1267 = vmatprep.subr.mxu0 0.0
        %1268 = vmatpush2.msra.mxu0 0.0
        %1269 = vmatprep.subr.mxu0 0.0
        %1270 = vmatpush2.msra.mxu0 0.0
        %1271 = vmatprep.subr.mxu0 0.0
        %1272 = vmatpush2.msra.mxu0 0.0
        %1273 = vmatprep.subr.mxu0 0.0
        %1274 = vmatpush2.msra.mxu0 0.0
        %1275 = vmatprep.mubr.f32.mxu0 0.0
        %1276 = vmatmul.mubr.f32.gmra.mxu0 %v1209
        %v1277 = vpop.f32.mrf.mxu0
        %v1278 = vadd.f32 0.0, %v1277
        %v1279 = vpop.f32.mrf.mxu0
        %1280 = vdwg.mxu0
        %1282 = vrot.lane.b32.xlu0 %v1126, 8
        %v1283 = vpop.permute.xlu0 %1282
        %1286 = vrot.lane.b32.xlu0 %v1202, 16
        %v1287 = vpop.permute.xlu0 %1286
        %1290 = vrot.lane.b32.xlu0 %v1278, 24
        %v1291 = vpop.permute.xlu0 %1290
        %v1293 = vsel %vm624, %v1050, %v1283
        %vm1294 = vcmask 130048
        %v1295 = vsel %vm1294, %v1293, %v1287
        %vm1296 = vcmask 195584
        %v1297 = vsel %vm1296, %v1295, %v1291
        %v1298 = vld [vmem:[%s6] sm:$0xff]
        %v1299 = vld [vmem:[%s6 + $0x8] sm:$0xff]
        %v1300 = vld [vmem:[%s6 + $0x10] sm:$0xff]
        %v1301 = vld [vmem:[%s6 + $0x18] sm:$0xff]
        %v1302 = vlaneseq
        %v1303 = vshrl.u32 %v1302, 7
        %v1304 = vsub.s32 0, %v1303
        %v1305 = vrot.slane %v507, %v1304
        %v1307 = vsel %vm508, %v1297, 0
        %1309 = vmatprep.subr.mxu0 0.0
        %1310 = vmatpush1.msra.mxu0 0.0
        %1311 = vmatprep.subr.mxu0 0.0
        %1312 = vmatpush1.msra.mxu0 0.0
        %1313 = vmatprep.subr.mxu0 0.0
        %1314 = vmatpush1.msra.mxu0 0.0
        %1315 = vmatprep.subr.mxu0 0.0
        %1316 = vmatpush1.msra.mxu0 0.0
        %1317 = vmatprep.subr.mxu0 0.0
        %1318 = vmatpush1.msra.mxu0 0.0
        %1319 = vmatprep.subr.mxu0 0.0
        %1320 = vmatpush1.msra.mxu0 0.0
        %1321 = vmatprep.subr.mxu0 0.0
        %1322 = vmatpush1.msra.mxu0 0.0
        %1323 = vmatprep.subr.mxu0 0.0
        %1324 = vmatpush1.msra.mxu0 0.0
        %1325 = vmatprep.subr.mxu0 0.0
        %1326 = vmatpush1.msra.mxu0 0.0
        %1327 = vmatprep.subr.mxu0 0.0
        %1328 = vmatpush1.msra.mxu0 0.0
        %1329 = vmatprep.subr.mxu0 0.0
        %1330 = vmatpush1.msra.mxu0 0.0
        %1331 = vmatprep.subr.mxu0 0.0
        %1332 = vmatpush1.msra.mxu0 0.0
        %1333 = vmatprep.subr.mxu0 0.0
        %1334 = vmatpush1.msra.mxu0 %v1301
        %1335 = vmatprep.subr.mxu0 0.0
        %1336 = vmatpush1.msra.mxu0 %v1300
        %1337 = vmatprep.subr.mxu0 0.0
        %1338 = vmatpush1.msra.mxu0 %v1299
        %1339 = vmatprep.subr.mxu0 0.0
        %1340 = vmatpush1.msra.mxu0 %v1298
        %1341 = vmatprep.subr.mxu0 0.0
        %1342 = vmatpush2.msra.mxu0 0.0
        %1343 = vmatprep.subr.mxu0 0.0
        %1344 = vmatpush2.msra.mxu0 0.0
        %1345 = vmatprep.subr.mxu0 0.0
        %1346 = vmatpush2.msra.mxu0 0.0
        %1347 = vmatprep.subr.mxu0 0.0
        %1348 = vmatpush2.msra.mxu0 0.0
        %1349 = vmatprep.subr.mxu0 0.0
        %1350 = vmatpush2.msra.mxu0 0.0
        %1351 = vmatprep.subr.mxu0 0.0
        %1352 = vmatpush2.msra.mxu0 0.0
        %1353 = vmatprep.subr.mxu0 0.0
        %1354 = vmatpush2.msra.mxu0 0.0
        %1355 = vmatprep.subr.mxu0 0.0
        %1356 = vmatpush2.msra.mxu0 0.0
        %1357 = vmatprep.subr.mxu0 0.0
        %1358 = vmatpush2.msra.mxu0 0.0
        %1359 = vmatprep.subr.mxu0 0.0
        %1360 = vmatpush2.msra.mxu0 0.0
        %1361 = vmatprep.subr.mxu0 0.0
        %1362 = vmatpush2.msra.mxu0 0.0
        %1363 = vmatprep.subr.mxu0 0.0
        %1364 = vmatpush2.msra.mxu0 0.0
        %1365 = vmatprep.subr.mxu0 0.0
        %1366 = vmatpush2.msra.mxu0 0.0
        %1367 = vmatprep.subr.mxu0 0.0
        %1368 = vmatpush2.msra.mxu0 0.0
        %1369 = vmatprep.subr.mxu0 0.0
        %1370 = vmatpush2.msra.mxu0 0.0
        %1371 = vmatprep.subr.mxu0 0.0
        %1372 = vmatpush2.msra.mxu0 0.0
        %1373 = vmatprep.mubr.f32.mxu0 0.0
        %1374 = vmatmul.mubr.f32.gmra.mxu0 %v1307
        %v1375 = vpop.f32.mrf.mxu0
        %v1376 = vadd.f32 %v1305, %v1375
        %v1377 = vpop.f32.mrf.mxu0
        %1378 = vdwg.mxu0
        %v1379 = vadd.f32 %v532, %v1376
        %v1380 = vsel %vm508, %v1379, 0.0
        %1381 = vadd.xlane.f32.xlu0 %v1380
        %v1382 = vpop.xlane.xlu0 %1381
        %v1383 = vmul.f32 %v1382, %v512
        %v1384 = vsub.f32 %v1379, %v1383
        %v1385 = vmul.f32 %v1384, %v1384
        %v1386 = vsel %vm508, %v1385, 0.0
        %1387 = vadd.xlane.f32.xlu0 %v1386
        %v1388 = vpop.xlane.xlu0 %1387
        %v1389 = vmul.f32 %v1388, %v512
        %v1390 = vadd.f32 %v1389, 1e-05
        %v1391 = vrsqrt.pop %v1390
        %v1392 = vmul.f32 %v1384, %v1391
        %v1393 = vlaneseq
        %v1394 = vshrl.u32 %v1393, 7
        %v1395 = vsub.s32 2, %v1394
        %v1396 = vrot.slane %v506, %v1395
        %v1397 = vmul.f32 %v1392, %v1396
        %v1398 = vlaneseq
        %v1399 = vshrl.u32 %v1398, 7
        %v1400 = vsub.s32 3, %v1399
        %v1401 = vrot.slane %v506, %v1400
        %v1402 = vadd.f32 %v1397, %v1401
        %v1403 = vld [vmem:[%s7] sm:$0xff]
        %v1404 = vld [vmem:[%s7 + $0x8] sm:$0xff]
        %v1405 = vld [vmem:[%s7 + $0x10] sm:$0xff]
        %v1406 = vld [vmem:[%s7 + $0x18] sm:$0xff]
        %v1408 = vsel %vm508, %v1402, 0
        %1410 = vmatprep.subr.mxu0 0.0
        %1411 = vmatpush1.msra.mxu0 0.0
        %1412 = vmatprep.subr.mxu0 0.0
        %1413 = vmatpush1.msra.mxu0 0.0
        %1414 = vmatprep.subr.mxu0 0.0
        %1415 = vmatpush1.msra.mxu0 0.0
        %1416 = vmatprep.subr.mxu0 0.0
        %1417 = vmatpush1.msra.mxu0 0.0
        %1418 = vmatprep.subr.mxu0 0.0
        %1419 = vmatpush1.msra.mxu0 0.0
        %1420 = vmatprep.subr.mxu0 0.0
        %1421 = vmatpush1.msra.mxu0 0.0
        %1422 = vmatprep.subr.mxu0 0.0
        %1423 = vmatpush1.msra.mxu0 0.0
        %1424 = vmatprep.subr.mxu0 0.0
        %1425 = vmatpush1.msra.mxu0 0.0
        %1426 = vmatprep.subr.mxu0 0.0
        %1427 = vmatpush1.msra.mxu0 0.0
        %1428 = vmatprep.subr.mxu0 0.0
        %1429 = vmatpush1.msra.mxu0 0.0
        %1430 = vmatprep.subr.mxu0 0.0
        %1431 = vmatpush1.msra.mxu0 0.0
        %1432 = vmatprep.subr.mxu0 0.0
        %1433 = vmatpush1.msra.mxu0 0.0
        %1434 = vmatprep.subr.mxu0 0.0
        %1435 = vmatpush1.msra.mxu0 %v1406
        %1436 = vmatprep.subr.mxu0 0.0
        %1437 = vmatpush1.msra.mxu0 %v1405
        %1438 = vmatprep.subr.mxu0 0.0
        %1439 = vmatpush1.msra.mxu0 %v1404
        %1440 = vmatprep.subr.mxu0 0.0
        %1441 = vmatpush1.msra.mxu0 %v1403
        %1442 = vmatprep.subr.mxu0 0.0
        %1443 = vmatpush2.msra.mxu0 0.0
        %1444 = vmatprep.subr.mxu0 0.0
        %1445 = vmatpush2.msra.mxu0 0.0
        %1446 = vmatprep.subr.mxu0 0.0
        %1447 = vmatpush2.msra.mxu0 0.0
        %1448 = vmatprep.subr.mxu0 0.0
        %1449 = vmatpush2.msra.mxu0 0.0
        %1450 = vmatprep.subr.mxu0 0.0
        %1451 = vmatpush2.msra.mxu0 0.0
        %1452 = vmatprep.subr.mxu0 0.0
        %1453 = vmatpush2.msra.mxu0 0.0
        %1454 = vmatprep.subr.mxu0 0.0
        %1455 = vmatpush2.msra.mxu0 0.0
        %1456 = vmatprep.subr.mxu0 0.0
        %1457 = vmatpush2.msra.mxu0 0.0
        %1458 = vmatprep.subr.mxu0 0.0
        %1459 = vmatpush2.msra.mxu0 0.0
        %1460 = vmatprep.subr.mxu0 0.0
        %1461 = vmatpush2.msra.mxu0 0.0
        %1462 = vmatprep.subr.mxu0 0.0
        %1463 = vmatpush2.msra.mxu0 0.0
        %1464 = vmatprep.subr.mxu0 0.0
        %1465 = vmatpush2.msra.mxu0 0.0
        %1466 = vmatprep.subr.mxu0 0.0
        %1467 = vmatpush2.msra.mxu0 0.0
        %1468 = vmatprep.subr.mxu0 0.0
        %1469 = vmatpush2.msra.mxu0 0.0
        %1470 = vmatprep.subr.mxu0 0.0
        %1471 = vmatpush2.msra.mxu0 0.0
        %1472 = vmatprep.subr.mxu0 0.0
        %1473 = vmatpush2.msra.mxu0 0.0
        %1474 = vmatprep.mubr.f32.mxu0 0.0
        %1475 = vmatmul.mubr.f32.gmra.mxu0 %v1408
        %v1476 = vpop.f32.mrf.mxu0
        %v1477 = vadd.f32 0.0, %v1476
        %v1478 = vpop.f32.mrf.mxu0
        %1479 = vdwg.mxu0
        %v1480 = vld [vmem:[%s8] sm:$0xff]
        %v1481 = vld [vmem:[%s8 + $0x8] sm:$0xff]
        %v1482 = vld [vmem:[%s8 + $0x10] sm:$0xff]
        %v1483 = vld [vmem:[%s8 + $0x18] sm:$0xff]
        %v1485 = vsel %vm508, %v504, 0
        %v1488 = vsel %vm508, %v505, 0
        %1490 = vmatprep.subr.mxu0 0.0
        %1491 = vmatpush1.msra.mxu0 0.0
        %1492 = vmatprep.subr.mxu0 0.0
        %1493 = vmatpush1.msra.mxu0 0.0
        %1494 = vmatprep.subr.mxu0 0.0
        %1495 = vmatpush1.msra.mxu0 0.0
        %1496 = vmatprep.subr.mxu0 0.0
        %1497 = vmatpush1.msra.mxu0 0.0
        %1498 = vmatprep.subr.mxu0 0.0
        %1499 = vmatpush1.msra.mxu0 0.0
        %1500 = vmatprep.subr.mxu0 0.0
        %1501 = vmatpush1.msra.mxu0 0.0
        %1502 = vmatprep.subr.mxu0 0.0
        %1503 = vmatpush1.msra.mxu0 0.0
        %1504 = vmatprep.subr.mxu0 0.0
        %1505 = vmatpush1.msra.mxu0 0.0
        %1506 = vmatprep.subr.mxu0 0.0
        %1507 = vmatpush1.msra.mxu0 0.0
        %1508 = vmatprep.subr.mxu0 0.0
        %1509 = vmatpush1.msra.mxu0 0.0
        %1510 = vmatprep.subr.mxu0 0.0
        %1511 = vmatpush1.msra.mxu0 0.0
        %1512 = vmatprep.subr.mxu0 0.0
        %1513 = vmatpush1.msra.mxu0 0.0
        %1514 = vmatprep.subr.mxu0 0.0
        %1515 = vmatpush1.msra.mxu0 %v1483
        %1516 = vmatprep.subr.mxu0 0.0
        %1517 = vmatpush1.msra.mxu0 %v1482
        %1518 = vmatprep.subr.mxu0 0.0
        %1519 = vmatpush1.msra.mxu0 %v1481
        %1520 = vmatprep.subr.mxu0 0.0
        %1521 = vmatpush1.msra.mxu0 %v1480
        %1522 = vmatprep.subr.mxu0 0.0
        %1523 = vmatpush2.msra.mxu0 0.0
        %1524 = vmatprep.subr.mxu0 0.0
        %1525 = vmatpush2.msra.mxu0 0.0
        %1526 = vmatprep.subr.mxu0 0.0
        %1527 = vmatpush2.msra.mxu0 0.0
        %1528 = vmatprep.subr.mxu0 0.0
        %1529 = vmatpush2.msra.mxu0 0.0
        %1530 = vmatprep.subr.mxu0 0.0
        %1531 = vmatpush2.msra.mxu0 0.0
        %1532 = vmatprep.subr.mxu0 0.0
        %1533 = vmatpush2.msra.mxu0 0.0
        %1534 = vmatprep.subr.mxu0 0.0
        %1535 = vmatpush2.msra.mxu0 0.0
        %1536 = vmatprep.subr.mxu0 0.0
        %1537 = vmatpush2.msra.mxu0 0.0
        %1538 = vmatprep.subr.mxu0 0.0
        %1539 = vmatpush2.msra.mxu0 0.0
        %1540 = vmatprep.subr.mxu0 0.0
        %1541 = vmatpush2.msra.mxu0 0.0
        %1542 = vmatprep.subr.mxu0 0.0
        %1543 = vmatpush2.msra.mxu0 0.0
        %1544 = vmatprep.subr.mxu0 0.0
        %1545 = vmatpush2.msra.mxu0 0.0
        %1546 = vmatprep.subr.mxu0 0.0
        %1547 = vmatpush2.msra.mxu0 0.0
        %1548 = vmatprep.subr.mxu0 0.0
        %1549 = vmatpush2.msra.mxu0 0.0
        %1550 = vmatprep.subr.mxu0 0.0
        %1551 = vmatpush2.msra.mxu0 0.0
        %1552 = vmatprep.subr.mxu0 0.0
        %1553 = vmatpush2.msra.mxu0 0.0
        %1554 = vmatprep.mubr.f32.mxu0 0.0
        %1555 = vmatmul.mubr.f32.gmra.mxu0 %v1485
        %v1556 = vpop.f32.mrf.mxu0
        %v1557 = vadd.f32 0.0, %v1556
        %v1558 = vpop.f32.mrf.mxu0
        %1559 = vmatprep.mubr.f32.mxu0 0.0
        %1560 = vmatmul.mubr.f32.gmra.mxu0 %v1488
        %v1561 = vpop.f32.mrf.mxu0
        %v1562 = vadd.f32 0.0, %v1561
        %v1563 = vpop.f32.mrf.mxu0
        %1564 = vdwg.mxu0
        %1566 = vrot.lane.b32.xlu0 %v1477, 120
        %v1567 = vpop.permute.xlu0 %1566
        %1568 = vrot.lane.b32.xlu0 %v1477, 112
        %v1569 = vpop.permute.xlu0 %1568
        %1570 = vrot.lane.b32.xlu0 %v1477, 104
        %v1571 = vpop.permute.xlu0 %1570
        %1574 = vrot.lane.b32.xlu0 %v1557, 120
        %v1575 = vpop.permute.xlu0 %1574
        %1576 = vrot.lane.b32.xlu0 %v1562, 120
        %v1577 = vpop.permute.xlu0 %1576
        %1578 = vrot.lane.b32.xlu0 %v1557, 112
        %v1579 = vpop.permute.xlu0 %1578
        %1580 = vrot.lane.b32.xlu0 %v1562, 112
        %v1581 = vpop.permute.xlu0 %1580
        %1582 = vrot.lane.b32.xlu0 %v1557, 104
        %v1583 = vpop.permute.xlu0 %1582
        %1584 = vrot.lane.b32.xlu0 %v1562, 104
        %v1585 = vpop.permute.xlu0 %1584
        %v1586 = vsel %vm624, %v1477, 0
        %v1588 = vsel %vm624, %v1557, 0
        %v1590 = vsel %vm624, %v1562, 0
        %1592 = vmatprep.subr.mxu0 0.0
        %1593 = vmatpush1.xpose.msra.mxu0 0.0
        %1594 = vmatprep.subr.mxu0 0.0
        %1595 = vmatpush1.xpose.msra.mxu0 0.0
        %1596 = vmatprep.subr.mxu0 0.0
        %1597 = vmatpush1.xpose.msra.mxu0 0.0
        %1598 = vmatprep.subr.mxu0 0.0
        %1599 = vmatpush1.xpose.msra.mxu0 0.0
        %1600 = vmatprep.subr.mxu0 0.0
        %1601 = vmatpush1.xpose.msra.mxu0 0.0
        %1602 = vmatprep.subr.mxu0 0.0
        %1603 = vmatpush1.xpose.msra.mxu0 0.0
        %1604 = vmatprep.subr.mxu0 0.0
        %1605 = vmatpush1.xpose.msra.mxu0 0.0
        %1606 = vmatprep.subr.mxu0 0.0
        %1607 = vmatpush1.xpose.msra.mxu0 0.0
        %1608 = vmatprep.subr.mxu0 0.0
        %1609 = vmatpush1.xpose.msra.mxu0 0.0
        %1610 = vmatprep.subr.mxu0 0.0
        %1611 = vmatpush1.xpose.msra.mxu0 0.0
        %1612 = vmatprep.subr.mxu0 0.0
        %1613 = vmatpush1.xpose.msra.mxu0 0.0
        %1614 = vmatprep.subr.mxu0 0.0
        %1615 = vmatpush1.xpose.msra.mxu0 0.0
        %1616 = vmatprep.subr.mxu0 0.0
        %1617 = vmatpush1.xpose.msra.mxu0 0.0
        %1618 = vmatprep.subr.mxu0 0.0
        %1619 = vmatpush1.xpose.msra.mxu0 0.0
        %1620 = vmatprep.subr.mxu0 0.0
        %1621 = vmatpush1.xpose.msra.mxu0 %v1590
        %1622 = vmatprep.subr.mxu0 0.0
        %1623 = vmatpush1.xpose.msra.mxu0 %v1588
        %1624 = vmatprep.subr.mxu0 0.0
        %1625 = vmatpush2.xpose.msra.mxu0 0.0
        %1626 = vmatprep.subr.mxu0 0.0
        %1627 = vmatpush2.xpose.msra.mxu0 0.0
        %1628 = vmatprep.subr.mxu0 0.0
        %1629 = vmatpush2.xpose.msra.mxu0 0.0
        %1630 = vmatprep.subr.mxu0 0.0
        %1631 = vmatpush2.xpose.msra.mxu0 0.0
        %1632 = vmatprep.subr.mxu0 0.0
        %1633 = vmatpush2.xpose.msra.mxu0 0.0
        %1634 = vmatprep.subr.mxu0 0.0
        %1635 = vmatpush2.xpose.msra.mxu0 0.0
        %1636 = vmatprep.subr.mxu0 0.0
        %1637 = vmatpush2.xpose.msra.mxu0 0.0
        %1638 = vmatprep.subr.mxu0 0.0
        %1639 = vmatpush2.xpose.msra.mxu0 0.0
        %1640 = vmatprep.subr.mxu0 0.0
        %1641 = vmatpush2.xpose.msra.mxu0 0.0
        %1642 = vmatprep.subr.mxu0 0.0
        %1643 = vmatpush2.xpose.msra.mxu0 0.0
        %1644 = vmatprep.subr.mxu0 0.0
        %1645 = vmatpush2.xpose.msra.mxu0 0.0
        %1646 = vmatprep.subr.mxu0 0.0
        %1647 = vmatpush2.xpose.msra.mxu0 0.0
        %1648 = vmatprep.subr.mxu0 0.0
        %1649 = vmatpush2.xpose.msra.mxu0 0.0
        %1650 = vmatprep.subr.mxu0 0.0
        %1651 = vmatpush2.xpose.msra.mxu0 0.0
        %1652 = vmatprep.subr.mxu0 0.0
        %1653 = vmatpush2.xpose.msra.mxu0 0.0
        %1654 = vmatprep.subr.mxu0 0.0
        %1655 = vmatpush2.xpose.msra.mxu0 0.0
        %1656 = vmatprep.mubr.f32.mxu0 0.0
        %1657 = vmatmul.mubr.f32.gmra.mxu0 %v1586
        %v1658 = vpop.f32.mrf.mxu0
        %v1659 = vadd.f32 0.0, %v1658
        %v1660 = vpop.f32.mrf.mxu0
        %1661 = vdwg.mxu0
        %v1662 = vsel %vm624, %v1567, 0
        %v1664 = vsel %vm624, %v1575, 0
        %v1666 = vsel %vm624, %v1577, 0
        %1668 = vmatprep.subr.mxu0 0.0
        %1669 = vmatpush1.xpose.msra.mxu0 0.0
        %1670 = vmatprep.subr.mxu0 0.0
        %1671 = vmatpush1.xpose.msra.mxu0 0.0
        %1672 = vmatprep.subr.mxu0 0.0
        %1673 = vmatpush1.xpose.msra.mxu0 0.0
        %1674 = vmatprep.subr.mxu0 0.0
        %1675 = vmatpush1.xpose.msra.mxu0 0.0
        %1676 = vmatprep.subr.mxu0 0.0
        %1677 = vmatpush1.xpose.msra.mxu0 0.0
        %1678 = vmatprep.subr.mxu0 0.0
        %1679 = vmatpush1.xpose.msra.mxu0 0.0
        %1680 = vmatprep.subr.mxu0 0.0
        %1681 = vmatpush1.xpose.msra.mxu0 0.0
        %1682 = vmatprep.subr.mxu0 0.0
        %1683 = vmatpush1.xpose.msra.mxu0 0.0
        %1684 = vmatprep.subr.mxu0 0.0
        %1685 = vmatpush1.xpose.msra.mxu0 0.0
        %1686 = vmatprep.subr.mxu0 0.0
        %1687 = vmatpush1.xpose.msra.mxu0 0.0
        %1688 = vmatprep.subr.mxu0 0.0
        %1689 = vmatpush1.xpose.msra.mxu0 0.0
        %1690 = vmatprep.subr.mxu0 0.0
        %1691 = vmatpush1.xpose.msra.mxu0 0.0
        %1692 = vmatprep.subr.mxu0 0.0
        %1693 = vmatpush1.xpose.msra.mxu0 0.0
        %1694 = vmatprep.subr.mxu0 0.0
        %1695 = vmatpush1.xpose.msra.mxu0 0.0
        %1696 = vmatprep.subr.mxu0 0.0
        %1697 = vmatpush1.xpose.msra.mxu0 %v1666
        %1698 = vmatprep.subr.mxu0 0.0
        %1699 = vmatpush1.xpose.msra.mxu0 %v1664
        %1700 = vmatprep.subr.mxu0 0.0
        %1701 = vmatpush2.xpose.msra.mxu0 0.0
        %1702 = vmatprep.subr.mxu0 0.0
        %1703 = vmatpush2.xpose.msra.mxu0 0.0
        %1704 = vmatprep.subr.mxu0 0.0
        %1705 = vmatpush2.xpose.msra.mxu0 0.0
        %1706 = vmatprep.subr.mxu0 0.0
        %1707 = vmatpush2.xpose.msra.mxu0 0.0
        %1708 = vmatprep.subr.mxu0 0.0
        %1709 = vmatpush2.xpose.msra.mxu0 0.0
        %1710 = vmatprep.subr.mxu0 0.0
        %1711 = vmatpush2.xpose.msra.mxu0 0.0
        %1712 = vmatprep.subr.mxu0 0.0
        %1713 = vmatpush2.xpose.msra.mxu0 0.0
        %1714 = vmatprep.subr.mxu0 0.0
        %1715 = vmatpush2.xpose.msra.mxu0 0.0
        %1716 = vmatprep.subr.mxu0 0.0
        %1717 = vmatpush2.xpose.msra.mxu0 0.0
        %1718 = vmatprep.subr.mxu0 0.0
        %1719 = vmatpush2.xpose.msra.mxu0 0.0
        %1720 = vmatprep.subr.mxu0 0.0
        %1721 = vmatpush2.xpose.msra.mxu0 0.0
        %1722 = vmatprep.subr.mxu0 0.0
        %1723 = vmatpush2.xpose.msra.mxu0 0.0
        %1724 = vmatprep.subr.mxu0 0.0
        %1725 = vmatpush2.xpose.msra.mxu0 0.0
        %1726 = vmatprep.subr.mxu0 0.0
        %1727 = vmatpush2.xpose.msra.mxu0 0.0
        %1728 = vmatprep.subr.mxu0 0.0
        %1729 = vmatpush2.xpose.msra.mxu0 0.0
        %1730 = vmatprep.subr.mxu0 0.0
        %1731 = vmatpush2.xpose.msra.mxu0 0.0
        %1732 = vmatprep.mubr.f32.mxu0 0.0
        %1733 = vmatmul.mubr.f32.gmra.mxu0 %v1662
        %v1734 = vpop.f32.mrf.mxu0
        %v1735 = vadd.f32 0.0, %v1734
        %v1736 = vpop.f32.mrf.mxu0
        %1737 = vdwg.mxu0
        %v1738 = vsel %vm624, %v1569, 0
        %v1740 = vsel %vm624, %v1579, 0
        %v1742 = vsel %vm624, %v1581, 0
        %1744 = vmatprep.subr.mxu0 0.0
        %1745 = vmatpush1.xpose.msra.mxu0 0.0
        %1746 = vmatprep.subr.mxu0 0.0
        %1747 = vmatpush1.xpose.msra.mxu0 0.0
        %1748 = vmatprep.subr.mxu0 0.0
        %1749 = vmatpush1.xpose.msra.mxu0 0.0
        %1750 = vmatprep.subr.mxu0 0.0
        %1751 = vmatpush1.xpose.msra.mxu0 0.0
        %1752 = vmatprep.subr.mxu0 0.0
        %1753 = vmatpush1.xpose.msra.mxu0 0.0
        %1754 = vmatprep.subr.mxu0 0.0
        %1755 = vmatpush1.xpose.msra.mxu0 0.0
        %1756 = vmatprep.subr.mxu0 0.0
        %1757 = vmatpush1.xpose.msra.mxu0 0.0
        %1758 = vmatprep.subr.mxu0 0.0
        %1759 = vmatpush1.xpose.msra.mxu0 0.0
        %1760 = vmatprep.subr.mxu0 0.0
        %1761 = vmatpush1.xpose.msra.mxu0 0.0
        %1762 = vmatprep.subr.mxu0 0.0
        %1763 = vmatpush1.xpose.msra.mxu0 0.0
        %1764 = vmatprep.subr.mxu0 0.0
        %1765 = vmatpush1.xpose.msra.mxu0 0.0
        %1766 = vmatprep.subr.mxu0 0.0
        %1767 = vmatpush1.xpose.msra.mxu0 0.0
        %1768 = vmatprep.subr.mxu0 0.0
        %1769 = vmatpush1.xpose.msra.mxu0 0.0
        %1770 = vmatprep.subr.mxu0 0.0
        %1771 = vmatpush1.xpose.msra.mxu0 0.0
        %1772 = vmatprep.subr.mxu0 0.0
        %1773 = vmatpush1.xpose.msra.mxu0 %v1742
        %1774 = vmatprep.subr.mxu0 0.0
        %1775 = vmatpush1.xpose.msra.mxu0 %v1740
        %1776 = vmatprep.subr.mxu0 0.0
        %1777 = vmatpush2.xpose.msra.mxu0 0.0
        %1778 = vmatprep.subr.mxu0 0.0
        %1779 = vmatpush2.xpose.msra.mxu0 0.0
        %1780 = vmatprep.subr.mxu0 0.0
        %1781 = vmatpush2.xpose.msra.mxu0 0.0
        %1782 = vmatprep.subr.mxu0 0.0
        %1783 = vmatpush2.xpose.msra.mxu0 0.0
        %1784 = vmatprep.subr.mxu0 0.0
        %1785 = vmatpush2.xpose.msra.mxu0 0.0
        %1786 = vmatprep.subr.mxu0 0.0
        %1787 = vmatpush2.xpose.msra.mxu0 0.0
        %1788 = vmatprep.subr.mxu0 0.0
        %1789 = vmatpush2.xpose.msra.mxu0 0.0
        %1790 = vmatprep.subr.mxu0 0.0
        %1791 = vmatpush2.xpose.msra.mxu0 0.0
        %1792 = vmatprep.subr.mxu0 0.0
        %1793 = vmatpush2.xpose.msra.mxu0 0.0
        %1794 = vmatprep.subr.mxu0 0.0
        %1795 = vmatpush2.xpose.msra.mxu0 0.0
        %1796 = vmatprep.subr.mxu0 0.0
        %1797 = vmatpush2.xpose.msra.mxu0 0.0
        %1798 = vmatprep.subr.mxu0 0.0
        %1799 = vmatpush2.xpose.msra.mxu0 0.0
        %1800 = vmatprep.subr.mxu0 0.0
        %1801 = vmatpush2.xpose.msra.mxu0 0.0
        %1802 = vmatprep.subr.mxu0 0.0
        %1803 = vmatpush2.xpose.msra.mxu0 0.0
        %1804 = vmatprep.subr.mxu0 0.0
        %1805 = vmatpush2.xpose.msra.mxu0 0.0
        %1806 = vmatprep.subr.mxu0 0.0
        %1807 = vmatpush2.xpose.msra.mxu0 0.0
        %1808 = vmatprep.mubr.f32.mxu0 0.0
        %1809 = vmatmul.mubr.f32.gmra.mxu0 %v1738
        %v1810 = vpop.f32.mrf.mxu0
        %v1811 = vadd.f32 0.0, %v1810
        %v1812 = vpop.f32.mrf.mxu0
        %1813 = vdwg.mxu0
        %v1814 = vsel %vm624, %v1571, 0
        %v1816 = vsel %vm624, %v1583, 0
        %v1818 = vsel %vm624, %v1585, 0
        %1820 = vmatprep.subr.mxu0 0.0
        %1821 = vmatpush1.xpose.msra.mxu0 0.0
        %1822 = vmatprep.subr.mxu0 0.0
        %1823 = vmatpush1.xpose.msra.mxu0 0.0
        %1824 = vmatprep.subr.mxu0 0.0
        %1825 = vmatpush1.xpose.msra.mxu0 0.0
        %1826 = vmatprep.subr.mxu0 0.0
        %1827 = vmatpush1.xpose.msra.mxu0 0.0
        %1828 = vmatprep.subr.mxu0 0.0
        %1829 = vmatpush1.xpose.msra.mxu0 0.0
        %1830 = vmatprep.subr.mxu0 0.0
        %1831 = vmatpush1.xpose.msra.mxu0 0.0
        %1832 = vmatprep.subr.mxu0 0.0
        %1833 = vmatpush1.xpose.msra.mxu0 0.0
        %1834 = vmatprep.subr.mxu0 0.0
        %1835 = vmatpush1.xpose.msra.mxu0 0.0
        %1836 = vmatprep.subr.mxu0 0.0
        %1837 = vmatpush1.xpose.msra.mxu0 0.0
        %1838 = vmatprep.subr.mxu0 0.0
        %1839 = vmatpush1.xpose.msra.mxu0 0.0
        %1840 = vmatprep.subr.mxu0 0.0
        %1841 = vmatpush1.xpose.msra.mxu0 0.0
        %1842 = vmatprep.subr.mxu0 0.0
        %1843 = vmatpush1.xpose.msra.mxu0 0.0
        %1844 = vmatprep.subr.mxu0 0.0
        %1845 = vmatpush1.xpose.msra.mxu0 0.0
        %1846 = vmatprep.subr.mxu0 0.0
        %1847 = vmatpush1.xpose.msra.mxu0 0.0
        %1848 = vmatprep.subr.mxu0 0.0
        %1849 = vmatpush1.xpose.msra.mxu0 %v1818
        %1850 = vmatprep.subr.mxu0 0.0
        %1851 = vmatpush1.xpose.msra.mxu0 %v1816
        %1852 = vmatprep.subr.mxu0 0.0
        %1853 = vmatpush2.xpose.msra.mxu0 0.0
        %1854 = vmatprep.subr.mxu0 0.0
        %1855 = vmatpush2.xpose.msra.mxu0 0.0
        %1856 = vmatprep.subr.mxu0 0.0
        %1857 = vmatpush2.xpose.msra.mxu0 0.0
        %1858 = vmatprep.subr.mxu0 0.0
        %1859 = vmatpush2.xpose.msra.mxu0 0.0
        %1860 = vmatprep.subr.mxu0 0.0
        %1861 = vmatpush2.xpose.msra.mxu0 0.0
        %1862 = vmatprep.subr.mxu0 0.0
        %1863 = vmatpush2.xpose.msra.mxu0 0.0
        %1864 = vmatprep.subr.mxu0 0.0
        %1865 = vmatpush2.xpose.msra.mxu0 0.0
        %1866 = vmatprep.subr.mxu0 0.0
        %1867 = vmatpush2.xpose.msra.mxu0 0.0
        %1868 = vmatprep.subr.mxu0 0.0
        %1869 = vmatpush2.xpose.msra.mxu0 0.0
        %1870 = vmatprep.subr.mxu0 0.0
        %1871 = vmatpush2.xpose.msra.mxu0 0.0
        %1872 = vmatprep.subr.mxu0 0.0
        %1873 = vmatpush2.xpose.msra.mxu0 0.0
        %1874 = vmatprep.subr.mxu0 0.0
        %1875 = vmatpush2.xpose.msra.mxu0 0.0
        %1876 = vmatprep.subr.mxu0 0.0
        %1877 = vmatpush2.xpose.msra.mxu0 0.0
        %1878 = vmatprep.subr.mxu0 0.0
        %1879 = vmatpush2.xpose.msra.mxu0 0.0
        %1880 = vmatprep.subr.mxu0 0.0
        %1881 = vmatpush2.xpose.msra.mxu0 0.0
        %1882 = vmatprep.subr.mxu0 0.0
        %1883 = vmatpush2.xpose.msra.mxu0 0.0
        %1884 = vmatprep.mubr.f32.mxu0 0.0
        %1885 = vmatmul.mubr.f32.gmra.mxu0 %v1814
        %v1886 = vpop.f32.mrf.mxu0
        %v1887 = vadd.f32 0.0, %v1886
        %v1888 = vpop.f32.mrf.mxu0
        %1889 = vdwg.mxu0
        %vm1890 = vcmask 97280
        %v1891 = vsel %vm1890, %v1659, -inf
        %1892 = vmax.xlane.f32.xlu0 %v1891
        %v1893 = vpop.xlane.xlu0 %1892
        %v1894 = vsel %vm1890, %v1735, -inf
        %1895 = vmax.xlane.f32.xlu0 %v1894
        %v1896 = vpop.xlane.xlu0 %1895
        %v1897 = vsel %vm1890, %v1811, -inf
        %1898 = vmax.xlane.f32.xlu0 %v1897
        %v1899 = vpop.xlane.xlu0 %1898
        %v1900 = vsel %vm1890, %v1887, -inf
        %1901 = vmax.xlane.f32.xlu0 %v1900
        %v1902 = vpop.xlane.xlu0 %1901
        %v1903 = vsub.f32 %v1659, %v1893
        %v1904 = vsub.f32 %v1735, %v1896
        %v1905 = vsub.f32 %v1811, %v1899
        %v1906 = vsub.f32 %v1887, %v1902
        %v1907 = vmul.f32 %v1903, 1.442695
        %v1908 = vpow.pop %v1907
        %v1909 = vmul.f32 %v1904, 1.442695
        %v1910 = vpow.pop %v1909
        %v1911 = vmul.f32 %v1905, 1.442695
        %v1912 = vpow.pop %v1911
        %v1913 = vmul.f32 %v1906, 1.442695
        %v1914 = vpow.pop %v1913
        %v1915 = vsel %vm1890, %v1908, 0.0
        %1916 = vadd.xlane.f32.xlu0 %v1915
        %v1917 = vpop.xlane.xlu0 %1916
        %v1918 = vsel %vm1890, %v1910, 0.0
        %1919 = vadd.xlane.f32.xlu0 %v1918
        %v1920 = vpop.xlane.xlu0 %1919
        %v1921 = vsel %vm1890, %v1912, 0.0
        %1922 = vadd.xlane.f32.xlu0 %v1921
        %v1923 = vpop.xlane.xlu0 %1922
        %v1924 = vsel %vm1890, %v1914, 0.0
        %1925 = vadd.xlane.f32.xlu0 %v1924
        %v1926 = vpop.xlane.xlu0 %1925
        %v1927 = vrcp.pop %v1917
        %v1928 = vrcp.pop %v1920
        %v1929 = vrcp.pop %v1923
        %v1930 = vrcp.pop %v1926
        %v1931 = vmul.f32 %v1908, %v1927
        %v1932 = vmul.f32 %v1910, %v1928
        %v1933 = vmul.f32 %v1912, %v1929
        %v1934 = vmul.f32 %v1914, %v1930
        %1935 = vrot.lane.b32.xlu0 %v1557, 96
        %v1936 = vpop.permute.xlu0 %1935
        %1937 = vrot.lane.b32.xlu0 %v1562, 96
        %v1938 = vpop.permute.xlu0 %1937
        %v1941 = vsel %vm1890, %v1931, 0
        %vm1943 = vcmask 1043456
        %v1944 = vsel %vm1943, %v1938, 0
        %1946 = vmatprep.subr.mxu0 0.0
        %1947 = vmatpush1.msra.mxu0 0.0
        %1948 = vmatprep.subr.mxu0 0.0
        %1949 = vmatpush1.msra.mxu0 0.0
        %1950 = vmatprep.subr.mxu0 0.0
        %1951 = vmatpush1.msra.mxu0 0.0
        %1952 = vmatprep.subr.mxu0 0.0
        %1953 = vmatpush1.msra.mxu0 0.0
        %1954 = vmatprep.subr.mxu0 0.0
        %1955 = vmatpush1.msra.mxu0 0.0
        %1956 = vmatprep.subr.mxu0 0.0
        %1957 = vmatpush1.msra.mxu0 0.0
        %1958 = vmatprep.subr.mxu0 0.0
        %1959 = vmatpush1.msra.mxu0 0.0
        %1960 = vmatprep.subr.mxu0 0.0
        %1961 = vmatpush1.msra.mxu0 0.0
        %1962 = vmatprep.subr.mxu0 0.0
        %1963 = vmatpush1.msra.mxu0 0.0
        %1964 = vmatprep.subr.mxu0 0.0
        %1965 = vmatpush1.msra.mxu0 0.0
        %1966 = vmatprep.subr.mxu0 0.0
        %1967 = vmatpush1.msra.mxu0 0.0
        %1968 = vmatprep.subr.mxu0 0.0
        %1969 = vmatpush1.msra.mxu0 0.0
        %1970 = vmatprep.subr.mxu0 0.0
        %1971 = vmatpush1.msra.mxu0 0.0
        %1972 = vmatprep.subr.mxu0 0.0
        %1973 = vmatpush1.msra.mxu0 0.0
        %1974 = vmatprep.subr.mxu0 0.0
        %1975 = vmatpush1.msra.mxu0 %v1944
        %1976 = vmatprep.subr.mxu0 0.0
        %1977 = vmatpush1.msra.mxu0 %v1936
        %1978 = vmatprep.subr.mxu0 0.0
        %1979 = vmatpush2.msra.mxu0 0.0
        %1980 = vmatprep.subr.mxu0 0.0
        %1981 = vmatpush2.msra.mxu0 0.0
        %1982 = vmatprep.subr.mxu0 0.0
        %1983 = vmatpush2.msra.mxu0 0.0
        %1984 = vmatprep.subr.mxu0 0.0
        %1985 = vmatpush2.msra.mxu0 0.0
        %1986 = vmatprep.subr.mxu0 0.0
        %1987 = vmatpush2.msra.mxu0 0.0
        %1988 = vmatprep.subr.mxu0 0.0
        %1989 = vmatpush2.msra.mxu0 0.0
        %1990 = vmatprep.subr.mxu0 0.0
        %1991 = vmatpush2.msra.mxu0 0.0
        %1992 = vmatprep.subr.mxu0 0.0
        %1993 = vmatpush2.msra.mxu0 0.0
        %1994 = vmatprep.subr.mxu0 0.0
        %1995 = vmatpush2.msra.mxu0 0.0
        %1996 = vmatprep.subr.mxu0 0.0
        %1997 = vmatpush2.msra.mxu0 0.0
        %1998 = vmatprep.subr.mxu0 0.0
        %1999 = vmatpush2.msra.mxu0 0.0
        %2000 = vmatprep.subr.mxu0 0.0
        %2001 = vmatpush2.msra.mxu0 0.0
        %2002 = vmatprep.subr.mxu0 0.0
        %2003 = vmatpush2.msra.mxu0 0.0
        %2004 = vmatprep.subr.mxu0 0.0
        %2005 = vmatpush2.msra.mxu0 0.0
        %2006 = vmatprep.subr.mxu0 0.0
        %2007 = vmatpush2.msra.mxu0 0.0
        %2008 = vmatprep.subr.mxu0 0.0
        %2009 = vmatpush2.msra.mxu0 0.0
        %2010 = vmatprep.mubr.f32.mxu0 0.0
        %2011 = vmatmul.mubr.f32.gmra.mxu0 %v1941
        %v2012 = vpop.f32.mrf.mxu0
        %v2013 = vadd.f32 0.0, %v2012
        %v2014 = vpop.f32.mrf.mxu0
        %2015 = vdwg.mxu0
        %2016 = vrot.lane.b32.xlu0 %v1575, 96
        %v2017 = vpop.permute.xlu0 %2016
        %2018 = vrot.lane.b32.xlu0 %v1577, 96
        %v2019 = vpop.permute.xlu0 %2018
        %v2022 = vsel %vm1890, %v1932, 0
        %v2024 = vsel %vm1943, %v2019, 0
        %2026 = vmatprep.subr.mxu0 0.0
        %2027 = vmatpush1.msra.mxu0 0.0
        %2028 = vmatprep.subr.mxu0 0.0
        %2029 = vmatpush1.msra.mxu0 0.0
        %2030 = vmatprep.subr.mxu0 0.0
        %2031 = vmatpush1.msra.mxu0 0.0
        %2032 = vmatprep.subr.mxu0 0.0
        %2033 = vmatpush1.msra.mxu0 0.0
        %2034 = vmatprep.subr.mxu0 0.0
        %2035 = vmatpush1.msra.mxu0 0.0
        %2036 = vmatprep.subr.mxu0 0.0
        %2037 = vmatpush1.msra.mxu0 0.0
        %2038 = vmatprep.subr.mxu0 0.0
        %2039 = vmatpush1.msra.mxu0 0.0
        %2040 = vmatprep.subr.mxu0 0.0
        %2041 = vmatpush1.msra.mxu0 0.0
        %2042 = vmatprep.subr.mxu0 0.0
        %2043 = vmatpush1.msra.mxu0 0.0
        %2044 = vmatprep.subr.mxu0 0.0
        %2045 = vmatpush1.msra.mxu0 0.0
        %2046 = vmatprep.subr.mxu0 0.0
        %2047 = vmatpush1.msra.mxu0 0.0
        %2048 = vmatprep.subr.mxu0 0.0
        %2049 = vmatpush1.msra.mxu0 0.0
        %2050 = vmatprep.subr.mxu0 0.0
        %2051 = vmatpush1.msra.mxu0 0.0
        %2052 = vmatprep.subr.mxu0 0.0
        %2053 = vmatpush1.msra.mxu0 0.0
        %2054 = vmatprep.subr.mxu0 0.0
        %2055 = vmatpush1.msra.mxu0 %v2024
        %2056 = vmatprep.subr.mxu0 0.0
        %2057 = vmatpush1.msra.mxu0 %v2017
        %2058 = vmatprep.subr.mxu0 0.0
        %2059 = vmatpush2.msra.mxu0 0.0
        %2060 = vmatprep.subr.mxu0 0.0
        %2061 = vmatpush2.msra.mxu0 0.0
        %2062 = vmatprep.subr.mxu0 0.0
        %2063 = vmatpush2.msra.mxu0 0.0
        %2064 = vmatprep.subr.mxu0 0.0
        %2065 = vmatpush2.msra.mxu0 0.0
        %2066 = vmatprep.subr.mxu0 0.0
        %2067 = vmatpush2.msra.mxu0 0.0
        %2068 = vmatprep.subr.mxu0 0.0
        %2069 = vmatpush2.msra.mxu0 0.0
        %2070 = vmatprep.subr.mxu0 0.0
        %2071 = vmatpush2.msra.mxu0 0.0
        %2072 = vmatprep.subr.mxu0 0.0
        %2073 = vmatpush2.msra.mxu0 0.0
        %2074 = vmatprep.subr.mxu0 0.0
        %2075 = vmatpush2.msra.mxu0 0.0
        %2076 = vmatprep.subr.mxu0 0.0
        %2077 = vmatpush2.msra.mxu0 0.0
        %2078 = vmatprep.subr.mxu0 0.0
        %2079 = vmatpush2.msra.mxu0 0.0
        %2080 = vmatprep.subr.mxu0 0.0
        %2081 = vmatpush2.msra.mxu0 0.0
        %2082 = vmatprep.subr.mxu0 0.0
        %2083 = vmatpush2.msra.mxu0 0.0
        %2084 = vmatprep.subr.mxu0 0.0
        %2085 = vmatpush2.msra.mxu0 0.0
        %2086 = vmatprep.subr.mxu0 0.0
        %2087 = vmatpush2.msra.mxu0 0.0
        %2088 = vmatprep.subr.mxu0 0.0
        %2089 = vmatpush2.msra.mxu0 0.0
        %2090 = vmatprep.mubr.f32.mxu0 0.0
        %2091 = vmatmul.mubr.f32.gmra.mxu0 %v2022
        %v2092 = vpop.f32.mrf.mxu0
        %v2093 = vadd.f32 0.0, %v2092
        %v2094 = vpop.f32.mrf.mxu0
        %2095 = vdwg.mxu0
        %2096 = vrot.lane.b32.xlu0 %v1579, 96
        %v2097 = vpop.permute.xlu0 %2096
        %2098 = vrot.lane.b32.xlu0 %v1581, 96
        %v2099 = vpop.permute.xlu0 %2098
        %v2102 = vsel %vm1890, %v1933, 0
        %v2104 = vsel %vm1943, %v2099, 0
        %2106 = vmatprep.subr.mxu0 0.0
        %2107 = vmatpush1.msra.mxu0 0.0
        %2108 = vmatprep.subr.mxu0 0.0
        %2109 = vmatpush1.msra.mxu0 0.0
        %2110 = vmatprep.subr.mxu0 0.0
        %2111 = vmatpush1.msra.mxu0 0.0
        %2112 = vmatprep.subr.mxu0 0.0
        %2113 = vmatpush1.msra.mxu0 0.0
        %2114 = vmatprep.subr.mxu0 0.0
        %2115 = vmatpush1.msra.mxu0 0.0
        %2116 = vmatprep.subr.mxu0 0.0
        %2117 = vmatpush1.msra.mxu0 0.0
        %2118 = vmatprep.subr.mxu0 0.0
        %2119 = vmatpush1.msra.mxu0 0.0
        %2120 = vmatprep.subr.mxu0 0.0
        %2121 = vmatpush1.msra.mxu0 0.0
        %2122 = vmatprep.subr.mxu0 0.0
        %2123 = vmatpush1.msra.mxu0 0.0
        %2124 = vmatprep.subr.mxu0 0.0
        %2125 = vmatpush1.msra.mxu0 0.0
        %2126 = vmatprep.subr.mxu0 0.0
        %2127 = vmatpush1.msra.mxu0 0.0
        %2128 = vmatprep.subr.mxu0 0.0
        %2129 = vmatpush1.msra.mxu0 0.0
        %2130 = vmatprep.subr.mxu0 0.0
        %2131 = vmatpush1.msra.mxu0 0.0
        %2132 = vmatprep.subr.mxu0 0.0
        %2133 = vmatpush1.msra.mxu0 0.0
        %2134 = vmatprep.subr.mxu0 0.0
        %2135 = vmatpush1.msra.mxu0 %v2104
        %2136 = vmatprep.subr.mxu0 0.0
        %2137 = vmatpush1.msra.mxu0 %v2097
        %2138 = vmatprep.subr.mxu0 0.0
        %2139 = vmatpush2.msra.mxu0 0.0
        %2140 = vmatprep.subr.mxu0 0.0
        %2141 = vmatpush2.msra.mxu0 0.0
        %2142 = vmatprep.subr.mxu0 0.0
        %2143 = vmatpush2.msra.mxu0 0.0
        %2144 = vmatprep.subr.mxu0 0.0
        %2145 = vmatpush2.msra.mxu0 0.0
        %2146 = vmatprep.subr.mxu0 0.0
        %2147 = vmatpush2.msra.mxu0 0.0
        %2148 = vmatprep.subr.mxu0 0.0
        %2149 = vmatpush2.msra.mxu0 0.0
        %2150 = vmatprep.subr.mxu0 0.0
        %2151 = vmatpush2.msra.mxu0 0.0
        %2152 = vmatprep.subr.mxu0 0.0
        %2153 = vmatpush2.msra.mxu0 0.0
        %2154 = vmatprep.subr.mxu0 0.0
        %2155 = vmatpush2.msra.mxu0 0.0
        %2156 = vmatprep.subr.mxu0 0.0
        %2157 = vmatpush2.msra.mxu0 0.0
        %2158 = vmatprep.subr.mxu0 0.0
        %2159 = vmatpush2.msra.mxu0 0.0
        %2160 = vmatprep.subr.mxu0 0.0
        %2161 = vmatpush2.msra.mxu0 0.0
        %2162 = vmatprep.subr.mxu0 0.0
        %2163 = vmatpush2.msra.mxu0 0.0
        %2164 = vmatprep.subr.mxu0 0.0
        %2165 = vmatpush2.msra.mxu0 0.0
        %2166 = vmatprep.subr.mxu0 0.0
        %2167 = vmatpush2.msra.mxu0 0.0
        %2168 = vmatprep.subr.mxu0 0.0
        %2169 = vmatpush2.msra.mxu0 0.0
        %2170 = vmatprep.mubr.f32.mxu0 0.0
        %2171 = vmatmul.mubr.f32.gmra.mxu0 %v2102
        %v2172 = vpop.f32.mrf.mxu0
        %v2173 = vadd.f32 0.0, %v2172
        %v2174 = vpop.f32.mrf.mxu0
        %2175 = vdwg.mxu0
        %2176 = vrot.lane.b32.xlu0 %v1583, 96
        %v2177 = vpop.permute.xlu0 %2176
        %2178 = vrot.lane.b32.xlu0 %v1585, 96
        %v2179 = vpop.permute.xlu0 %2178
        %v2182 = vsel %vm1890, %v1934, 0
        %v2184 = vsel %vm1943, %v2179, 0
        %2186 = vmatprep.subr.mxu0 0.0
        %2187 = vmatpush1.msra.mxu0 0.0
        %2188 = vmatprep.subr.mxu0 0.0
        %2189 = vmatpush1.msra.mxu0 0.0
        %2190 = vmatprep.subr.mxu0 0.0
        %2191 = vmatpush1.msra.mxu0 0.0
        %2192 = vmatprep.subr.mxu0 0.0
        %2193 = vmatpush1.msra.mxu0 0.0
        %2194 = vmatprep.subr.mxu0 0.0
        %2195 = vmatpush1.msra.mxu0 0.0
        %2196 = vmatprep.subr.mxu0 0.0
        %2197 = vmatpush1.msra.mxu0 0.0
        %2198 = vmatprep.subr.mxu0 0.0
        %2199 = vmatpush1.msra.mxu0 0.0
        %2200 = vmatprep.subr.mxu0 0.0
        %2201 = vmatpush1.msra.mxu0 0.0
        %2202 = vmatprep.subr.mxu0 0.0
        %2203 = vmatpush1.msra.mxu0 0.0
        %2204 = vmatprep.subr.mxu0 0.0
        %2205 = vmatpush1.msra.mxu0 0.0
        %2206 = vmatprep.subr.mxu0 0.0
        %2207 = vmatpush1.msra.mxu0 0.0
        %2208 = vmatprep.subr.mxu0 0.0
        %2209 = vmatpush1.msra.mxu0 0.0
        %2210 = vmatprep.subr.mxu0 0.0
        %2211 = vmatpush1.msra.mxu0 0.0
        %2212 = vmatprep.subr.mxu0 0.0
        %2213 = vmatpush1.msra.mxu0 0.0
        %2214 = vmatprep.subr.mxu0 0.0
        %2215 = vmatpush1.msra.mxu0 %v2184
        %2216 = vmatprep.subr.mxu0 0.0
        %2217 = vmatpush1.msra.mxu0 %v2177
        %2218 = vmatprep.subr.mxu0 0.0
        %2219 = vmatpush2.msra.mxu0 0.0
        %2220 = vmatprep.subr.mxu0 0.0
        %2221 = vmatpush2.msra.mxu0 0.0
        %2222 = vmatprep.subr.mxu0 0.0
        %2223 = vmatpush2.msra.mxu0 0.0
        %2224 = vmatprep.subr.mxu0 0.0
        %2225 = vmatpush2.msra.mxu0 0.0
        %2226 = vmatprep.subr.mxu0 0.0
        %2227 = vmatpush2.msra.mxu0 0.0
        %2228 = vmatprep.subr.mxu0 0.0
        %2229 = vmatpush2.msra.mxu0 0.0
        %2230 = vmatprep.subr.mxu0 0.0
        %2231 = vmatpush2.msra.mxu0 0.0
        %2232 = vmatprep.subr.mxu0 0.0
        %2233 = vmatpush2.msra.mxu0 0.0
        %2234 = vmatprep.subr.mxu0 0.0
        %2235 = vmatpush2.msra.mxu0 0.0
        %2236 = vmatprep.subr.mxu0 0.0
        %2237 = vmatpush2.msra.mxu0 0.0
        %2238 = vmatprep.subr.mxu0 0.0
        %2239 = vmatpush2.msra.mxu0 0.0
        %2240 = vmatprep.subr.mxu0 0.0
        %2241 = vmatpush2.msra.mxu0 0.0
        %2242 = vmatprep.subr.mxu0 0.0
        %2243 = vmatpush2.msra.mxu0 0.0
        %2244 = vmatprep.subr.mxu0 0.0
        %2245 = vmatpush2.msra.mxu0 0.0
        %2246 = vmatprep.subr.mxu0 0.0
        %2247 = vmatpush2.msra.mxu0 0.0
        %2248 = vmatprep.subr.mxu0 0.0
        %2249 = vmatpush2.msra.mxu0 0.0
        %2250 = vmatprep.mubr.f32.mxu0 0.0
        %2251 = vmatmul.mubr.f32.gmra.mxu0 %v2182
        %v2252 = vpop.f32.mrf.mxu0
        %v2253 = vadd.f32 0.0, %v2252
        %v2254 = vpop.f32.mrf.mxu0
        %2255 = vdwg.mxu0
        %2257 = vrot.lane.b32.xlu0 %v2093, 8
        %v2258 = vpop.permute.xlu0 %2257
        %2261 = vrot.lane.b32.xlu0 %v2173, 16
        %v2262 = vpop.permute.xlu0 %2261
        %2265 = vrot.lane.b32.xlu0 %v2253, 24
        %v2266 = vpop.permute.xlu0 %2265
        %v2268 = vsel %vm624, %v2013, %v2258
        %v2269 = vsel %vm1294, %v2268, %v2262
        %v2270 = vsel %vm1296, %v2269, %v2266
        %v2271 = vld [vmem:[#allocation8] sm:$0xff]
        %v2272 = vld [vmem:[#allocation8 + $0x8] sm:$0xff]
        %v2273 = vld [vmem:[#allocation8 + $0x10] sm:$0xff]
        %v2274 = vld [vmem:[#allocation8 + $0x18] sm:$0xff]
        %v2275 = vlaneseq
        %v2276 = vshrl.u32 %v2275, 7
        %v2277 = vsub.s32 1, %v2276
        %v2278 = vrot.slane %v507, %v2277
        %v2280 = vsel %vm508, %v2270, 0
        %2282 = vmatprep.subr.mxu0 0.0
        %2283 = vmatpush1.msra.mxu0 0.0
        %2284 = vmatprep.subr.mxu0 0.0
        %2285 = vmatpush1.msra.mxu0 0.0
        %2286 = vmatprep.subr.mxu0 0.0
        %2287 = vmatpush1.msra.mxu0 0.0
        %2288 = vmatprep.subr.mxu0 0.0
        %2289 = vmatpush1.msra.mxu0 0.0
        %2290 = vmatprep.subr.mxu0 0.0
        %2291 = vmatpush1.msra.mxu0 0.0
        %2292 = vmatprep.subr.mxu0 0.0
        %2293 = vmatpush1.msra.mxu0 0.0
        %2294 = vmatprep.subr.mxu0 0.0
        %2295 = vmatpush1.msra.mxu0 0.0
        %2296 = vmatprep.subr.mxu0 0.0
        %2297 = vmatpush1.msra.mxu0 0.0
        %2298 = vmatprep.subr.mxu0 0.0
        %2299 = vmatpush1.msra.mxu0 0.0
        %2300 = vmatprep.subr.mxu0 0.0
        %2301 = vmatpush1.msra.mxu0 0.0
        %2302 = vmatprep.subr.mxu0 0.0
        %2303 = vmatpush1.msra.mxu0 0.0
        %2304 = vmatprep.subr.mxu0 0.0
        %2305 = vmatpush1.msra.mxu0 0.0
        %2306 = vmatprep.subr.mxu0 0.0
        %2307 = vmatpush1.msra.mxu0 %v2274
        %2308 = vmatprep.subr.mxu0 0.0
        %2309 = vmatpush1.msra.mxu0 %v2273
        %2310 = vmatprep.subr.mxu0 0.0
        %2311 = vmatpush1.msra.mxu0 %v2272
        %2312 = vmatprep.subr.mxu0 0.0
        %2313 = vmatpush1.msra.mxu0 %v2271
        %2314 = vmatprep.subr.mxu0 0.0
        %2315 = vmatpush2.msra.mxu0 0.0
        %2316 = vmatprep.subr.mxu0 0.0
        %2317 = vmatpush2.msra.mxu0 0.0
        %2318 = vmatprep.subr.mxu0 0.0
        %2319 = vmatpush2.msra.mxu0 0.0
        %2320 = vmatprep.subr.mxu0 0.0
        %2321 = vmatpush2.msra.mxu0 0.0
        %2322 = vmatprep.subr.mxu0 0.0
        %2323 = vmatpush2.msra.mxu0 0.0
        %2324 = vmatprep.subr.mxu0 0.0
        %2325 = vmatpush2.msra.mxu0 0.0
        %2326 = vmatprep.subr.mxu0 0.0
        %2327 = vmatpush2.msra.mxu0 0.0
        %2328 = vmatprep.subr.mxu0 0.0
        %2329 = vmatpush2.msra.mxu0 0.0
        %2330 = vmatprep.subr.mxu0 0.0
        %2331 = vmatpush2.msra.mxu0 0.0
        %2332 = vmatprep.subr.mxu0 0.0
        %2333 = vmatpush2.msra.mxu0 0.0
        %2334 = vmatprep.subr.mxu0 0.0
        %2335 = vmatpush2.msra.mxu0 0.0
        %2336 = vmatprep.subr.mxu0 0.0
        %2337 = vmatpush2.msra.mxu0 0.0
        %2338 = vmatprep.subr.mxu0 0.0
        %2339 = vmatpush2.msra.mxu0 0.0
        %2340 = vmatprep.subr.mxu0 0.0
        %2341 = vmatpush2.msra.mxu0 0.0
        %2342 = vmatprep.subr.mxu0 0.0
        %2343 = vmatpush2.msra.mxu0 0.0
        %2344 = vmatprep.subr.mxu0 0.0
        %2345 = vmatpush2.msra.mxu0 0.0
        %2346 = vmatprep.mubr.f32.mxu0 0.0
        %2347 = vmatmul.mubr.f32.gmra.mxu0 %v2280
        %v2348 = vpop.f32.mrf.mxu0
        %v2349 = vadd.f32 %v2278, %v2348
        %v2350 = vpop.f32.mrf.mxu0
        %2351 = vdwg.mxu0
        %v2352 = vadd.f32 %v1402, %v2349
        %v2353 = vsel %vm508, %v2352, 0.0
        %2354 = vadd.xlane.f32.xlu0 %v2353
        %v2355 = vpop.xlane.xlu0 %2354
        %v2356 = vmul.f32 %v2355, %v512
        %v2357 = vsub.f32 %v2352, %v2356
        %v2358 = vmul.f32 %v2357, %v2357
        %v2359 = vsel %vm508, %v2358, 0.0
        %2360 = vadd.xlane.f32.xlu0 %v2359
        %v2361 = vpop.xlane.xlu0 %2360
        %v2362 = vmul.f32 %v2361, %v512
        %v2363 = vadd.f32 %v2362, 1e-05
        %v2364 = vrsqrt.pop %v2363
        %v2365 = vmul.f32 %v2357, %v2364
        %v2366 = vlaneseq
        %v2367 = vshrl.u32 %v2366, 7
        %v2368 = vsub.s32 4, %v2367
        %v2369 = vrot.slane %v506, %v2368
        %v2370 = vmul.f32 %v2365, %v2369
        %v2371 = vlaneseq
        %v2372 = vshrl.u32 %v2371, 7
        %v2373 = vsub.s32 5, %v2372
        %v2374 = vrot.slane %v506, %v2373
        %v2375 = vadd.f32 %v2370, %v2374
        %v2376 = vld [vmem:[#allocation10] sm:$0xff]
        %v2377 = vld [vmem:[#allocation10 + $0x8] sm:$0xff]
        %v2378 = vld [vmem:[#allocation10 + $0x10] sm:$0xff]
        %v2379 = vld [vmem:[#allocation10 + $0x18] sm:$0xff]
        %v2380 = vld [vmem:[%s4] sm:$0x1]
        %v2382 = vlaneseq
        %v2383 = vshrl.u32 %v2382, 7
        %v2384 = vsub.s32 0, %v2383
        %v2385 = vrot.slane %v2380, %v2384
        %v2388 = vsel %vm508, %v2375, 0
        %2390 = vmatprep.subr.mxu0 0.0
        %2391 = vmatpush1.msra.mxu0 0.0
        %2392 = vmatprep.subr.mxu0 0.0
        %2393 = vmatpush1.msra.mxu0 0.0
        %2394 = vmatprep.subr.mxu0 0.0
        %2395 = vmatpush1.msra.mxu0 0.0
        %2396 = vmatprep.subr.mxu0 0.0
        %2397 = vmatpush1.msra.mxu0 0.0
        %2398 = vmatprep.subr.mxu0 0.0
        %2399 = vmatpush1.msra.mxu0 0.0
        %2400 = vmatprep.subr.mxu0 0.0
        %2401 = vmatpush1.msra.mxu0 0.0
        %2402 = vmatprep.subr.mxu0 0.0
        %2403 = vmatpush1.msra.mxu0 0.0
        %2404 = vmatprep.subr.mxu0 0.0
        %2405 = vmatpush1.msra.mxu0 0.0
        %2406 = vmatprep.subr.mxu0 0.0
        %2407 = vmatpush1.msra.mxu0 0.0
        %2408 = vmatprep.subr.mxu0 0.0
        %2409 = vmatpush1.msra.mxu0 0.0
        %2410 = vmatprep.subr.mxu0 0.0
        %2411 = vmatpush1.msra.mxu0 0.0
        %2412 = vmatprep.subr.mxu0 0.0
        %2413 = vmatpush1.msra.mxu0 0.0
        %2414 = vmatprep.subr.mxu0 0.0
        %2415 = vmatpush1.msra.mxu0 %v2379
        %2416 = vmatprep.subr.mxu0 0.0
        %2417 = vmatpush1.msra.mxu0 %v2378
        %2418 = vmatprep.subr.mxu0 0.0
        %2419 = vmatpush1.msra.mxu0 %v2377
        %2420 = vmatprep.subr.mxu0 0.0
        %2421 = vmatpush1.msra.mxu0 %v2376
        %2422 = vmatprep.subr.mxu0 0.0
        %2423 = vmatpush2.msra.mxu0 0.0
        %2424 = vmatprep.subr.mxu0 0.0
        %2425 = vmatpush2.msra.mxu0 0.0
        %2426 = vmatprep.subr.mxu0 0.0
        %2427 = vmatpush2.msra.mxu0 0.0
        %2428 = vmatprep.subr.mxu0 0.0
        %2429 = vmatpush2.msra.mxu0 0.0
        %2430 = vmatprep.subr.mxu0 0.0
        %2431 = vmatpush2.msra.mxu0 0.0
        %2432 = vmatprep.subr.mxu0 0.0
        %2433 = vmatpush2.msra.mxu0 0.0
        %2434 = vmatprep.subr.mxu0 0.0
        %2435 = vmatpush2.msra.mxu0 0.0
        %2436 = vmatprep.subr.mxu0 0.0
        %2437 = vmatpush2.msra.mxu0 0.0
        %2438 = vmatprep.subr.mxu0 0.0
        %2439 = vmatpush2.msra.mxu0 0.0
        %2440 = vmatprep.subr.mxu0 0.0
        %2441 = vmatpush2.msra.mxu0 0.0
        %2442 = vmatprep.subr.mxu0 0.0
        %2443 = vmatpush2.msra.mxu0 0.0
        %2444 = vmatprep.subr.mxu0 0.0
        %2445 = vmatpush2.msra.mxu0 0.0
        %2446 = vmatprep.subr.mxu0 0.0
        %2447 = vmatpush2.msra.mxu0 0.0
        %2448 = vmatprep.subr.mxu0 0.0
        %2449 = vmatpush2.msra.mxu0 0.0
        %2450 = vmatprep.subr.mxu0 0.0
        %2451 = vmatpush2.msra.mxu0 0.0
        %2452 = vmatprep.subr.mxu0 0.0
        %2453 = vmatpush2.msra.mxu0 0.0
        %2454 = vmatprep.mubr.f32.mxu0 0.0
        %2455 = vmatmul.mubr.f32.gmra.mxu0 %v2388
        %v2456 = vpop.f32.mrf.mxu0
        %v2457 = vadd.f32 %v2385, %v2456
        %v2458 = vpop.f32.mrf.mxu0
        %2459 = vdwg.mxu0
        %v2460 = vmax.f32 %v2457, 0.0
        %v2461 = vld [vmem:[%s11] sm:$0xff]
        %v2462 = vld [vmem:[%s11 + $0x8] sm:$0xff]
        %v2463 = vld [vmem:[%s11 + $0x10] sm:$0xff]
        %v2464 = vld [vmem:[%s11 + $0x18] sm:$0xff]
        %v2465 = vld [vmem:[%s11 + $0x20] sm:$0xff]
        %v2466 = vld [vmem:[%s11 + $0x28] sm:$0xff]
        %v2467 = vld [vmem:[%s11 + $0x30] sm:$0xff]
        %v2468 = vld [vmem:[%s11 + $0x38] sm:$0xff]
        %v2469 = vlaneseq
        %v2470 = vshrl.u32 %v2469, 7
        %v2471 = vsub.s32 2, %v2470
        %v2472 = vrot.slane %v507, %v2471
        %vm2473 = vcmask 523264
        %v2475 = vsel %vm2473, %v2460, 0
        %2477 = vmatprep.subr.mxu0 0.0
        %2478 = vmatpush1.msra.mxu0 0.0
        %2479 = vmatprep.subr.mxu0 0.0
        %2480 = vmatpush1.msra.mxu0 0.0
        %2481 = vmatprep.subr.mxu0 0.0
        %2482 = vmatpush1.msra.mxu0 0.0
        %2483 = vmatprep.subr.mxu0 0.0
        %2484 = vmatpush1.msra.mxu0 0.0
        %2485 = vmatprep.subr.mxu0 0.0
        %2486 = vmatpush1.msra.mxu0 0.0
        %2487 = vmatprep.subr.mxu0 0.0
        %2488 = vmatpush1.msra.mxu0 0.0
        %2489 = vmatprep.subr.mxu0 0.0
        %2490 = vmatpush1.msra.mxu0 0.0
        %2491 = vmatprep.subr.mxu0 0.0
        %2492 = vmatpush1.msra.mxu0 0.0
        %2493 = vmatprep.subr.mxu0 0.0
        %2494 = vmatpush1.msra.mxu0 %v2468
        %2495 = vmatprep.subr.mxu0 0.0
        %2496 = vmatpush1.msra.mxu0 %v2467
        %2497 = vmatprep.subr.mxu0 0.0
        %2498 = vmatpush1.msra.mxu0 %v2466
        %2499 = vmatprep.subr.mxu0 0.0
        %2500 = vmatpush1.msra.mxu0 %v2465
        %2501 = vmatprep.subr.mxu0 0.0
        %2502 = vmatpush1.msra.mxu0 %v2464
        %2503 = vmatprep.subr.mxu0 0.0
        %2504 = vmatpush1.msra.mxu0 %v2463
        %2505 = vmatprep.subr.mxu0 0.0
        %2506 = vmatpush1.msra.mxu0 %v2462
        %2507 = vmatprep.subr.mxu0 0.0
        %2508 = vmatpush1.msra.mxu0 %v2461
        %2509 = vmatprep.subr.mxu0 0.0
        %2510 = vmatpush2.msra.mxu0 0.0
        %2511 = vmatprep.subr.mxu0 0.0
        %2512 = vmatpush2.msra.mxu0 0.0
        %2513 = vmatprep.subr.mxu0 0.0
        %2514 = vmatpush2.msra.mxu0 0.0
        %2515 = vmatprep.subr.mxu0 0.0
        %2516 = vmatpush2.msra.mxu0 0.0
        %2517 = vmatprep.subr.mxu0 0.0
        %2518 = vmatpush2.msra.mxu0 0.0
        %2519 = vmatprep.subr.mxu0 0.0
        %2520 = vmatpush2.msra.mxu0 0.0
        %2521 = vmatprep.subr.mxu0 0.0
        %2522 = vmatpush2.msra.mxu0 0.0
        %2523 = vmatprep.subr.mxu0 0.0
        %2524 = vmatpush2.msra.mxu0 0.0
        %2525 = vmatprep.subr.mxu0 0.0
        %2526 = vmatpush2.msra.mxu0 0.0
        %2527 = vmatprep.subr.mxu0 0.0
        %2528 = vmatpush2.msra.mxu0 0.0
        %2529 = vmatprep.subr.mxu0 0.0
        %2530 = vmatpush2.msra.mxu0 0.0
        %2531 = vmatprep.subr.mxu0 0.0
        %2532 = vmatpush2.msra.mxu0 0.0
        %2533 = vmatprep.subr.mxu0 0.0
        %2534 = vmatpush2.msra.mxu0 0.0
        %2535 = vmatprep.subr.mxu0 0.0
        %2536 = vmatpush2.msra.mxu0 0.0
        %2537 = vmatprep.subr.mxu0 0.0
        %2538 = vmatpush2.msra.mxu0 0.0
        %2539 = vmatprep.subr.mxu0 0.0
        %2540 = vmatpush2.msra.mxu0 0.0
        %2541 = vmatprep.mubr.f32.mxu0 0.0
        %2542 = vmatmul.mubr.f32.gmra.mxu0 %v2475
        %v2543 = vpop.f32.mrf.mxu0
        %v2544 = vadd.f32 %v2472, %v2543
        %v2545 = vpop.f32.mrf.mxu0
        %2546 = vdwg.mxu0
        %v2547 = vadd.f32 %v2375, %v2544
        %2548 = vst.msk [vmem:[%s497] sm:$0xff] %vm508, %v2547
        %s2549 = sand.u32 %s301, 1
        %s2550 = scalar_lea.sflag [#allocation4], %s2549
        %s2551 = sand.u32 %s301, 1
        %s2552 = smul.addr %s2551, 8
        %s2553 = scalar_lea.vmem [#allocation11], %s2552
        // Predicated region
        $region89: #{tpu_custom_call.1} parent=67 // pred_check
          %p2554 = pneg %p311
        $region90: #{tpu_custom_call.1} parent=67 // pred_check_branch
          %2556 = sbr.rel (%p2554) target = $region92
        $region91: #{tpu_custom_call.1} parent=67 // pred_region
          %s2558 = ssub.s32 128, 128
          %2559 = vsyncadd %s2550, %s2558
          %s2560 = smul.addr %s31, 128
          %s2561 = scalar_lea.hbm %s12, %s2560
          %s2563 = sshll.u32 %s2553, 4
          %s2564 = int_to_ptr.vmem [resolvable:$true] %s2563
          %2566 = dma.vmem_to_hbm [thread:$0]  %s2564, 128, %s2561, %s2550
        $region92: #{tpu_custom_call.1} parent=67 // pred_fallthru
          _
      $region68: #{tpu_custom_call.1} parent=5 // pred_fallthru
        _
      %p2567 = scmp.le.s32.totalorder 2, %s26
      // Predicated region
      $region93: #{tpu_custom_call.1} parent=5 // pred_check
        %p2568 = pneg %p2567
      $region94: #{tpu_custom_call.1} parent=5 // pred_check_branch
        %2570 = sbr.rel (%p2568) target = $region96
      $region95: #{tpu_custom_call.1} parent=5 // pred_region
        %s2571 = ssub.s32 %s26, 2
        // Predicated region
        $region97: #{tpu_custom_call.1} parent=95 // pred_check
          %p2572 = pneg %p317
        $region98: #{tpu_custom_call.1} parent=95 // pred_check_branch
          %2574 = sbr.rel (%p2572) target = $region100
        $region99: #{tpu_custom_call.1} parent=95 // pred_region
          %s2575 = sand.u32 %s302, 1
          %s2576 = scalar_lea.sflag [#allocation4], %s2575
          %s2577 = sand.u32 %s302, 1
          %s2578 = smul.addr %s2577, 8
          %s2579 = scalar_lea.vmem [#allocation11], %s2578
          %2580 = dma.done %s2576, 128
        $region100: #{tpu_custom_call.1} parent=95 // pred_fallthru
          _
      $region96: #{tpu_custom_call.1} parent=5 // pred_fallthru
        _
    $region6: #{tpu_custom_call.1} parent=1 // loop_footer
      %s30 = sadd.s32 1, %s26
    $region7: #{tpu_custom_call.1} parent=1 // loop_footer_branch
      %25 = sbr.rel target = $region3
    $region8: #{tpu_custom_call.1} parent=1 // loop_exit
      _
    %2581 = vsyncpa [#allocation3], 1
    %s2582 = scalar_lea.sflag [#allocation3], 1
    %2583 = vsyncpa %s2582, 1
    %2584 = vsyncpa [#allocation6], 1
    %2585 = vsyncpa [#allocation9], 1
    %2586 = vsyncpa [#allocation4], 1
    %s2587 = scalar_lea.sflag [#allocation4], 1
    %2588 = vsyncpa %s2587, 1

</llo_original>
